<compile_context>
chip_gen: v7x
topology: tpu7x:2x2x1
jax: 0.10.0
libtpu: 0.0.40
codegen_flags: <defaults>
</compile_context>

<pallas_src>
import functools

import jax
import jax.numpy as jnp
from jax.experimental import pallas as pl
from jax.experimental.pallas import tpu as pltpu


PARAM_ORDER = [
    "conv1_wT", "conv1_b", "bn1_s", "bn1_b",
    "convs_wT", "convs_b", "bns_s", "bns_b",
    "conv3_wT", "conv3_b", "bn3_s", "bn3_b",
    "se_w1T", "se_b1", "se_w2T", "se_b2",
]

MATMUL_DTYPE = jnp.bfloat16   # MXU operand dtype; accumulation is always f32


def _bottle2neck_kernel(
    x_ref,                       # (Bb, T, Cin)  f32
    conv1_wT_ref, conv1_b_ref,   # (Cin, W*S) bf16, (1, W*S) f32
    bn1_s_ref, bn1_b_ref,        # (1, W*S) f32
    convs_wT_ref,                # (nums, K*W, W) bf16 -- tap-major rows
    convs_b_ref,                 # (nums, 1, W) f32
    bns_s_ref, bns_b_ref,        # (nums, 1, W) f32
    conv3_wT_ref, conv3_b_ref,   # (W*S, P) bf16, (1, P) f32
    bn3_s_ref, bn3_b_ref,        # (1, P) f32
    se_w1T_ref, se_b1_ref,       # (P, BNECK) bf16, (1, BNECK) f32
    se_w2T_ref, se_b2_ref,       # (BNECK, P) bf16, (1, P) f32
    out_ref,                     # (Bb, T, P)
    cat_ref,                     # VMEM scratch (Bb*T, W*S) bf16  -- replaces jnp.concatenate
    pad_ref,                     # VMEM scratch (Bb, T + 2*pad, W) bf16 -- replaces jnp.pad
    *, width, scale, kernel_size, dilation,
):
    nums = scale - 1
    pad = (kernel_size // 2) * dilation
    W = width
    Bb, T, Cin = x_ref.shape
    M = Bb * T

    def mm(a, w):
        # bf16 MXU operands, f32 accumulation; avoid redundant casts when already bf16.
        a = a if a.dtype == MATMUL_DTYPE else a.astype(MATMUL_DTYPE)
        return jnp.dot(a, w, preferred_element_type=jnp.float32)

    x = x_ref[...].astype(jnp.float32)                 # f32 copy kept only for the residual
    x2_lp = x.reshape(M, Cin).astype(MATMUL_DTYPE)     # cast once for the conv1 matmul

    # conv1 (1x1) -> ReLU -> BN1 (inference-mode folded affine), stored straight into cat_ref.
    out = mm(x2_lp, conv1_wT_ref[...])
    out = jnp.maximum(out + conv1_b_ref[...], 0.0)
    out = out * bn1_s_ref[...] + bn1_b_ref[...]        # (M, W*S) f32, dead after this store
    cat_ref[...] = out.astype(cat_ref.dtype)

    # Zero only the halo rows of the persistent padded scratch; the interior is overwritten
    # every group iteration. (Unconditional: see header note about megacore sharding.)
    if pad > 0:
        pad_ref[:, :pad, :] = jnp.zeros((Bb, pad, W), pad_ref.dtype)
        pad_ref[:, pad + T:, :] = jnp.zeros((Bb, pad, W), pad_ref.dtype)

    sp = None
    for i in range(nums):
        # Read chunk i of conv1's output from cat_ref (it is overwritten below, after the read).
        chunk = cat_ref[:, i * W:(i + 1) * W].astype(jnp.float32)   # (M, W)
        sp = chunk if i == 0 else sp + chunk                        # running sum in f32 vregs
        pad_ref[:, pad:pad + T, :] = sp.reshape(Bb, T, W).astype(pad_ref.dtype)

        # Dilated K-tap conv as K accumulating depth-W matmuls reading tap slices of pad_ref
        # directly (no (M, K*W) im2col intermediate / lane concat).
        w_i = convs_wT_ref[i]                                        # (K*W, W) bf16
        acc = jnp.zeros((M, W), jnp.float32) + convs_b_ref[i]
        for j in range(kernel_size):
            tap = pad_ref[:, j * dilation:j * dilation + T, :].reshape(M, W)
            acc = acc + mm(tap, w_i[j * W:(j + 1) * W, :])
        acc = jnp.maximum(acc, 0.0)
        sp_out = acc * bns_s_ref[i] + bns_b_ref[i]                   # (M, W) f32
        cat_ref[:, i * W:(i + 1) * W] = sp_out.astype(cat_ref.dtype)
    # cat_ref's last chunk still holds conv1's output (never touched) -- no extra copy needed.

    # conv3 (1x1) -> ReLU -> BN3
    o3 = mm(cat_ref[...], conv3_wT_ref[...])
    o3 = jnp.maximum(o3 + conv3_b_ref[...], 0.0)
    o3 = o3 * bn3_s_ref[...] + bn3_b_ref[...]          # (M, P) f32

    # SE: per-batch global average pool over time -> fc -> ReLU -> fc -> sigmoid gate.
    o3b = o3.reshape(Bb, T, -1)
    pooled = jnp.mean(o3b, axis=1)                     # (Bb, P)
    h = jnp.maximum(mm(pooled, se_w1T_ref[...]) + se_b1_ref[...], 0.0)
    gate = jax.nn.sigmoid(mm(h, se_w2T_ref[...]) + se_b2_ref[...])   # (Bb, P)
    o = o3b * gate[:, None, :]

    # residual add (requires inplanes == planes, as in the PyTorch module's usage)
    out_ref[...] = (o + x).astype(out_ref.dtype)


def bottle2neck_forward(x_btc, params, *, width, scale, kernel_size, dilation,
                        block_batch=None, vmem_limit_bytes=None):
    B, T, Cin = x_btc.shape
    planes = params["conv3_wT"].shape[1]
    assert Cin == planes, "residual add requires inplanes == planes"
    assert T % 8 == 0, "T must be a multiple of 8 (free (Bb,T)<->M re-tiling)"

    if block_batch is None:
        # >= 2 grid blocks whenever possible so both v7x TensorCores get work.
        block_batch = B if B < 2 else max(d for d in range(1, B // 2 + 1) if B % d == 0)
    assert B % block_batch == 0, "batch must be divisible by block_batch"
    Bb = block_batch
    pad = (kernel_size // 2) * dilation

    if vmem_limit_bytes is None:
        kind = jax.devices()[0].device_kind.lower()
        # v5e / v6e have 128 MiB physical VMEM (raise the scoped cap); v7x only 64 MiB.
        vmem_limit_bytes = (100 if ("v5" in kind or "v6" in kind) else 48) * 1024 * 1024

    kernel = functools.partial(
        _bottle2neck_kernel,
        width=width, scale=scale, kernel_size=kernel_size, dilation=dilation)

    def invariant_spec(a):
        # Constant index_map => single-buffer; double-buffering only doubles VMEM.
        nd = a.ndim
        idx = lambda g, _nd=nd: (0,) * _nd
        try:
            return pl.BlockSpec(a.shape, idx, pipeline_mode=pl.Buffered(1))
        except Exception:  # older Pallas without pipeline_mode / Buffered
            return pl.BlockSpec(a.shape, idx)

    ordered = [params[k] for k in PARAM_ORDER]
    in_specs = [pl.BlockSpec((Bb, T, Cin), lambda g: (g, 0, 0))]
    in_specs += [invariant_spec(a) for a in ordered]

    grid_spec = pltpu.PrefetchScalarGridSpec(
        num_scalar_prefetch=0,
        grid=(B // Bb,),
        in_specs=in_specs,
        out_specs=pl.BlockSpec((Bb, T, planes), lambda g: (g, 0, 0)),
        scratch_shapes=[
            # bf16 scratch: both buffers only ever feed bf16 MXU operands.
            pltpu.VMEM((Bb * T, width * scale), MATMUL_DTYPE),    # cat buffer
            pltpu.VMEM((Bb, T + 2 * pad, width), MATMUL_DTYPE),   # padded group buffer
        ],
    )

    return pl.pallas_call(
        kernel,
        out_shape=jax.ShapeDtypeStruct((B, T, planes), x_btc.dtype),
        grid_spec=grid_spec,
        compiler_params=pltpu.CompilerParams(
            dimension_semantics=("parallel",),      # shard batch blocks over v7x's 2 TCs
            vmem_limit_bytes=vmem_limit_bytes,
        ),
    )(x_btc, *ordered)


def ref_forward(x_btc, params, *, width, scale, kernel_size, dilation):
    """Pure-JAX reference mirroring the kernel math (bf16 matmuls + bf16 scratch rounding)."""
    nums = scale - 1
    pad_n = (kernel_size // 2) * dilation
    K = kernel_size
    W = width
    lp = MATMUL_DTYPE

    def mm(a, w):
        return jnp.dot(a.astype(lp), w, preferred_element_type=jnp.float32)

    def one(x):  # (T, Cin) f32
        T = x.shape[0]
        out = jnp.maximum(mm(x, params["conv1_wT"]) + params["conv1_b"], 0.0)
        out = out * params["bn1_s"] + params["bn1_b"]
        out = out.astype(lp).astype(jnp.float32)          # cat_ref storage rounding
        pieces = []
        sp = None
        for i in range(nums):
            chunk = out[:, i * W:(i + 1) * W]
            sp = chunk if i == 0 else sp + chunk
            padded = jnp.pad(sp.astype(lp), ((pad_n, pad_n), (0, 0)))   # pad_ref rounding
            w_i = params["convs_wT"][i]                                  # (K*W, W) bf16
            acc = jnp.zeros((T, W), jnp.float32) + params["convs_b"][i]
            for j in range(K):
                off = j * dilation
                acc = acc + jnp.dot(padded[off:off + T, :], w_i[j * W:(j + 1) * W, :],
                                    preferred_element_type=jnp.float32)
            acc = jnp.maximum(acc, 0.0)
            sp_bn = acc * params["bns_s"][i] + params["bns_b"][i]
            pieces.append(sp_bn.astype(lp).astype(jnp.float32))          # cat_ref rounding
        pieces.append(out[:, nums * W:scale * W])
        cat = jnp.concatenate(pieces, axis=1)
        o3 = jnp.maximum(mm(cat, params["conv3_wT"]) + params["conv3_b"], 0.0)
        o3 = o3 * params["bn3_s"] + params["bn3_b"]
        pooled = jnp.mean(o3, axis=0, keepdims=True)
        h = jnp.maximum(mm(pooled, params["se_w1T"]) + params["se_b1"], 0.0)
        gate = jax.nn.sigmoid(mm(h, params["se_w2T"]) + params["se_b2"])
        return o3 * gate + x

    return jax.vmap(one)(x_btc)


def init_params(key, *, inplanes, planes, scale, kernel_size, bottleneck=128):
    width = planes // scale
    nums = scale - 1
    eps = 1e-5
    ks = jax.random.split(key, 16)

    def nrm(k, shape, s=0.1):
        return (s * jax.random.normal(k, shape)).astype(jnp.float32)

    def bn_fold(k, c):
        k1, k2, k3, k4 = jax.random.split(k, 4)
        gamma = jax.random.uniform(k1, (1, c), minval=0.5, maxval=1.5)
        beta = 0.1 * jax.random.normal(k2, (1, c))
        rmean = 0.1 * jax.random.normal(k3, (1, c))
        rvar = jax.random.uniform(k4, (1, c), minval=0.5, maxval=1.5)
        s = gamma / jnp.sqrt(rvar + eps)
        b = beta - rmean * s
        return s.astype(jnp.float32), b.astype(jnp.float32)

    bn1_s, bn1_b = bn_fold(ks[2], width * scale)
    bn3_s, bn3_b = bn_fold(ks[9], planes)

    bns_s_list, bns_b_list = [], []
    for i in range(nums):
        s, b = bn_fold(jax.random.fold_in(ks[6], i), width)
        bns_s_list.append(s)
        bns_b_list.append(b)

    mmdt = MATMUL_DTYPE
    params = {
        # 1x1 convs stored pre-transposed (y = x @ wT + b); matmul weights in bf16
        "conv1_wT": nrm(ks[0], (inplanes, width * scale)).astype(mmdt),
        "conv1_b": nrm(ks[1], (1, width * scale)),
        "bn1_s": bn1_s, "bn1_b": bn1_b,
        # dilated convs in tap-major layout: (nums, K*W, W)
        "convs_wT": nrm(ks[3], (nums, kernel_size, width, width))
                        .reshape(nums, kernel_size * width, width).astype(mmdt),
        "convs_b": nrm(ks[4], (nums, 1, width)),
        "bns_s": jnp.stack(bns_s_list), "bns_b": jnp.stack(bns_b_list),
        "conv3_wT": nrm(ks[7], (width * scale, planes)).astype(mmdt),
        "conv3_b": nrm(ks[8], (1, planes)),
        "bn3_s": bn3_s, "bn3_b": bn3_b,
        "se_w1T": nrm(ks[10], (planes, bottleneck)).astype(mmdt),
        "se_b1": nrm(ks[11], (1, bottleneck)),
        "se_w2T": nrm(ks[12], (bottleneck, planes)).astype(mmdt),
        "se_b2": nrm(ks[13], (1, planes)),
    }
    return params, width


if __name__ == "__main__":
    # inplanes == planes required by the residual add; scale=8 -> width=8.
    B, C, T = 4, 64, 32
    planes, scale, kernel_size, dilation = 64, 8, 3, 2
    B_blk = 2   # 2 batch blocks -> both v7x TensorCores get work; M = B_blk*T = 64

    key = jax.random.PRNGKey(0)
    kx, kp = jax.random.split(key)

    # PyTorch-style NCT input, transposed to the kernel's (B, T, C) layout.
    x_nct = jax.random.normal(kx, (B, C, T), dtype=jnp.float32)
    x_btc = jnp.transpose(x_nct, (0, 2, 1))

    params, width = init_params(
        kp, inplanes=C, planes=planes, scale=scale, kernel_size=kernel_size)

    out = bottle2neck_forward(
        x_btc, params, width=width, scale=scale,
        kernel_size=kernel_size, dilation=dilation, block_batch=B_blk)
    out = jax.block_until_ready(out)

    ref = jax.block_until_ready(ref_forward(
        x_btc, params, width=width, scale=scale,
        kernel_size=kernel_size, dilation=dilation))

    assert out.shape == (B, T, planes), out.shape
    assert bool(jnp.all(jnp.isfinite(out)))
    max_err = float(jnp.max(jnp.abs(out - ref)))
    assert jnp.allclose(out, ref, atol=1e-2, rtol=1e-2), max_err
    print("KERNEL_OK")
</pallas_src>

<mosaic_0001>
module attributes {stable_mosaic.version = 11 : i64} {
  func.func @_bottle2neck_kernel(%arg0: i32, %arg1: memref<2x32x64xf32, #tpu.memory_space<vmem>>, %arg2: memref<64x64xbf16, #tpu.memory_space<vmem>>, %arg3: memref<1x64xf32, #tpu.memory_space<vmem>>, %arg4: memref<1x64xf32, #tpu.memory_space<vmem>>, %arg5: memref<1x64xf32, #tpu.memory_space<vmem>>, %arg6: memref<7x24x8xbf16, #tpu.memory_space<vmem>>, %arg7: memref<7x1x8xf32, #tpu.memory_space<vmem>>, %arg8: memref<7x1x8xf32, #tpu.memory_space<vmem>>, %arg9: memref<7x1x8xf32, #tpu.memory_space<vmem>>, %arg10: memref<64x64xbf16, #tpu.memory_space<vmem>>, %arg11: memref<1x64xf32, #tpu.memory_space<vmem>>, %arg12: memref<1x64xf32, #tpu.memory_space<vmem>>, %arg13: memref<1x64xf32, #tpu.memory_space<vmem>>, %arg14: memref<64x128xbf16, #tpu.memory_space<vmem>>, %arg15: memref<1x128xf32, #tpu.memory_space<vmem>>, %arg16: memref<128x64xbf16, #tpu.memory_space<vmem>>, %arg17: memref<1x64xf32, #tpu.memory_space<vmem>>, %arg18: memref<2x32x64xf32, #tpu.memory_space<vmem>>, %arg19: memref<64x64xbf16, #tpu.memory_space<vmem>>, %arg20: memref<2x36x8xbf16, #tpu.memory_space<vmem>>) attributes {dimension_semantics = [#tpu.dimension_semantics<parallel>], iteration_bounds = array<i64: 2>, scalar_prefetch = 0 : i64, scratch_operands = 2 : i64, tpu.core_type = #tpu.core_type<tc>, window_params = [{transform_indices = @transform_0, window_bounds = array<i64: 2, 32, 64>}, {pipeline_mode = #tpu.pipeline_mode<synchronous>, transform_indices = @transform_1, window_bounds = array<i64: 64, 64>}, {pipeline_mode = #tpu.pipeline_mode<synchronous>, transform_indices = @transform_2, window_bounds = array<i64: 1, 64>}, {pipeline_mode = #tpu.pipeline_mode<synchronous>, transform_indices = @transform_3, window_bounds = array<i64: 1, 64>}, {pipeline_mode = #tpu.pipeline_mode<synchronous>, transform_indices = @transform_4, window_bounds = array<i64: 1, 64>}, {pipeline_mode = #tpu.pipeline_mode<synchronous>, transform_indices = @transform_5, window_bounds = array<i64: 7, 24, 8>}, {pipeline_mode = #tpu.pipeline_mode<synchronous>, transform_indices = @transform_6, window_bounds = array<i64: 7, 1, 8>}, {pipeline_mode = #tpu.pipeline_mode<synchronous>, transform_indices = @transform_7, window_bounds = array<i64: 7, 1, 8>}, {pipeline_mode = #tpu.pipeline_mode<synchronous>, transform_indices = @transform_8, window_bounds = array<i64: 7, 1, 8>}, {pipeline_mode = #tpu.pipeline_mode<synchronous>, transform_indices = @transform_9, window_bounds = array<i64: 64, 64>}, {pipeline_mode = #tpu.pipeline_mode<synchronous>, transform_indices = @transform_10, window_bounds = array<i64: 1, 64>}, {pipeline_mode = #tpu.pipeline_mode<synchronous>, transform_indices = @transform_11, window_bounds = array<i64: 1, 64>}, {pipeline_mode = #tpu.pipeline_mode<synchronous>, transform_indices = @transform_12, window_bounds = array<i64: 1, 64>}, {pipeline_mode = #tpu.pipeline_mode<synchronous>, transform_indices = @transform_13, window_bounds = array<i64: 64, 128>}, {pipeline_mode = #tpu.pipeline_mode<synchronous>, transform_indices = @transform_14, window_bounds = array<i64: 1, 128>}, {pipeline_mode = #tpu.pipeline_mode<synchronous>, transform_indices = @transform_15, window_bounds = array<i64: 128, 64>}, {pipeline_mode = #tpu.pipeline_mode<synchronous>, transform_indices = @transform_16, window_bounds = array<i64: 1, 64>}, {transform_indices = @transform_17, window_bounds = array<i64: 2, 32, 64>}]} {
    %c0 = arith.constant 0 : index
    %c0_0 = arith.constant 0 : index
    %c0_1 = arith.constant 0 : index
    %0 = vector.load %arg1[%c0, %c0_0, %c0_1] : memref<2x32x64xf32, #tpu.memory_space<vmem>>, vector<2x32x64xf32>
    %1 = vector.shape_cast %0 : vector<2x32x64xf32> to vector<64x64xf32>
    %2 = arith.truncf %1 : vector<64x64xf32> to vector<64x64xbf16>
    %c0_2 = arith.constant 0 : index
    %c0_3 = arith.constant 0 : index
    %3 = vector.load %arg2[%c0_2, %c0_3] : memref<64x64xbf16, #tpu.memory_space<vmem>>, vector<64x64xbf16>
    %cst = arith.constant dense<0.000000e+00> : vector<64x64xf32>
    %4 = tpu.matmul %2, %3, %cst {dimension_numbers = #tpu.dot_dimension_numbers<[1], [0], [0], [1], [0, 0, 1, 1], [], []>} : vector<64x64xbf16>, vector<64x64xbf16>, vector<64x64xf32> -> vector<64x64xf32>
    %c0_4 = arith.constant 0 : index
    %c0_5 = arith.constant 0 : index
    %5 = vector.load %arg3[%c0_4, %c0_5] : memref<1x64xf32, #tpu.memory_space<vmem>>, vector<1x64xf32>
    %6 = vector.broadcast %5 : vector<1x64xf32> to vector<64x64xf32>
    %7 = arith.addf %4, %6 : vector<64x64xf32>
    %cst_6 = arith.constant 0.000000e+00 : f32
    %8 = vector.broadcast %cst_6 : f32 to vector<64x64xf32>
    %9 = arith.maximumf %7, %8 : vector<64x64xf32>
    %c0_7 = arith.constant 0 : index
    %c0_8 = arith.constant 0 : index
    %10 = vector.load %arg4[%c0_7, %c0_8] : memref<1x64xf32, #tpu.memory_space<vmem>>, vector<1x64xf32>
    %11 = vector.broadcast %10 : vector<1x64xf32> to vector<64x64xf32>
    %12 = arith.mulf %9, %11 : vector<64x64xf32>
    %c0_9 = arith.constant 0 : index
    %c0_10 = arith.constant 0 : index
    %13 = vector.load %arg5[%c0_9, %c0_10] : memref<1x64xf32, #tpu.memory_space<vmem>>, vector<1x64xf32>
    %14 = vector.broadcast %13 : vector<1x64xf32> to vector<64x64xf32>
    %15 = arith.addf %12, %14 : vector<64x64xf32>
    %16 = arith.truncf %15 : vector<64x64xf32> to vector<64x64xbf16>
    %c0_11 = arith.constant 0 : index
    %c0_12 = arith.constant 0 : index
    %17 = vector.load %arg19[%c0_11, %c0_12] : memref<64x64xbf16, #tpu.memory_space<vmem>>, vector<64x64xbf16>
    tpu.vector_store %arg19[%c0_11, %c0_12], %16 {strides = array<i32>} : memref<64x64xbf16, #tpu.memory_space<vmem>>, vector<64x64xbf16>,
    %cst_13 = arith.constant 0.000000e+00 : bf16
    %18 = vector.broadcast %cst_13 : bf16 to vector<2x2x8xbf16>
    %c0_14 = arith.constant 0 : index
    %c0_15 = arith.constant 0 : index
    %c0_16 = arith.constant 0 : index
    %19 = vector.load %arg20[%c0_14, %c0_15, %c0_16] : memref<2x36x8xbf16, #tpu.memory_space<vmem>>, vector<2x2x8xbf16>
    tpu.vector_store %arg20[%c0_14, %c0_15, %c0_16], %18 {strides = array<i32>} : memref<2x36x8xbf16, #tpu.memory_space<vmem>>, vector<2x2x8xbf16>,
    %cst_17 = arith.constant 0.000000e+00 : bf16
    %20 = vector.broadcast %cst_17 : bf16 to vector<2x2x8xbf16>
    %c0_18 = arith.constant 0 : index
    %c34 = arith.constant 34 : index
    %c0_19 = arith.constant 0 : index
    %21 = vector.load %arg20[%c0_18, %c34, %c0_19] : memref<2x36x8xbf16, #tpu.memory_space<vmem>>, vector<2x2x8xbf16>
    tpu.vector_store %arg20[%c0_18, %c34, %c0_19], %20 {strides = array<i32>} : memref<2x36x8xbf16, #tpu.memory_space<vmem>>, vector<2x2x8xbf16>,
    %c0_20 = arith.constant 0 : index
    %c0_21 = arith.constant 0 : index
    %22 = vector.load %arg19[%c0_20, %c0_21] : memref<64x64xbf16, #tpu.memory_space<vmem>>, vector<64x8xbf16>
    %23 = arith.extf %22 : vector<64x8xbf16> to vector<64x8xf32>
    %24 = vector.shape_cast %23 : vector<64x8xf32> to vector<2x32x8xf32>
    %25 = arith.truncf %24 : vector<2x32x8xf32> to vector<2x32x8xbf16>
    %c0_22 = arith.constant 0 : index
    %c2 = arith.constant 2 : index
    %c0_23 = arith.constant 0 : index
    %26 = vector.load %arg20[%c0_22, %c2, %c0_23] : memref<2x36x8xbf16, #tpu.memory_space<vmem>>, vector<2x32x8xbf16>
    tpu.vector_store %arg20[%c0_22, %c2, %c0_23], %25 {strides = array<i32>} : memref<2x36x8xbf16, #tpu.memory_space<vmem>>, vector<2x32x8xbf16>,
    %c0_24 = arith.constant 0 : index
    %c0_25 = arith.constant 0 : index
    %c0_26 = arith.constant 0 : index
    %27 = vector.load %arg6[%c0_24, %c0_25, %c0_26] : memref<7x24x8xbf16, #tpu.memory_space<vmem>>, vector<1x24x8xbf16>
    %28 = vector.shape_cast %27 : vector<1x24x8xbf16> to vector<24x8xbf16>
    %cst_27 = arith.constant 0.000000e+00 : f32
    %29 = vector.broadcast %cst_27 : f32 to vector<64x8xf32>
    %c0_28 = arith.constant 0 : index
    %c0_29 = arith.constant 0 : index
    %c0_30 = arith.constant 0 : index
    %30 = vector.load %arg7[%c0_28, %c0_29, %c0_30] : memref<7x1x8xf32, #tpu.memory_space<vmem>>, vector<1x1x8xf32>
    %31 = vector.shape_cast %30 : vector<1x1x8xf32> to vector<1x8xf32>
    %32 = vector.broadcast %31 : vector<1x8xf32> to vector<64x8xf32>
    %33 = arith.addf %29, %32 : vector<64x8xf32>
    %c0_31 = arith.constant 0 : index
    %c0_32 = arith.constant 0 : index
    %c0_33 = arith.constant 0 : index
    %34 = vector.load %arg20[%c0_31, %c0_32, %c0_33] : memref<2x36x8xbf16, #tpu.memory_space<vmem>>, vector<2x32x8xbf16>
    %35 = vector.shape_cast %34 : vector<2x32x8xbf16> to vector<64x8xbf16>
    %36 = vector.extract_strided_slice %28 {offsets = [0, 0], sizes = [8, 8], strides = [1, 1]} : vector<24x8xbf16> to vector<8x8xbf16>
    %cst_34 = arith.constant dense<0.000000e+00> : vector<64x8xf32>
    %37 = tpu.matmul %35, %36, %cst_34 {dimension_numbers = #tpu.dot_dimension_numbers<[1], [0], [0], [1], [0, 0, 1, 1], [], []>} : vector<64x8xbf16>, vector<8x8xbf16>, vector<64x8xf32> -> vector<64x8xf32>
    %38 = arith.addf %33, %37 : vector<64x8xf32>
    %c0_35 = arith.constant 0 : index
    %c2_36 = arith.constant 2 : index
    %c0_37 = arith.constant 0 : index
    %39 = vector.load %arg20[%c0_35, %c2_36, %c0_37] : memref<2x36x8xbf16, #tpu.memory_space<vmem>>, vector<2x32x8xbf16>
    %40 = vector.shape_cast %39 : vector<2x32x8xbf16> to vector<64x8xbf16>
    %41 = vector.extract_strided_slice %28 {offsets = [8, 0], sizes = [8, 8], strides = [1, 1]} : vector<24x8xbf16> to vector<8x8xbf16>
    %cst_38 = arith.constant dense<0.000000e+00> : vector<64x8xf32>
    %42 = tpu.matmul %40, %41, %cst_38 {dimension_numbers = #tpu.dot_dimension_numbers<[1], [0], [0], [1], [0, 0, 1, 1], [], []>} : vector<64x8xbf16>, vector<8x8xbf16>, vector<64x8xf32> -> vector<64x8xf32>
    %43 = arith.addf %38, %42 : vector<64x8xf32>
    %c0_39 = arith.constant 0 : index
    %c4 = arith.constant 4 : index
    %c0_40 = arith.constant 0 : index
    %44 = vector.load %arg20[%c0_39, %c4, %c0_40] : memref<2x36x8xbf16, #tpu.memory_space<vmem>>, vector<2x32x8xbf16>
    %45 = vector.shape_cast %44 : vector<2x32x8xbf16> to vector<64x8xbf16>
    %46 = vector.extract_strided_slice %28 {offsets = [16, 0], sizes = [8, 8], strides = [1, 1]} : vector<24x8xbf16> to vector<8x8xbf16>
    %cst_41 = arith.constant dense<0.000000e+00> : vector<64x8xf32>
    %47 = tpu.matmul %45, %46, %cst_41 {dimension_numbers = #tpu.dot_dimension_numbers<[1], [0], [0], [1], [0, 0, 1, 1], [], []>} : vector<64x8xbf16>, vector<8x8xbf16>, vector<64x8xf32> -> vector<64x8xf32>
    %48 = arith.addf %43, %47 : vector<64x8xf32>
    %cst_42 = arith.constant 0.000000e+00 : f32
    %49 = vector.broadcast %cst_42 : f32 to vector<64x8xf32>
    %50 = arith.maximumf %48, %49 : vector<64x8xf32>
    %c0_43 = arith.constant 0 : index
    %c0_44 = arith.constant 0 : index
    %c0_45 = arith.constant 0 : index
    %51 = vector.load %arg8[%c0_43, %c0_44, %c0_45] : memref<7x1x8xf32, #tpu.memory_space<vmem>>, vector<1x1x8xf32>
    %52 = vector.shape_cast %51 : vector<1x1x8xf32> to vector<1x8xf32>
    %53 = vector.broadcast %52 : vector<1x8xf32> to vector<64x8xf32>
    %54 = arith.mulf %50, %53 : vector<64x8xf32>
    %c0_46 = arith.constant 0 : index
    %c0_47 = arith.constant 0 : index
    %c0_48 = arith.constant 0 : index
    %55 = vector.load %arg9[%c0_46, %c0_47, %c0_48] : memref<7x1x8xf32, #tpu.memory_space<vmem>>, vector<1x1x8xf32>
    %56 = vector.shape_cast %55 : vector<1x1x8xf32> to vector<1x8xf32>
    %57 = vector.broadcast %56 : vector<1x8xf32> to vector<64x8xf32>
    %58 = arith.addf %54, %57 : vector<64x8xf32>
    %59 = arith.truncf %58 : vector<64x8xf32> to vector<64x8xbf16>
    %c0_49 = arith.constant 0 : index
    %c0_50 = arith.constant 0 : index
    %60 = vector.load %arg19[%c0_49, %c0_50] : memref<64x64xbf16, #tpu.memory_space<vmem>>, vector<64x8xbf16>
    tpu.vector_store %arg19[%c0_49, %c0_50], %59 {strides = array<i32>} : memref<64x64xbf16, #tpu.memory_space<vmem>>, vector<64x8xbf16>,
    %c0_51 = arith.constant 0 : index
    %c8 = arith.constant 8 : index
    %61 = vector.load %arg19[%c0_51, %c8] : memref<64x64xbf16, #tpu.memory_space<vmem>>, vector<64x8xbf16>
    %62 = arith.extf %61 : vector<64x8xbf16> to vector<64x8xf32>
    %63 = arith.addf %23, %62 : vector<64x8xf32>
    %64 = vector.shape_cast %63 : vector<64x8xf32> to vector<2x32x8xf32>
    %65 = arith.truncf %64 : vector<2x32x8xf32> to vector<2x32x8xbf16>
    %c0_52 = arith.constant 0 : index
    %c2_53 = arith.constant 2 : index
    %c0_54 = arith.constant 0 : index
    %66 = vector.load %arg20[%c0_52, %c2_53, %c0_54] : memref<2x36x8xbf16, #tpu.memory_space<vmem>>, vector<2x32x8xbf16>
    tpu.vector_store %arg20[%c0_52, %c2_53, %c0_54], %65 {strides = array<i32>} : memref<2x36x8xbf16, #tpu.memory_space<vmem>>, vector<2x32x8xbf16>,
    %c1 = arith.constant 1 : index
    %c0_55 = arith.constant 0 : index
    %c0_56 = arith.constant 0 : index
    %67 = vector.load %arg6[%c1, %c0_55, %c0_56] : memref<7x24x8xbf16, #tpu.memory_space<vmem>>, vector<1x24x8xbf16>
    %68 = vector.shape_cast %67 : vector<1x24x8xbf16> to vector<24x8xbf16>
    %cst_57 = arith.constant 0.000000e+00 : f32
    %69 = vector.broadcast %cst_57 : f32 to vector<64x8xf32>
    %c1_58 = arith.constant 1 : index
    %c0_59 = arith.constant 0 : index
    %c0_60 = arith.constant 0 : index
    %70 = vector.load %arg7[%c1_58, %c0_59, %c0_60] : memref<7x1x8xf32, #tpu.memory_space<vmem>>, vector<1x1x8xf32>
    %71 = vector.shape_cast %70 : vector<1x1x8xf32> to vector<1x8xf32>
    %72 = vector.broadcast %71 : vector<1x8xf32> to vector<64x8xf32>
    %73 = arith.addf %69, %72 : vector<64x8xf32>
    %c0_61 = arith.constant 0 : index
    %c0_62 = arith.constant 0 : index
    %c0_63 = arith.constant 0 : index
    %74 = vector.load %arg20[%c0_61, %c0_62, %c0_63] : memref<2x36x8xbf16, #tpu.memory_space<vmem>>, vector<2x32x8xbf16>
    %75 = vector.shape_cast %74 : vector<2x32x8xbf16> to vector<64x8xbf16>
    %76 = vector.extract_strided_slice %68 {offsets = [0, 0], sizes = [8, 8], strides = [1, 1]} : vector<24x8xbf16> to vector<8x8xbf16>
    %cst_64 = arith.constant dense<0.000000e+00> : vector<64x8xf32>
    %77 = tpu.matmul %75, %76, %cst_64 {dimension_numbers = #tpu.dot_dimension_numbers<[1], [0], [0], [1], [0, 0, 1, 1], [], []>} : vector<64x8xbf16>, vector<8x8xbf16>, vector<64x8xf32> -> vector<64x8xf32>
    %78 = arith.addf %73, %77 : vector<64x8xf32>
    %c0_65 = arith.constant 0 : index
    %c2_66 = arith.constant 2 : index
    %c0_67 = arith.constant 0 : index
    %79 = vector.load %arg20[%c0_65, %c2_66, %c0_67] : memref<2x36x8xbf16, #tpu.memory_space<vmem>>, vector<2x32x8xbf16>
    %80 = vector.shape_cast %79 : vector<2x32x8xbf16> to vector<64x8xbf16>
    %81 = vector.extract_strided_slice %68 {offsets = [8, 0], sizes = [8, 8], strides = [1, 1]} : vector<24x8xbf16> to vector<8x8xbf16>
    %cst_68 = arith.constant dense<0.000000e+00> : vector<64x8xf32>
    %82 = tpu.matmul %80, %81, %cst_68 {dimension_numbers = #tpu.dot_dimension_numbers<[1], [0], [0], [1], [0, 0, 1, 1], [], []>} : vector<64x8xbf16>, vector<8x8xbf16>, vector<64x8xf32> -> vector<64x8xf32>
    %83 = arith.addf %78, %82 : vector<64x8xf32>
    %c0_69 = arith.constant 0 : index
    %c4_70 = arith.constant 4 : index
    %c0_71 = arith.constant 0 : index
    %84 = vector.load %arg20[%c0_69, %c4_70, %c0_71] : memref<2x36x8xbf16, #tpu.memory_space<vmem>>, vector<2x32x8xbf16>
    %85 = vector.shape_cast %84 : vector<2x32x8xbf16> to vector<64x8xbf16>
    %86 = vector.extract_strided_slice %68 {offsets = [16, 0], sizes = [8, 8], strides = [1, 1]} : vector<24x8xbf16> to vector<8x8xbf16>
    %cst_72 = arith.constant dense<0.000000e+00> : vector<64x8xf32>
    %87 = tpu.matmul %85, %86, %cst_72 {dimension_numbers = #tpu.dot_dimension_numbers<[1], [0], [0], [1], [0, 0, 1, 1], [], []>} : vector<64x8xbf16>, vector<8x8xbf16>, vector<64x8xf32> -> vector<64x8xf32>
    %88 = arith.addf %83, %87 : vector<64x8xf32>
    %cst_73 = arith.constant 0.000000e+00 : f32
    %89 = vector.broadcast %cst_73 : f32 to vector<64x8xf32>
    %90 = arith.maximumf %88, %89 : vector<64x8xf32>
    %c1_74 = arith.constant 1 : index
    %c0_75 = arith.constant 0 : index
    %c0_76 = arith.constant 0 : index
    %91 = vector.load %arg8[%c1_74, %c0_75, %c0_76] : memref<7x1x8xf32, #tpu.memory_space<vmem>>, vector<1x1x8xf32>
    %92 = vector.shape_cast %91 : vector<1x1x8xf32> to vector<1x8xf32>
    %93 = vector.broadcast %92 : vector<1x8xf32> to vector<64x8xf32>
    %94 = arith.mulf %90, %93 : vector<64x8xf32>
    %c1_77 = arith.constant 1 : index
    %c0_78 = arith.constant 0 : index
    %c0_79 = arith.constant 0 : index
    %95 = vector.load %arg9[%c1_77, %c0_78, %c0_79] : memref<7x1x8xf32, #tpu.memory_space<vmem>>, vector<1x1x8xf32>
    %96 = vector.shape_cast %95 : vector<1x1x8xf32> to vector<1x8xf32>
    %97 = vector.broadcast %96 : vector<1x8xf32> to vector<64x8xf32>
    %98 = arith.addf %94, %97 : vector<64x8xf32>
    %99 = arith.truncf %98 : vector<64x8xf32> to vector<64x8xbf16>
    %c0_80 = arith.constant 0 : index
    %c8_81 = arith.constant 8 : index
    %100 = vector.load %arg19[%c0_80, %c8_81] : memref<64x64xbf16, #tpu.memory_space<vmem>>, vector<64x8xbf16>
    tpu.vector_store %arg19[%c0_80, %c8_81], %99 {strides = array<i32>} : memref<64x64xbf16, #tpu.memory_space<vmem>>, vector<64x8xbf16>,
    %c0_82 = arith.constant 0 : index
    %c16 = arith.constant 16 : index
    %101 = vector.load %arg19[%c0_82, %c16] : memref<64x64xbf16, #tpu.memory_space<vmem>>, vector<64x8xbf16>
    %102 = arith.extf %101 : vector<64x8xbf16> to vector<64x8xf32>
    %103 = arith.addf %63, %102 : vector<64x8xf32>
    %104 = vector.shape_cast %103 : vector<64x8xf32> to vector<2x32x8xf32>
    %105 = arith.truncf %104 : vector<2x32x8xf32> to vector<2x32x8xbf16>
    %c0_83 = arith.constant 0 : index
    %c2_84 = arith.constant 2 : index
    %c0_85 = arith.constant 0 : index
    %106 = vector.load %arg20[%c0_83, %c2_84, %c0_85] : memref<2x36x8xbf16, #tpu.memory_space<vmem>>, vector<2x32x8xbf16>
    tpu.vector_store %arg20[%c0_83, %c2_84, %c0_85], %105 {strides = array<i32>} : memref<2x36x8xbf16, #tpu.memory_space<vmem>>, vector<2x32x8xbf16>,
    %c2_86 = arith.constant 2 : index
    %c0_87 = arith.constant 0 : index
    %c0_88 = arith.constant 0 : index
    %107 = vector.load %arg6[%c2_86, %c0_87, %c0_88] : memref<7x24x8xbf16, #tpu.memory_space<vmem>>, vector<1x24x8xbf16>
    %108 = vector.shape_cast %107 : vector<1x24x8xbf16> to vector<24x8xbf16>
    %cst_89 = arith.constant 0.000000e+00 : f32
    %109 = vector.broadcast %cst_89 : f32 to vector<64x8xf32>
    %c2_90 = arith.constant 2 : index
    %c0_91 = arith.constant 0 : index
    %c0_92 = arith.constant 0 : index
    %110 = vector.load %arg7[%c2_90, %c0_91, %c0_92] : memref<7x1x8xf32, #tpu.memory_space<vmem>>, vector<1x1x8xf32>
    %111 = vector.shape_cast %110 : vector<1x1x8xf32> to vector<1x8xf32>
    %112 = vector.broadcast %111 : vector<1x8xf32> to vector<64x8xf32>
    %113 = arith.addf %109, %112 : vector<64x8xf32>
    %c0_93 = arith.constant 0 : index
    %c0_94 = arith.constant 0 : index
    %c0_95 = arith.constant 0 : index
    %114 = vector.load %arg20[%c0_93, %c0_94, %c0_95] : memref<2x36x8xbf16, #tpu.memory_space<vmem>>, vector<2x32x8xbf16>
    %115 = vector.shape_cast %114 : vector<2x32x8xbf16> to vector<64x8xbf16>
    %116 = vector.extract_strided_slice %108 {offsets = [0, 0], sizes = [8, 8], strides = [1, 1]} : vector<24x8xbf16> to vector<8x8xbf16>
    %cst_96 = arith.constant dense<0.000000e+00> : vector<64x8xf32>
    %117 = tpu.matmul %115, %116, %cst_96 {dimension_numbers = #tpu.dot_dimension_numbers<[1], [0], [0], [1], [0, 0, 1, 1], [], []>} : vector<64x8xbf16>, vector<8x8xbf16>, vector<64x8xf32> -> vector<64x8xf32>
    %118 = arith.addf %113, %117 : vector<64x8xf32>
    %c0_97 = arith.constant 0 : index
    %c2_98 = arith.constant 2 : index
    %c0_99 = arith.constant 0 : index
    %119 = vector.load %arg20[%c0_97, %c2_98, %c0_99] : memref<2x36x8xbf16, #tpu.memory_space<vmem>>, vector<2x32x8xbf16>
    %120 = vector.shape_cast %119 : vector<2x32x8xbf16> to vector<64x8xbf16>
    %121 = vector.extract_strided_slice %108 {offsets = [8, 0], sizes = [8, 8], strides = [1, 1]} : vector<24x8xbf16> to vector<8x8xbf16>
    %cst_100 = arith.constant dense<0.000000e+00> : vector<64x8xf32>
    %122 = tpu.matmul %120, %121, %cst_100 {dimension_numbers = #tpu.dot_dimension_numbers<[1], [0], [0], [1], [0, 0, 1, 1], [], []>} : vector<64x8xbf16>, vector<8x8xbf16>, vector<64x8xf32> -> vector<64x8xf32>
    %123 = arith.addf %118, %122 : vector<64x8xf32>
    %c0_101 = arith.constant 0 : index
    %c4_102 = arith.constant 4 : index
    %c0_103 = arith.constant 0 : index
    %124 = vector.load %arg20[%c0_101, %c4_102, %c0_103] : memref<2x36x8xbf16, #tpu.memory_space<vmem>>, vector<2x32x8xbf16>
    %125 = vector.shape_cast %124 : vector<2x32x8xbf16> to vector<64x8xbf16>
    %126 = vector.extract_strided_slice %108 {offsets = [16, 0], sizes = [8, 8], strides = [1, 1]} : vector<24x8xbf16> to vector<8x8xbf16>
    %cst_104 = arith.constant dense<0.000000e+00> : vector<64x8xf32>
    %127 = tpu.matmul %125, %126, %cst_104 {dimension_numbers = #tpu.dot_dimension_numbers<[1], [0], [0], [1], [0, 0, 1, 1], [], []>} : vector<64x8xbf16>, vector<8x8xbf16>, vector<64x8xf32> -> vector<64x8xf32>
    %128 = arith.addf %123, %127 : vector<64x8xf32>
    %cst_105 = arith.constant 0.000000e+00 : f32
    %129 = vector.broadcast %cst_105 : f32 to vector<64x8xf32>
    %130 = arith.maximumf %128, %129 : vector<64x8xf32>
    %c2_106 = arith.constant 2 : index
    %c0_107 = arith.constant 0 : index
    %c0_108 = arith.constant 0 : index
    %131 = vector.load %arg8[%c2_106, %c0_107, %c0_108] : memref<7x1x8xf32, #tpu.memory_space<vmem>>, vector<1x1x8xf32>
    %132 = vector.shape_cast %131 : vector<1x1x8xf32> to vector<1x8xf32>
    %133 = vector.broadcast %132 : vector<1x8xf32> to vector<64x8xf32>
    %134 = arith.mulf %130, %133 : vector<64x8xf32>
    %c2_109 = arith.constant 2 : index
    %c0_110 = arith.constant 0 : index
    %c0_111 = arith.constant 0 : index
    %135 = vector.load %arg9[%c2_109, %c0_110, %c0_111] : memref<7x1x8xf32, #tpu.memory_space<vmem>>, vector<1x1x8xf32>
    %136 = vector.shape_cast %135 : vector<1x1x8xf32> to vector<1x8xf32>
    %137 = vector.broadcast %136 : vector<1x8xf32> to vector<64x8xf32>
    %138 = arith.addf %134, %137 : vector<64x8xf32>
    %139 = arith.truncf %138 : vector<64x8xf32> to vector<64x8xbf16>
    %c0_112 = arith.constant 0 : index
    %c16_113 = arith.constant 16 : index
    %140 = vector.load %arg19[%c0_112, %c16_113] : memref<64x64xbf16, #tpu.memory_space<vmem>>, vector<64x8xbf16>
    tpu.vector_store %arg19[%c0_112, %c16_113], %139 {strides = array<i32>} : memref<64x64xbf16, #tpu.memory_space<vmem>>, vector<64x8xbf16>,
    %c0_114 = arith.constant 0 : index
    %c24 = arith.constant 24 : index
    %141 = vector.load %arg19[%c0_114, %c24] : memref<64x64xbf16, #tpu.memory_space<vmem>>, vector<64x8xbf16>
    %142 = arith.extf %141 : vector<64x8xbf16> to vector<64x8xf32>
    %143 = arith.addf %103, %142 : vector<64x8xf32>
    %144 = vector.shape_cast %143 : vector<64x8xf32> to vector<2x32x8xf32>
    %145 = arith.truncf %144 : vector<2x32x8xf32> to vector<2x32x8xbf16>
    %c0_115 = arith.constant 0 : index
    %c2_116 = arith.constant 2 : index
    %c0_117 = arith.constant 0 : index
    %146 = vector.load %arg20[%c0_115, %c2_116, %c0_117] : memref<2x36x8xbf16, #tpu.memory_space<vmem>>, vector<2x32x8xbf16>
    tpu.vector_store %arg20[%c0_115, %c2_116, %c0_117], %145 {strides = array<i32>} : memref<2x36x8xbf16, #tpu.memory_space<vmem>>, vector<2x32x8xbf16>,
    %c3 = arith.constant 3 : index
    %c0_118 = arith.constant 0 : index
    %c0_119 = arith.constant 0 : index
    %147 = vector.load %arg6[%c3, %c0_118, %c0_119] : memref<7x24x8xbf16, #tpu.memory_space<vmem>>, vector<1x24x8xbf16>
    %148 = vector.shape_cast %147 : vector<1x24x8xbf16> to vector<24x8xbf16>
    %cst_120 = arith.constant 0.000000e+00 : f32
    %149 = vector.broadcast %cst_120 : f32 to vector<64x8xf32>
    %c3_121 = arith.constant 3 : index
    %c0_122 = arith.constant 0 : index
    %c0_123 = arith.constant 0 : index
    %150 = vector.load %arg7[%c3_121, %c0_122, %c0_123] : memref<7x1x8xf32, #tpu.memory_space<vmem>>, vector<1x1x8xf32>
    %151 = vector.shape_cast %150 : vector<1x1x8xf32> to vector<1x8xf32>
    %152 = vector.broadcast %151 : vector<1x8xf32> to vector<64x8xf32>
    %153 = arith.addf %149, %152 : vector<64x8xf32>
    %c0_124 = arith.constant 0 : index
    %c0_125 = arith.constant 0 : index
    %c0_126 = arith.constant 0 : index
    %154 = vector.load %arg20[%c0_124, %c0_125, %c0_126] : memref<2x36x8xbf16, #tpu.memory_space<vmem>>, vector<2x32x8xbf16>
    %155 = vector.shape_cast %154 : vector<2x32x8xbf16> to vector<64x8xbf16>
    %156 = vector.extract_strided_slice %148 {offsets = [0, 0], sizes = [8, 8], strides = [1, 1]} : vector<24x8xbf16> to vector<8x8xbf16>
    %cst_127 = arith.constant dense<0.000000e+00> : vector<64x8xf32>
    %157 = tpu.matmul %155, %156, %cst_127 {dimension_numbers = #tpu.dot_dimension_numbers<[1], [0], [0], [1], [0, 0, 1, 1], [], []>} : vector<64x8xbf16>, vector<8x8xbf16>, vector<64x8xf32> -> vector<64x8xf32>
    %158 = arith.addf %153, %157 : vector<64x8xf32>
    %c0_128 = arith.constant 0 : index
    %c2_129 = arith.constant 2 : index
    %c0_130 = arith.constant 0 : index
    %159 = vector.load %arg20[%c0_128, %c2_129, %c0_130] : memref<2x36x8xbf16, #tpu.memory_space<vmem>>, vector<2x32x8xbf16>
    %160 = vector.shape_cast %159 : vector<2x32x8xbf16> to vector<64x8xbf16>
    %161 = vector.extract_strided_slice %148 {offsets = [8, 0], sizes = [8, 8], strides = [1, 1]} : vector<24x8xbf16> to vector<8x8xbf16>
    %cst_131 = arith.constant dense<0.000000e+00> : vector<64x8xf32>
    %162 = tpu.matmul %160, %161, %cst_131 {dimension_numbers = #tpu.dot_dimension_numbers<[1], [0], [0], [1], [0, 0, 1, 1], [], []>} : vector<64x8xbf16>, vector<8x8xbf16>, vector<64x8xf32> -> vector<64x8xf32>
    %163 = arith.addf %158, %162 : vector<64x8xf32>
    %c0_132 = arith.constant 0 : index
    %c4_133 = arith.constant 4 : index
    %c0_134 = arith.constant 0 : index
    %164 = vector.load %arg20[%c0_132, %c4_133, %c0_134] : memref<2x36x8xbf16, #tpu.memory_space<vmem>>, vector<2x32x8xbf16>
    %165 = vector.shape_cast %164 : vector<2x32x8xbf16> to vector<64x8xbf16>
    %166 = vector.extract_strided_slice %148 {offsets = [16, 0], sizes = [8, 8], strides = [1, 1]} : vector<24x8xbf16> to vector<8x8xbf16>
    %cst_135 = arith.constant dense<0.000000e+00> : vector<64x8xf32>
    %167 = tpu.matmul %165, %166, %cst_135 {dimension_numbers = #tpu.dot_dimension_numbers<[1], [0], [0], [1], [0, 0, 1, 1], [], []>} : vector<64x8xbf16>, vector<8x8xbf16>, vector<64x8xf32> -> vector<64x8xf32>
    %168 = arith.addf %163, %167 : vector<64x8xf32>
    %cst_136 = arith.constant 0.000000e+00 : f32
    %169 = vector.broadcast %cst_136 : f32 to vector<64x8xf32>
    %170 = arith.maximumf %168, %169 : vector<64x8xf32>
    %c3_137 = arith.constant 3 : index
    %c0_138 = arith.constant 0 : index
    %c0_139 = arith.constant 0 : index
    %171 = vector.load %arg8[%c3_137, %c0_138, %c0_139] : memref<7x1x8xf32, #tpu.memory_space<vmem>>, vector<1x1x8xf32>
    %172 = vector.shape_cast %171 : vector<1x1x8xf32> to vector<1x8xf32>
    %173 = vector.broadcast %172 : vector<1x8xf32> to vector<64x8xf32>
    %174 = arith.mulf %170, %173 : vector<64x8xf32>
    %c3_140 = arith.constant 3 : index
    %c0_141 = arith.constant 0 : index
    %c0_142 = arith.constant 0 : index
    %175 = vector.load %arg9[%c3_140, %c0_141, %c0_142] : memref<7x1x8xf32, #tpu.memory_space<vmem>>, vector<1x1x8xf32>
    %176 = vector.shape_cast %175 : vector<1x1x8xf32> to vector<1x8xf32>
    %177 = vector.broadcast %176 : vector<1x8xf32> to vector<64x8xf32>
    %178 = arith.addf %174, %177 : vector<64x8xf32>
    %179 = arith.truncf %178 : vector<64x8xf32> to vector<64x8xbf16>
    %c0_143 = arith.constant 0 : index
    %c24_144 = arith.constant 24 : index
    %180 = vector.load %arg19[%c0_143, %c24_144] : memref<64x64xbf16, #tpu.memory_space<vmem>>, vector<64x8xbf16>
    tpu.vector_store %arg19[%c0_143, %c24_144], %179 {strides = array<i32>} : memref<64x64xbf16, #tpu.memory_space<vmem>>, vector<64x8xbf16>,
    %c0_145 = arith.constant 0 : index
    %c32 = arith.constant 32 : index
    %181 = vector.load %arg19[%c0_145, %c32] : memref<64x64xbf16, #tpu.memory_space<vmem>>, vector<64x8xbf16>
    %182 = arith.extf %181 : vector<64x8xbf16> to vector<64x8xf32>
    %183 = arith.addf %143, %182 : vector<64x8xf32>
    %184 = vector.shape_cast %183 : vector<64x8xf32> to vector<2x32x8xf32>
    %185 = arith.truncf %184 : vector<2x32x8xf32> to vector<2x32x8xbf16>
    %c0_146 = arith.constant 0 : index
    %c2_147 = arith.constant 2 : index
    %c0_148 = arith.constant 0 : index
    %186 = vector.load %arg20[%c0_146, %c2_147, %c0_148] : memref<2x36x8xbf16, #tpu.memory_space<vmem>>, vector<2x32x8xbf16>
    tpu.vector_store %arg20[%c0_146, %c2_147, %c0_148], %185 {strides = array<i32>} : memref<2x36x8xbf16, #tpu.memory_space<vmem>>, vector<2x32x8xbf16>,
    %c4_149 = arith.constant 4 : index
    %c0_150 = arith.constant 0 : index
    %c0_151 = arith.constant 0 : index
    %187 = vector.load %arg6[%c4_149, %c0_150, %c0_151] : memref<7x24x8xbf16, #tpu.memory_space<vmem>>, vector<1x24x8xbf16>
    %188 = vector.shape_cast %187 : vector<1x24x8xbf16> to vector<24x8xbf16>
    %cst_152 = arith.constant 0.000000e+00 : f32
    %189 = vector.broadcast %cst_152 : f32 to vector<64x8xf32>
    %c4_153 = arith.constant 4 : index
    %c0_154 = arith.constant 0 : index
    %c0_155 = arith.constant 0 : index
    %190 = vector.load %arg7[%c4_153, %c0_154, %c0_155] : memref<7x1x8xf32, #tpu.memory_space<vmem>>, vector<1x1x8xf32>
    %191 = vector.shape_cast %190 : vector<1x1x8xf32> to vector<1x8xf32>
    %192 = vector.broadcast %191 : vector<1x8xf32> to vector<64x8xf32>
    %193 = arith.addf %189, %192 : vector<64x8xf32>
    %c0_156 = arith.constant 0 : index
    %c0_157 = arith.constant 0 : index
    %c0_158 = arith.constant 0 : index
    %194 = vector.load %arg20[%c0_156, %c0_157, %c0_158] : memref<2x36x8xbf16, #tpu.memory_space<vmem>>, vector<2x32x8xbf16>
    %195 = vector.shape_cast %194 : vector<2x32x8xbf16> to vector<64x8xbf16>
    %196 = vector.extract_strided_slice %188 {offsets = [0, 0], sizes = [8, 8], strides = [1, 1]} : vector<24x8xbf16> to vector<8x8xbf16>
    %cst_159 = arith.constant dense<0.000000e+00> : vector<64x8xf32>
    %197 = tpu.matmul %195, %196, %cst_159 {dimension_numbers = #tpu.dot_dimension_numbers<[1], [0], [0], [1], [0, 0, 1, 1], [], []>} : vector<64x8xbf16>, vector<8x8xbf16>, vector<64x8xf32> -> vector<64x8xf32>
    %198 = arith.addf %193, %197 : vector<64x8xf32>
    %c0_160 = arith.constant 0 : index
    %c2_161 = arith.constant 2 : index
    %c0_162 = arith.constant 0 : index
    %199 = vector.load %arg20[%c0_160, %c2_161, %c0_162] : memref<2x36x8xbf16, #tpu.memory_space<vmem>>, vector<2x32x8xbf16>
    %200 = vector.shape_cast %199 : vector<2x32x8xbf16> to vector<64x8xbf16>
    %201 = vector.extract_strided_slice %188 {offsets = [8, 0], sizes = [8, 8], strides = [1, 1]} : vector<24x8xbf16> to vector<8x8xbf16>
    %cst_163 = arith.constant dense<0.000000e+00> : vector<64x8xf32>
    %202 = tpu.matmul %200, %201, %cst_163 {dimension_numbers = #tpu.dot_dimension_numbers<[1], [0], [0], [1], [0, 0, 1, 1], [], []>} : vector<64x8xbf16>, vector<8x8xbf16>, vector<64x8xf32> -> vector<64x8xf32>
    %203 = arith.addf %198, %202 : vector<64x8xf32>
    %c0_164 = arith.constant 0 : index
    %c4_165 = arith.constant 4 : index
    %c0_166 = arith.constant 0 : index
    %204 = vector.load %arg20[%c0_164, %c4_165, %c0_166] : memref<2x36x8xbf16, #tpu.memory_space<vmem>>, vector<2x32x8xbf16>
    %205 = vector.shape_cast %204 : vector<2x32x8xbf16> to vector<64x8xbf16>
    %206 = vector.extract_strided_slice %188 {offsets = [16, 0], sizes = [8, 8], strides = [1, 1]} : vector<24x8xbf16> to vector<8x8xbf16>
    %cst_167 = arith.constant dense<0.000000e+00> : vector<64x8xf32>
    %207 = tpu.matmul %205, %206, %cst_167 {dimension_numbers = #tpu.dot_dimension_numbers<[1], [0], [0], [1], [0, 0, 1, 1], [], []>} : vector<64x8xbf16>, vector<8x8xbf16>, vector<64x8xf32> -> vector<64x8xf32>
    %208 = arith.addf %203, %207 : vector<64x8xf32>
    %cst_168 = arith.constant 0.000000e+00 : f32
    %209 = vector.broadcast %cst_168 : f32 to vector<64x8xf32>
    %210 = arith.maximumf %208, %209 : vector<64x8xf32>
    %c4_169 = arith.constant 4 : index
    %c0_170 = arith.constant 0 : index
    %c0_171 = arith.constant 0 : index
    %211 = vector.load %arg8[%c4_169, %c0_170, %c0_171] : memref<7x1x8xf32, #tpu.memory_space<vmem>>, vector<1x1x8xf32>
    %212 = vector.shape_cast %211 : vector<1x1x8xf32> to vector<1x8xf32>
    %213 = vector.broadcast %212 : vector<1x8xf32> to vector<64x8xf32>
    %214 = arith.mulf %210, %213 : vector<64x8xf32>
    %c4_172 = arith.constant 4 : index
    %c0_173 = arith.constant 0 : index
    %c0_174 = arith.constant 0 : index
    %215 = vector.load %arg9[%c4_172, %c0_173, %c0_174] : memref<7x1x8xf32, #tpu.memory_space<vmem>>, vector<1x1x8xf32>
    %216 = vector.shape_cast %215 : vector<1x1x8xf32> to vector<1x8xf32>
    %217 = vector.broadcast %216 : vector<1x8xf32> to vector<64x8xf32>
    %218 = arith.addf %214, %217 : vector<64x8xf32>
    %219 = arith.truncf %218 : vector<64x8xf32> to vector<64x8xbf16>
    %c0_175 = arith.constant 0 : index
    %c32_176 = arith.constant 32 : index
    %220 = vector.load %arg19[%c0_175, %c32_176] : memref<64x64xbf16, #tpu.memory_space<vmem>>, vector<64x8xbf16>
    tpu.vector_store %arg19[%c0_175, %c32_176], %219 {strides = array<i32>} : memref<64x64xbf16, #tpu.memory_space<vmem>>, vector<64x8xbf16>,
    %c0_177 = arith.constant 0 : index
    %c40 = arith.constant 40 : index
    %221 = vector.load %arg19[%c0_177, %c40] : memref<64x64xbf16, #tpu.memory_space<vmem>>, vector<64x8xbf16>
    %222 = arith.extf %221 : vector<64x8xbf16> to vector<64x8xf32>
    %223 = arith.addf %183, %222 : vector<64x8xf32>
    %224 = vector.shape_cast %223 : vector<64x8xf32> to vector<2x32x8xf32>
    %225 = arith.truncf %224 : vector<2x32x8xf32> to vector<2x32x8xbf16>
    %c0_178 = arith.constant 0 : index
    %c2_179 = arith.constant 2 : index
    %c0_180 = arith.constant 0 : index
    %226 = vector.load %arg20[%c0_178, %c2_179, %c0_180] : memref<2x36x8xbf16, #tpu.memory_space<vmem>>, vector<2x32x8xbf16>
    tpu.vector_store %arg20[%c0_178, %c2_179, %c0_180], %225 {strides = array<i32>} : memref<2x36x8xbf16, #tpu.memory_space<vmem>>, vector<2x32x8xbf16>,
    %c5 = arith.constant 5 : index
    %c0_181 = arith.constant 0 : index
    %c0_182 = arith.constant 0 : index
    %227 = vector.load %arg6[%c5, %c0_181, %c0_182] : memref<7x24x8xbf16, #tpu.memory_space<vmem>>, vector<1x24x8xbf16>
    %228 = vector.shape_cast %227 : vector<1x24x8xbf16> to vector<24x8xbf16>
    %cst_183 = arith.constant 0.000000e+00 : f32
    %229 = vector.broadcast %cst_183 : f32 to vector<64x8xf32>
    %c5_184 = arith.constant 5 : index
    %c0_185 = arith.constant 0 : index
    %c0_186 = arith.constant 0 : index
    %230 = vector.load %arg7[%c5_184, %c0_185, %c0_186] : memref<7x1x8xf32, #tpu.memory_space<vmem>>, vector<1x1x8xf32>
    %231 = vector.shape_cast %230 : vector<1x1x8xf32> to vector<1x8xf32>
    %232 = vector.broadcast %231 : vector<1x8xf32> to vector<64x8xf32>
    %233 = arith.addf %229, %232 : vector<64x8xf32>
    %c0_187 = arith.constant 0 : index
    %c0_188 = arith.constant 0 : index
    %c0_189 = arith.constant 0 : index
    %234 = vector.load %arg20[%c0_187, %c0_188, %c0_189] : memref<2x36x8xbf16, #tpu.memory_space<vmem>>, vector<2x32x8xbf16>
    %235 = vector.shape_cast %234 : vector<2x32x8xbf16> to vector<64x8xbf16>
    %236 = vector.extract_strided_slice %228 {offsets = [0, 0], sizes = [8, 8], strides = [1, 1]} : vector<24x8xbf16> to vector<8x8xbf16>
    %cst_190 = arith.constant dense<0.000000e+00> : vector<64x8xf32>
    %237 = tpu.matmul %235, %236, %cst_190 {dimension_numbers = #tpu.dot_dimension_numbers<[1], [0], [0], [1], [0, 0, 1, 1], [], []>} : vector<64x8xbf16>, vector<8x8xbf16>, vector<64x8xf32> -> vector<64x8xf32>
    %238 = arith.addf %233, %237 : vector<64x8xf32>
    %c0_191 = arith.constant 0 : index
    %c2_192 = arith.constant 2 : index
    %c0_193 = arith.constant 0 : index
    %239 = vector.load %arg20[%c0_191, %c2_192, %c0_193] : memref<2x36x8xbf16, #tpu.memory_space<vmem>>, vector<2x32x8xbf16>
    %240 = vector.shape_cast %239 : vector<2x32x8xbf16> to vector<64x8xbf16>
    %241 = vector.extract_strided_slice %228 {offsets = [8, 0], sizes = [8, 8], strides = [1, 1]} : vector<24x8xbf16> to vector<8x8xbf16>
    %cst_194 = arith.constant dense<0.000000e+00> : vector<64x8xf32>
    %242 = tpu.matmul %240, %241, %cst_194 {dimension_numbers = #tpu.dot_dimension_numbers<[1], [0], [0], [1], [0, 0, 1, 1], [], []>} : vector<64x8xbf16>, vector<8x8xbf16>, vector<64x8xf32> -> vector<64x8xf32>
    %243 = arith.addf %238, %242 : vector<64x8xf32>
    %c0_195 = arith.constant 0 : index
    %c4_196 = arith.constant 4 : index
    %c0_197 = arith.constant 0 : index
    %244 = vector.load %arg20[%c0_195, %c4_196, %c0_197] : memref<2x36x8xbf16, #tpu.memory_space<vmem>>, vector<2x32x8xbf16>
    %245 = vector.shape_cast %244 : vector<2x32x8xbf16> to vector<64x8xbf16>
    %246 = vector.extract_strided_slice %228 {offsets = [16, 0], sizes = [8, 8], strides = [1, 1]} : vector<24x8xbf16> to vector<8x8xbf16>
    %cst_198 = arith.constant dense<0.000000e+00> : vector<64x8xf32>
    %247 = tpu.matmul %245, %246, %cst_198 {dimension_numbers = #tpu.dot_dimension_numbers<[1], [0], [0], [1], [0, 0, 1, 1], [], []>} : vector<64x8xbf16>, vector<8x8xbf16>, vector<64x8xf32> -> vector<64x8xf32>
    %248 = arith.addf %243, %247 : vector<64x8xf32>
    %cst_199 = arith.constant 0.000000e+00 : f32
    %249 = vector.broadcast %cst_199 : f32 to vector<64x8xf32>
    %250 = arith.maximumf %248, %249 : vector<64x8xf32>
    %c5_200 = arith.constant 5 : index
    %c0_201 = arith.constant 0 : index
    %c0_202 = arith.constant 0 : index
    %251 = vector.load %arg8[%c5_200, %c0_201, %c0_202] : memref<7x1x8xf32, #tpu.memory_space<vmem>>, vector<1x1x8xf32>
    %252 = vector.shape_cast %251 : vector<1x1x8xf32> to vector<1x8xf32>
    %253 = vector.broadcast %252 : vector<1x8xf32> to vector<64x8xf32>
    %254 = arith.mulf %250, %253 : vector<64x8xf32>
    %c5_203 = arith.constant 5 : index
    %c0_204 = arith.constant 0 : index
    %c0_205 = arith.constant 0 : index
    %255 = vector.load %arg9[%c5_203, %c0_204, %c0_205] : memref<7x1x8xf32, #tpu.memory_space<vmem>>, vector<1x1x8xf32>
    %256 = vector.shape_cast %255 : vector<1x1x8xf32> to vector<1x8xf32>
    %257 = vector.broadcast %256 : vector<1x8xf32> to vector<64x8xf32>
    %258 = arith.addf %254, %257 : vector<64x8xf32>
    %259 = arith.truncf %258 : vector<64x8xf32> to vector<64x8xbf16>
    %c0_206 = arith.constant 0 : index
    %c40_207 = arith.constant 40 : index
    %260 = vector.load %arg19[%c0_206, %c40_207] : memref<64x64xbf16, #tpu.memory_space<vmem>>, vector<64x8xbf16>
    tpu.vector_store %arg19[%c0_206, %c40_207], %259 {strides = array<i32>} : memref<64x64xbf16, #tpu.memory_space<vmem>>, vector<64x8xbf16>,
    %c0_208 = arith.constant 0 : index
    %c48 = arith.constant 48 : index
    %261 = vector.load %arg19[%c0_208, %c48] : memref<64x64xbf16, #tpu.memory_space<vmem>>, vector<64x8xbf16>
    %262 = arith.extf %261 : vector<64x8xbf16> to vector<64x8xf32>
    %263 = arith.addf %223, %262 : vector<64x8xf32>
    %264 = vector.shape_cast %263 : vector<64x8xf32> to vector<2x32x8xf32>
    %265 = arith.truncf %264 : vector<2x32x8xf32> to vector<2x32x8xbf16>
    %c0_209 = arith.constant 0 : index
    %c2_210 = arith.constant 2 : index
    %c0_211 = arith.constant 0 : index
    %266 = vector.load %arg20[%c0_209, %c2_210, %c0_211] : memref<2x36x8xbf16, #tpu.memory_space<vmem>>, vector<2x32x8xbf16>
    tpu.vector_store %arg20[%c0_209, %c2_210, %c0_211], %265 {strides = array<i32>} : memref<2x36x8xbf16, #tpu.memory_space<vmem>>, vector<2x32x8xbf16>,
    %c6 = arith.constant 6 : index
    %c0_212 = arith.constant 0 : index
    %c0_213 = arith.constant 0 : index
    %267 = vector.load %arg6[%c6, %c0_212, %c0_213] : memref<7x24x8xbf16, #tpu.memory_space<vmem>>, vector<1x24x8xbf16>
    %268 = vector.shape_cast %267 : vector<1x24x8xbf16> to vector<24x8xbf16>
    %cst_214 = arith.constant 0.000000e+00 : f32
    %269 = vector.broadcast %cst_214 : f32 to vector<64x8xf32>
    %c6_215 = arith.constant 6 : index
    %c0_216 = arith.constant 0 : index
    %c0_217 = arith.constant 0 : index
    %270 = vector.load %arg7[%c6_215, %c0_216, %c0_217] : memref<7x1x8xf32, #tpu.memory_space<vmem>>, vector<1x1x8xf32>
    %271 = vector.shape_cast %270 : vector<1x1x8xf32> to vector<1x8xf32>
    %272 = vector.broadcast %271 : vector<1x8xf32> to vector<64x8xf32>
    %273 = arith.addf %269, %272 : vector<64x8xf32>
    %c0_218 = arith.constant 0 : index
    %c0_219 = arith.constant 0 : index
    %c0_220 = arith.constant 0 : index
    %274 = vector.load %arg20[%c0_218, %c0_219, %c0_220] : memref<2x36x8xbf16, #tpu.memory_space<vmem>>, vector<2x32x8xbf16>
    %275 = vector.shape_cast %274 : vector<2x32x8xbf16> to vector<64x8xbf16>
    %276 = vector.extract_strided_slice %268 {offsets = [0, 0], sizes = [8, 8], strides = [1, 1]} : vector<24x8xbf16> to vector<8x8xbf16>
    %cst_221 = arith.constant dense<0.000000e+00> : vector<64x8xf32>
    %277 = tpu.matmul %275, %276, %cst_221 {dimension_numbers = #tpu.dot_dimension_numbers<[1], [0], [0], [1], [0, 0, 1, 1], [], []>} : vector<64x8xbf16>, vector<8x8xbf16>, vector<64x8xf32> -> vector<64x8xf32>
    %278 = arith.addf %273, %277 : vector<64x8xf32>
    %c0_222 = arith.constant 0 : index
    %c2_223 = arith.constant 2 : index
    %c0_224 = arith.constant 0 : index
    %279 = vector.load %arg20[%c0_222, %c2_223, %c0_224] : memref<2x36x8xbf16, #tpu.memory_space<vmem>>, vector<2x32x8xbf16>
    %280 = vector.shape_cast %279 : vector<2x32x8xbf16> to vector<64x8xbf16>
    %281 = vector.extract_strided_slice %268 {offsets = [8, 0], sizes = [8, 8], strides = [1, 1]} : vector<24x8xbf16> to vector<8x8xbf16>
    %cst_225 = arith.constant dense<0.000000e+00> : vector<64x8xf32>
    %282 = tpu.matmul %280, %281, %cst_225 {dimension_numbers = #tpu.dot_dimension_numbers<[1], [0], [0], [1], [0, 0, 1, 1], [], []>} : vector<64x8xbf16>, vector<8x8xbf16>, vector<64x8xf32> -> vector<64x8xf32>
    %283 = arith.addf %278, %282 : vector<64x8xf32>
    %c0_226 = arith.constant 0 : index
    %c4_227 = arith.constant 4 : index
    %c0_228 = arith.constant 0 : index
    %284 = vector.load %arg20[%c0_226, %c4_227, %c0_228] : memref<2x36x8xbf16, #tpu.memory_space<vmem>>, vector<2x32x8xbf16>
    %285 = vector.shape_cast %284 : vector<2x32x8xbf16> to vector<64x8xbf16>
    %286 = vector.extract_strided_slice %268 {offsets = [16, 0], sizes = [8, 8], strides = [1, 1]} : vector<24x8xbf16> to vector<8x8xbf16>
    %cst_229 = arith.constant dense<0.000000e+00> : vector<64x8xf32>
    %287 = tpu.matmul %285, %286, %cst_229 {dimension_numbers = #tpu.dot_dimension_numbers<[1], [0], [0], [1], [0, 0, 1, 1], [], []>} : vector<64x8xbf16>, vector<8x8xbf16>, vector<64x8xf32> -> vector<64x8xf32>
    %288 = arith.addf %283, %287 : vector<64x8xf32>
    %cst_230 = arith.constant 0.000000e+00 : f32
    %289 = vector.broadcast %cst_230 : f32 to vector<64x8xf32>
    %290 = arith.maximumf %288, %289 : vector<64x8xf32>
    %c6_231 = arith.constant 6 : index
    %c0_232 = arith.constant 0 : index
    %c0_233 = arith.constant 0 : index
    %291 = vector.load %arg8[%c6_231, %c0_232, %c0_233] : memref<7x1x8xf32, #tpu.memory_space<vmem>>, vector<1x1x8xf32>
    %292 = vector.shape_cast %291 : vector<1x1x8xf32> to vector<1x8xf32>
    %293 = vector.broadcast %292 : vector<1x8xf32> to vector<64x8xf32>
    %294 = arith.mulf %290, %293 : vector<64x8xf32>
    %c6_234 = arith.constant 6 : index
    %c0_235 = arith.constant 0 : index
    %c0_236 = arith.constant 0 : index
    %295 = vector.load %arg9[%c6_234, %c0_235, %c0_236] : memref<7x1x8xf32, #tpu.memory_space<vmem>>, vector<1x1x8xf32>
    %296 = vector.shape_cast %295 : vector<1x1x8xf32> to vector<1x8xf32>
    %297 = vector.broadcast %296 : vector<1x8xf32> to vector<64x8xf32>
    %298 = arith.addf %294, %297 : vector<64x8xf32>
    %299 = arith.truncf %298 : vector<64x8xf32> to vector<64x8xbf16>
    %c0_237 = arith.constant 0 : index
    %c48_238 = arith.constant 48 : index
    %300 = vector.load %arg19[%c0_237, %c48_238] : memref<64x64xbf16, #tpu.memory_space<vmem>>, vector<64x8xbf16>
    tpu.vector_store %arg19[%c0_237, %c48_238], %299 {strides = array<i32>} : memref<64x64xbf16, #tpu.memory_space<vmem>>, vector<64x8xbf16>,
    %c0_239 = arith.constant 0 : index
    %c0_240 = arith.constant 0 : index
    %301 = vector.load %arg19[%c0_239, %c0_240] : memref<64x64xbf16, #tpu.memory_space<vmem>>, vector<64x64xbf16>
    %c0_241 = arith.constant 0 : index
    %c0_242 = arith.constant 0 : index
    %302 = vector.load %arg10[%c0_241, %c0_242] : memref<64x64xbf16, #tpu.memory_space<vmem>>, vector<64x64xbf16>
    %cst_243 = arith.constant dense<0.000000e+00> : vector<64x64xf32>
    %303 = tpu.matmul %301, %302, %cst_243 {dimension_numbers = #tpu.dot_dimension_numbers<[1], [0], [0], [1], [0, 0, 1, 1], [], []>} : vector<64x64xbf16>, vector<64x64xbf16>, vector<64x64xf32> -> vector<64x64xf32>
    %c0_244 = arith.constant 0 : index
    %c0_245 = arith.constant 0 : index
    %304 = vector.load %arg11[%c0_244, %c0_245] : memref<1x64xf32, #tpu.memory_space<vmem>>, vector<1x64xf32>
    %305 = vector.broadcast %304 : vector<1x64xf32> to vector<64x64xf32>
    %306 = arith.addf %303, %305 : vector<64x64xf32>
    %cst_246 = arith.constant 0.000000e+00 : f32
    %307 = vector.broadcast %cst_246 : f32 to vector<64x64xf32>
    %308 = arith.maximumf %306, %307 : vector<64x64xf32>
    %c0_247 = arith.constant 0 : index
    %c0_248 = arith.constant 0 : index
    %309 = vector.load %arg12[%c0_247, %c0_248] : memref<1x64xf32, #tpu.memory_space<vmem>>, vector<1x64xf32>
    %310 = vector.broadcast %309 : vector<1x64xf32> to vector<64x64xf32>
    %311 = arith.mulf %308, %310 : vector<64x64xf32>
    %c0_249 = arith.constant 0 : index
    %c0_250 = arith.constant 0 : index
    %312 = vector.load %arg13[%c0_249, %c0_250] : memref<1x64xf32, #tpu.memory_space<vmem>>, vector<1x64xf32>
    %313 = vector.broadcast %312 : vector<1x64xf32> to vector<64x64xf32>
    %314 = arith.addf %311, %313 : vector<64x64xf32>
    %315 = vector.shape_cast %314 : vector<64x64xf32> to vector<2x32x64xf32>
    %cst_251 = arith.constant dense<0.000000e+00> : vector<2x64xf32>
    %316 = vector.multi_reduction <add>, %315, %cst_251 [1] : vector<2x32x64xf32> to vector<2x64xf32>
    %cst_252 = arith.constant 3.200000e+01 : f32
    %317 = vector.broadcast %cst_252 : f32 to vector<2x64xf32>
    %318 = arith.divf %316, %317 : vector<2x64xf32>
    %c0_253 = arith.constant 0 : index
    %c0_254 = arith.constant 0 : index
    %319 = vector.load %arg14[%c0_253, %c0_254] : memref<64x128xbf16, #tpu.memory_space<vmem>>, vector<64x128xbf16>
    %320 = arith.truncf %318 : vector<2x64xf32> to vector<2x64xbf16>
    %cst_255 = arith.constant dense<0.000000e+00> : vector<2x128xf32>
    %321 = tpu.matmul %320, %319, %cst_255 {dimension_numbers = #tpu.dot_dimension_numbers<[1], [0], [0], [1], [0, 0, 1, 1], [], []>} : vector<2x64xbf16>, vector<64x128xbf16>, vector<2x128xf32> -> vector<2x128xf32>
    %c0_256 = arith.constant 0 : index
    %c0_257 = arith.constant 0 : index
    %322 = vector.load %arg15[%c0_256, %c0_257] : memref<1x128xf32, #tpu.memory_space<vmem>>, vector<1x128xf32>
    %323 = vector.broadcast %322 : vector<1x128xf32> to vector<2x128xf32>
    %324 = arith.addf %321, %323 : vector<2x128xf32>
    %cst_258 = arith.constant 0.000000e+00 : f32
    %325 = vector.broadcast %cst_258 : f32 to vector<2x128xf32>
    %326 = arith.maximumf %324, %325 : vector<2x128xf32>
    %c0_259 = arith.constant 0 : index
    %c0_260 = arith.constant 0 : index
    %327 = vector.load %arg16[%c0_259, %c0_260] : memref<128x64xbf16, #tpu.memory_space<vmem>>, vector<128x64xbf16>
    %328 = arith.truncf %326 : vector<2x128xf32> to vector<2x128xbf16>
    %cst_261 = arith.constant dense<0.000000e+00> : vector<2x64xf32>
    %329 = tpu.matmul %328, %327, %cst_261 {dimension_numbers = #tpu.dot_dimension_numbers<[1], [0], [0], [1], [0, 0, 1, 1], [], []>} : vector<2x128xbf16>, vector<128x64xbf16>, vector<2x64xf32> -> vector<2x64xf32>
    %c0_262 = arith.constant 0 : index
    %c0_263 = arith.constant 0 : index
    %330 = vector.load %arg17[%c0_262, %c0_263] : memref<1x64xf32, #tpu.memory_space<vmem>>, vector<1x64xf32>
    %331 = vector.broadcast %330 : vector<1x64xf32> to vector<2x64xf32>
    %332 = arith.addf %329, %331 : vector<2x64xf32>
    %333 = arith.negf %332 : vector<2x64xf32>
    %334 = math.exp %333 : vector<2x64xf32>
    %cst_264 = arith.constant 1.000000e+00 : f32
    %335 = vector.broadcast %cst_264 : f32 to vector<2x64xf32>
    %336 = arith.addf %335, %334 : vector<2x64xf32>
    %337 = arith.divf %335, %336 : vector<2x64xf32>
    %338 = vector.shape_cast %337 : vector<2x64xf32> to vector<2x1x64xf32>
    %339 = vector.broadcast %338 : vector<2x1x64xf32> to vector<2x32x64xf32>
    %340 = arith.mulf %315, %339 : vector<2x32x64xf32>
    %341 = arith.addf %340, %0 : vector<2x32x64xf32>
    %c0_265 = arith.constant 0 : index
    %c0_266 = arith.constant 0 : index
    %c0_267 = arith.constant 0 : index
    %342 = vector.load %arg18[%c0_265, %c0_266, %c0_267] : memref<2x32x64xf32, #tpu.memory_space<vmem>>, vector<2x32x64xf32>
    tpu.vector_store %arg18[%c0_265, %c0_266, %c0_267], %341 {strides = array<i32>} : memref<2x32x64xf32, #tpu.memory_space<vmem>>, vector<2x32x64xf32>,
    return
  }
  func.func @transform_0(%arg0: i32) -> (i32, i32, i32) {
    %c0_i32 = arith.constant 0 : i32
    %c0_i32_0 = arith.constant 0 : i32
    %c0_i32_1 = arith.constant 0 : i32
    return %arg0, %c0_i32, %c0_i32_0 : i32, i32, i32
  }
  func.func @transform_1(%arg0: i32) -> (i32, i32) {
    %c0_i32 = arith.constant 0 : i32
    %c0_i32_0 = arith.constant 0 : i32
    %c0_i32_1 = arith.constant 0 : i32
    return %c0_i32, %c0_i32_0 : i32, i32
  }
  func.func @transform_2(%arg0: i32) -> (i32, i32) {
    %c0_i32 = arith.constant 0 : i32
    %c0_i32_0 = arith.constant 0 : i32
    %c0_i32_1 = arith.constant 0 : i32
    return %c0_i32, %c0_i32_0 : i32, i32
  }
  func.func @transform_3(%arg0: i32) -> (i32, i32) {
    %c0_i32 = arith.constant 0 : i32
    %c0_i32_0 = arith.constant 0 : i32
    %c0_i32_1 = arith.constant 0 : i32
    return %c0_i32, %c0_i32_0 : i32, i32
  }
  func.func @transform_4(%arg0: i32) -> (i32, i32) {
    %c0_i32 = arith.constant 0 : i32
    %c0_i32_0 = arith.constant 0 : i32
    %c0_i32_1 = arith.constant 0 : i32
    return %c0_i32, %c0_i32_0 : i32, i32
  }
  func.func @transform_5(%arg0: i32) -> (i32, i32, i32) {
    %c0_i32 = arith.constant 0 : i32
    %c0_i32_0 = arith.constant 0 : i32
    %c0_i32_1 = arith.constant 0 : i32
    %c0_i32_2 = arith.constant 0 : i32
    return %c0_i32, %c0_i32_0, %c0_i32_1 : i32, i32, i32
  }
  func.func @transform_6(%arg0: i32) -> (i32, i32, i32) {
    %c0_i32 = arith.constant 0 : i32
    %c0_i32_0 = arith.constant 0 : i32
    %c0_i32_1 = arith.constant 0 : i32
    %c0_i32_2 = arith.constant 0 : i32
    return %c0_i32, %c0_i32_0, %c0_i32_1 : i32, i32, i32
  }
  func.func @transform_7(%arg0: i32) -> (i32, i32, i32) {
    %c0_i32 = arith.constant 0 : i32
    %c0_i32_0 = arith.constant 0 : i32
    %c0_i32_1 = arith.constant 0 : i32
    %c0_i32_2 = arith.constant 0 : i32
    return %c0_i32, %c0_i32_0, %c0_i32_1 : i32, i32, i32
  }
  func.func @transform_8(%arg0: i32) -> (i32, i32, i32) {
    %c0_i32 = arith.constant 0 : i32
    %c0_i32_0 = arith.constant 0 : i32
    %c0_i32_1 = arith.constant 0 : i32
    %c0_i32_2 = arith.constant 0 : i32
    return %c0_i32, %c0_i32_0, %c0_i32_1 : i32, i32, i32
  }
  func.func @transform_9(%arg0: i32) -> (i32, i32) {
    %c0_i32 = arith.constant 0 : i32
    %c0_i32_0 = arith.constant 0 : i32
    %c0_i32_1 = arith.constant 0 : i32
    return %c0_i32, %c0_i32_0 : i32, i32
  }
  func.func @transform_10(%arg0: i32) -> (i32, i32) {
    %c0_i32 = arith.constant 0 : i32
    %c0_i32_0 = arith.constant 0 : i32
    %c0_i32_1 = arith.constant 0 : i32
    return %c0_i32, %c0_i32_0 : i32, i32
  }
  func.func @transform_11(%arg0: i32) -> (i32, i32) {
    %c0_i32 = arith.constant 0 : i32
    %c0_i32_0 = arith.constant 0 : i32
    %c0_i32_1 = arith.constant 0 : i32
    return %c0_i32, %c0_i32_0 : i32, i32
  }
  func.func @transform_12(%arg0: i32) -> (i32, i32) {
    %c0_i32 = arith.constant 0 : i32
    %c0_i32_0 = arith.constant 0 : i32
    %c0_i32_1 = arith.constant 0 : i32
    return %c0_i32, %c0_i32_0 : i32, i32
  }
  func.func @transform_13(%arg0: i32) -> (i32, i32) {
    %c0_i32 = arith.constant 0 : i32
    %c0_i32_0 = arith.constant 0 : i32
    %c0_i32_1 = arith.constant 0 : i32
    return %c0_i32, %c0_i32_0 : i32, i32
  }
  func.func @transform_14(%arg0: i32) -> (i32, i32) {
    %c0_i32 = arith.constant 0 : i32
    %c0_i32_0 = arith.constant 0 : i32
    %c0_i32_1 = arith.constant 0 : i32
    return %c0_i32, %c0_i32_0 : i32, i32
  }
  func.func @transform_15(%arg0: i32) -> (i32, i32) {
    %c0_i32 = arith.constant 0 : i32
    %c0_i32_0 = arith.constant 0 : i32
    %c0_i32_1 = arith.constant 0 : i32
    return %c0_i32, %c0_i32_0 : i32, i32
  }
  func.func @transform_16(%arg0: i32) -> (i32, i32) {
    %c0_i32 = arith.constant 0 : i32
    %c0_i32_0 = arith.constant 0 : i32
    %c0_i32_1 = arith.constant 0 : i32
    return %c0_i32, %c0_i32_0 : i32, i32
  }
  func.func @transform_17(%arg0: i32) -> (i32, i32, i32) {
    %c0_i32 = arith.constant 0 : i32
    %c0_i32_0 = arith.constant 0 : i32
    %c0_i32_1 = arith.constant 0 : i32
    return %arg0, %c0_i32, %c0_i32_0 : i32, i32, i32
  }
}

</mosaic_0001>

<llo_original>
// kernel: tpu_custom_call.1
$region0: #{tpu_custom_call.1}
  #allocation0 [shape = 'u32[]', space=smem, size = 0x4, offset = 0x4, fixed_abs, tag = 'smem constant byte address 0x4 - core index']
  #allocation1 [shape = 'u32[144,128]{1,0:T(1,128)}', space=vmem, size = 0x12000, scoped, tag = 'internal scratch']
  #allocation2 [shape = 'bf16[64,64]{1,0:T(16,128)(2,1)}', space=vmem, size = 0x4000, scoped, tag = 'scratch operand']
  #allocation3 [shape = 'bf16[2,36,8]{2,1,0:T(8,128)(2,1)}', space=vmem, size = 0x5000, scoped, tag = 'scratch operand']
  %s0 = inlined_call_operand.vmem [shape: f32[4,32,64], index: 0, kind: input, shape index: {}]
  %s1 = inlined_call_operand.vmem [shape: bf16[64,64], index: 1, kind: input, shape index: {}]
  %s2 = inlined_call_operand.vmem [shape: f32[1,64], index: 2, kind: input, shape index: {}]
  %s3 = inlined_call_operand.hbm [shape: f32[1,64], index: 3, kind: input, shape index: {}]
  %s4 = inlined_call_operand.hbm [shape: f32[1,64], index: 4, kind: input, shape index: {}]
  %s5 = inlined_call_operand.vmem [shape: bf16[7,24,8], index: 5, kind: input, shape index: {}]
  %s6 = inlined_call_operand.hbm [shape: f32[7,1,8], index: 6, kind: input, shape index: {}]
  %s7 = inlined_call_operand.vmem [shape: f32[7,1,8], index: 7, kind: input, shape index: {}]
  %s8 = inlined_call_operand.hbm [shape: f32[7,1,8], index: 8, kind: input, shape index: {}]
  %s9 = inlined_call_operand.vmem [shape: bf16[64,64], index: 9, kind: input, shape index: {}]
  %s10 = inlined_call_operand.hbm [shape: f32[1,64], index: 10, kind: input, shape index: {}]
  %s11 = inlined_call_operand.hbm [shape: f32[1,64], index: 11, kind: input, shape index: {}]
  %s12 = inlined_call_operand.hbm [shape: f32[1,64], index: 12, kind: input, shape index: {}]
  %s13 = inlined_call_operand.vmem [shape: bf16[64,128], index: 13, kind: input, shape index: {}]
  %s14 = inlined_call_operand.hbm [shape: f32[1,128], index: 14, kind: input, shape index: {}]
  %s15 = inlined_call_operand.vmem [shape: bf16[128,64], index: 15, kind: input, shape index: {}]
  %s16 = inlined_call_operand.vmem [shape: f32[1,64], index: 16, kind: input, shape index: {}]
  %s17 = inlined_call_operand.hbm [shape: f32[4,32,64], index: 17, kind: output, shape index: {}]
  %s18 = sld [smem:[#allocation0]]
  $region133: #{tpu_custom_call.1} parent=0
    _
  %s20 = ssub.s32 1, %s18
  %s21 = scalar_select 0, %s20, %s18
  $region1: #{tpu_custom_call.1} parent=0
    #allocation4 [shape = 'u8[512]{0}', space=vmem, size = 0x400, scoped, tag = 'input window, operand 3, single buffered']
    #allocation5 [shape = 's32[2]{0}', space=sflag, size = 0x8, scoped, tag = 'scoped memory for tpu_custom_call.1']
    #allocation6 [shape = 's32[2]{0}', space=sflag, size = 0x8, scoped, tag = 'scoped memory for tpu_custom_call.1']
    #allocation7 [shape = 'u8[512]{0}', space=vmem, size = 0x400, scoped, tag = 'input window, operand 4, single buffered']
    #allocation8 [shape = 's32[1]{0}', space=sflag, size = 0x4, scoped, tag = 'scoped memory for tpu_custom_call.1']
    #allocation9 [shape = 'u8[3584]{0}', space=vmem, size = 0x1000, scoped, tag = 'input window, operand 6, single buffered']
    #allocation10 [shape = 'u8[3584]{0}', space=vmem, size = 0x1000, scoped, tag = 'input window, operand 8, single buffered']
    #allocation11 [shape = 's32[1]{0}', space=sflag, size = 0x4, scoped, tag = 'scoped memory for tpu_custom_call.1']
    #allocation12 [shape = 'u8[512]{0}', space=vmem, size = 0x400, scoped, tag = 'input window, operand 10, single buffered']
    #allocation13 [shape = 'u8[512]{0}', space=vmem, size = 0x400, scoped, tag = 'input window, operand 11, single buffered']
    #allocation14 [shape = 's32[1]{0}', space=sflag, size = 0x4, scoped, tag = 'scoped memory for tpu_custom_call.1']
    #allocation15 [shape = 'u8[512]{0}', space=vmem, size = 0x400, scoped, tag = 'input window, operand 12, single buffered']
    #allocation16 [shape = 'u8[512]{0}', space=vmem, size = 0x400, scoped, tag = 'input window, operand 14, single buffered']
    #allocation17 [shape = 's32[1]{0}', space=sflag, size = 0x4, scoped, tag = 'scoped memory for tpu_custom_call.1']
    #allocation18 [shape = 'u8[65536]{0}', space=vmem, size = 0x10000, scoped, tag = 'output window, operand 0']
    %22 = vsyncpa [#allocation5], 0
    %23 = vsyncpa [#allocation8], 0
    %24 = vsyncpa [#allocation11], 0
    %25 = vsyncpa [#allocation14], 0
    %26 = vsyncpa [#allocation17], 0
    %27 = vsyncpa [#allocation6], 0
    %s28 = scalar_lea.sflag [#allocation6], 1
    %29 = vsyncpa %s28, 0
    loop: start=0, step=1, limit=4
    $region2: #{tpu_custom_call.1} parent=1 // loop_pre_header
      _
    $region3: #{tpu_custom_call.1} parent=1 // loop_header
      %s31 = sphi 0, %s35
      %p32 = scmp.ge.s32.totalorder %s31, 4
      %s41 = sphi 0, %s43
      %s44 = sphi 0, %s41
      %s45 = sphi 0, %s44
      %s61 = sphi 0, %s45
      %s65 = sphi 0, %s65
      %s67 = sphi 0, %s65
      %s68 = sphi 0, %s67
      %s82 = sphi 0, %s68
      %s86 = sphi 0, %s86
      %s88 = sphi 0, %s86
      %s89 = sphi 0, %s88
      %s103 = sphi 0, %s89
      %s107 = sphi 0, %s107
      %s109 = sphi 0, %s107
      %s110 = sphi 0, %s109
      %s124 = sphi 0, %s110
      %s128 = sphi 0, %s128
      %s130 = sphi 0, %s128
      %s131 = sphi 0, %s130
      %s145 = sphi 0, %s131
      %s149 = sphi 0, %s149
      %s151 = sphi 0, %s149
      %s152 = sphi 0, %s151
      %s166 = sphi 0, %s152
      %s170 = sphi 0, %s170
      %s172 = sphi 0, %s170
      %s173 = sphi 0, %s172
      %s187 = sphi 0, %s173
      %s191 = sphi 0, %s191
      %s193 = sphi 0, %s191
      %s194 = sphi 0, %s193
      %s208 = sphi 0, %s194
      %s212 = sphi 0, %s212
      %s214 = sphi 0, %s212
      %s215 = sphi 0, %s214
      %s229 = sphi 0, %s215
      %s233 = sphi 0, %s233
      %s235 = sphi 0, %s233
      %s236 = sphi 0, %s235
      %s250 = sphi 0, %s236
      %s254 = sphi 0, %s254
      %s256 = sphi 0, %s254
      %s257 = sphi 0, %s256
      %s271 = sphi 0, %s257
      %s275 = sphi 0, %s275
      %s277 = sphi 0, %s275
      %s278 = sphi 0, %s277
      %s292 = sphi 0, %s278
      %s296 = sphi 0, %s296
      %s298 = sphi 0, %s296
      %s299 = sphi 0, %s298
      %s313 = sphi 0, %s299
      %s317 = sphi 0, %s317
      %s319 = sphi 0, %s317
      %s320 = sphi 0, %s319
      %s334 = sphi 0, %s320
      %s338 = sphi 0, %s338
      %s340 = sphi 0, %s338
      %s341 = sphi 0, %s340
      %s355 = sphi 0, %s341
      %s359 = sphi 0, %s359
      %s361 = sphi 0, %s359
      %s362 = sphi 0, %s361
      %s376 = sphi 0, %s362
      %s380 = sphi 0, %s380
      %s382 = sphi 0, %s380
      %s383 = sphi 0, %s382
      %s397 = sphi 0, %s383
      %s403 = sphi 0, %s405
      %s406 = sphi 0, %s403
      %s407 = sphi 0, %s406
      %s423 = sphi 0, %s407
    $region4: #{tpu_custom_call.1} parent=1 // loop_header_branch
      %34 = sbr.rel (%p32) target = $region8
    $region5: #{tpu_custom_call.1} parent=1 // loop_body
      %s36 = ssub.s32 %s31, 1
      %s37 = ssub.s32 %s31, 2
      %s38 = sadd.s32 %s31, 1
      %s39 = ssub.s32 %s31, %s38
      %p40 = scmp.eq.s32.totalorder %s39, 0
      %s42 = sadd.s32 %s41, 1
      %s43 = scalar_select %p40, %s41, %s42
      %p46 = pneg %p40
      %p47 = scmp.eq.s32.totalorder %s31, 1
      %p48 = por %p46, %p47
      %p49 = scmp.ne.s32.totalorder %s41, %s44
      %p50 = scmp.eq.s32.totalorder %s31, 0
      %p51 = por %p49, %p50
      %p52 = scmp.ne.s32.totalorder %s41, %s44
      %p53 = scmp.eq.s32.totalorder %s36, 1
      %p54 = por %p52, %p53
      %p55 = scmp.ne.s32.totalorder %s44, %s45
      %p56 = scmp.eq.s32.totalorder %s36, 0
      %p57 = por %p55, %p56
      %p58 = scmp.ne.s32.totalorder %s44, %s45
      %p59 = scmp.eq.s32.totalorder %s37, 1
      %p60 = por %p58, %p59
      %p62 = scmp.ne.s32.totalorder %s45, %s61
      %p63 = scmp.eq.s32.totalorder %s37, 0
      %p64 = por %p62, %p63
      %s66 = sadd.s32 %s65, 1
      %p69 = scmp.eq.s32.totalorder %s31, 1
      %p70 = scmp.ne.s32.totalorder %s65, %s67
      %p71 = scmp.eq.s32.totalorder %s31, 0
      %p72 = por %p70, %p71
      %p73 = scmp.ne.s32.totalorder %s65, %s67
      %p74 = scmp.eq.s32.totalorder %s36, 1
      %p75 = por %p73, %p74
      %p76 = scmp.ne.s32.totalorder %s67, %s68
      %p77 = scmp.eq.s32.totalorder %s36, 0
      %p78 = por %p76, %p77
      %p79 = scmp.ne.s32.totalorder %s67, %s68
      %p80 = scmp.eq.s32.totalorder %s37, 1
      %p81 = por %p79, %p80
      %p83 = scmp.ne.s32.totalorder %s68, %s82
      %p84 = scmp.eq.s32.totalorder %s37, 0
      %p85 = por %p83, %p84
      %s87 = sadd.s32 %s86, 1
      %p90 = scmp.eq.s32.totalorder %s31, 1
      %p91 = scmp.ne.s32.totalorder %s86, %s88
      %p92 = scmp.eq.s32.totalorder %s31, 0
      %p93 = por %p91, %p92
      %p94 = scmp.ne.s32.totalorder %s86, %s88
      %p95 = scmp.eq.s32.totalorder %s36, 1
      %p96 = por %p94, %p95
      %p97 = scmp.ne.s32.totalorder %s88, %s89
      %p98 = scmp.eq.s32.totalorder %s36, 0
      %p99 = por %p97, %p98
      %p100 = scmp.ne.s32.totalorder %s88, %s89
      %p101 = scmp.eq.s32.totalorder %s37, 1
      %p102 = por %p100, %p101
      %p104 = scmp.ne.s32.totalorder %s89, %s103
      %p105 = scmp.eq.s32.totalorder %s37, 0
      %p106 = por %p104, %p105
      %s108 = sadd.s32 %s107, 1
      %p111 = scmp.eq.s32.totalorder %s31, 1
      %p112 = scmp.ne.s32.totalorder %s107, %s109
      %p113 = scmp.eq.s32.totalorder %s31, 0
      %p114 = por %p112, %p113
      %p115 = scmp.ne.s32.totalorder %s107, %s109
      %p116 = scmp.eq.s32.totalorder %s36, 1
      %p117 = por %p115, %p116
      %p118 = scmp.ne.s32.totalorder %s109, %s110
      %p119 = scmp.eq.s32.totalorder %s36, 0
      %p120 = por %p118, %p119
      %p121 = scmp.ne.s32.totalorder %s109, %s110
      %p122 = scmp.eq.s32.totalorder %s37, 1
      %p123 = por %p121, %p122
      %p125 = scmp.ne.s32.totalorder %s110, %s124
      %p126 = scmp.eq.s32.totalorder %s37, 0
      %p127 = por %p125, %p126
      %s129 = sadd.s32 %s128, 1
      %p132 = scmp.eq.s32.totalorder %s31, 1
      %p133 = scmp.ne.s32.totalorder %s128, %s130
      %p134 = scmp.eq.s32.totalorder %s31, 0
      %p135 = por %p133, %p134
      %p136 = scmp.ne.s32.totalorder %s128, %s130
      %p137 = scmp.eq.s32.totalorder %s36, 1
      %p138 = por %p136, %p137
      %p139 = scmp.ne.s32.totalorder %s130, %s131
      %p140 = scmp.eq.s32.totalorder %s36, 0
      %p141 = por %p139, %p140
      %p142 = scmp.ne.s32.totalorder %s130, %s131
      %p143 = scmp.eq.s32.totalorder %s37, 1
      %p144 = por %p142, %p143
      %p146 = scmp.ne.s32.totalorder %s131, %s145
      %p147 = scmp.eq.s32.totalorder %s37, 0
      %p148 = por %p146, %p147
      %s150 = sadd.s32 %s149, 1
      %p153 = scmp.eq.s32.totalorder %s31, 1
      %p154 = scmp.ne.s32.totalorder %s149, %s151
      %p155 = scmp.eq.s32.totalorder %s31, 0
      %p156 = por %p154, %p155
      %p157 = scmp.ne.s32.totalorder %s149, %s151
      %p158 = scmp.eq.s32.totalorder %s36, 1
      %p159 = por %p157, %p158
      %p160 = scmp.ne.s32.totalorder %s151, %s152
      %p161 = scmp.eq.s32.totalorder %s36, 0
      %p162 = por %p160, %p161
      %p163 = scmp.ne.s32.totalorder %s151, %s152
      %p164 = scmp.eq.s32.totalorder %s37, 1
      %p165 = por %p163, %p164
      %p167 = scmp.ne.s32.totalorder %s152, %s166
      %p168 = scmp.eq.s32.totalorder %s37, 0
      %p169 = por %p167, %p168
      %s171 = sadd.s32 %s170, 1
      %p174 = scmp.eq.s32.totalorder %s31, 1
      %p175 = scmp.ne.s32.totalorder %s170, %s172
      %p176 = scmp.eq.s32.totalorder %s31, 0
      %p177 = por %p175, %p176
      %p178 = scmp.ne.s32.totalorder %s170, %s172
      %p179 = scmp.eq.s32.totalorder %s36, 1
      %p180 = por %p178, %p179
      %p181 = scmp.ne.s32.totalorder %s172, %s173
      %p182 = scmp.eq.s32.totalorder %s36, 0
      %p183 = por %p181, %p182
      %p184 = scmp.ne.s32.totalorder %s172, %s173
      %p185 = scmp.eq.s32.totalorder %s37, 1
      %p186 = por %p184, %p185
      %p188 = scmp.ne.s32.totalorder %s173, %s187
      %p189 = scmp.eq.s32.totalorder %s37, 0
      %p190 = por %p188, %p189
      %s192 = sadd.s32 %s191, 1
      %p195 = scmp.eq.s32.totalorder %s31, 1
      %p196 = scmp.ne.s32.totalorder %s191, %s193
      %p197 = scmp.eq.s32.totalorder %s31, 0
      %p198 = por %p196, %p197
      %p199 = scmp.ne.s32.totalorder %s191, %s193
      %p200 = scmp.eq.s32.totalorder %s36, 1
      %p201 = por %p199, %p200
      %p202 = scmp.ne.s32.totalorder %s193, %s194
      %p203 = scmp.eq.s32.totalorder %s36, 0
      %p204 = por %p202, %p203
      %p205 = scmp.ne.s32.totalorder %s193, %s194
      %p206 = scmp.eq.s32.totalorder %s37, 1
      %p207 = por %p205, %p206
      %p209 = scmp.ne.s32.totalorder %s194, %s208
      %p210 = scmp.eq.s32.totalorder %s37, 0
      %p211 = por %p209, %p210
      %s213 = sadd.s32 %s212, 1
      %p216 = scmp.eq.s32.totalorder %s31, 1
      %p217 = scmp.ne.s32.totalorder %s212, %s214
      %p218 = scmp.eq.s32.totalorder %s31, 0
      %p219 = por %p217, %p218
      %p220 = scmp.ne.s32.totalorder %s212, %s214
      %p221 = scmp.eq.s32.totalorder %s36, 1
      %p222 = por %p220, %p221
      %p223 = scmp.ne.s32.totalorder %s214, %s215
      %p224 = scmp.eq.s32.totalorder %s36, 0
      %p225 = por %p223, %p224
      %p226 = scmp.ne.s32.totalorder %s214, %s215
      %p227 = scmp.eq.s32.totalorder %s37, 1
      %p228 = por %p226, %p227
      %p230 = scmp.ne.s32.totalorder %s215, %s229
      %p231 = scmp.eq.s32.totalorder %s37, 0
      %p232 = por %p230, %p231
      %s234 = sadd.s32 %s233, 1
      %p237 = scmp.eq.s32.totalorder %s31, 1
      %p238 = scmp.ne.s32.totalorder %s233, %s235
      %p239 = scmp.eq.s32.totalorder %s31, 0
      %p240 = por %p238, %p239
      %p241 = scmp.ne.s32.totalorder %s233, %s235
      %p242 = scmp.eq.s32.totalorder %s36, 1
      %p243 = por %p241, %p242
      %p244 = scmp.ne.s32.totalorder %s235, %s236
      %p245 = scmp.eq.s32.totalorder %s36, 0
      %p246 = por %p244, %p245
      %p247 = scmp.ne.s32.totalorder %s235, %s236
      %p248 = scmp.eq.s32.totalorder %s37, 1
      %p249 = por %p247, %p248
      %p251 = scmp.ne.s32.totalorder %s236, %s250
      %p252 = scmp.eq.s32.totalorder %s37, 0
      %p253 = por %p251, %p252
      %s255 = sadd.s32 %s254, 1
      %p258 = scmp.eq.s32.totalorder %s31, 1
      %p259 = scmp.ne.s32.totalorder %s254, %s256
      %p260 = scmp.eq.s32.totalorder %s31, 0
      %p261 = por %p259, %p260
      %p262 = scmp.ne.s32.totalorder %s254, %s256
      %p263 = scmp.eq.s32.totalorder %s36, 1
      %p264 = por %p262, %p263
      %p265 = scmp.ne.s32.totalorder %s256, %s257
      %p266 = scmp.eq.s32.totalorder %s36, 0
      %p267 = por %p265, %p266
      %p268 = scmp.ne.s32.totalorder %s256, %s257
      %p269 = scmp.eq.s32.totalorder %s37, 1
      %p270 = por %p268, %p269
      %p272 = scmp.ne.s32.totalorder %s257, %s271
      %p273 = scmp.eq.s32.totalorder %s37, 0
      %p274 = por %p272, %p273
      %s276 = sadd.s32 %s275, 1
      %p279 = scmp.eq.s32.totalorder %s31, 1
      %p280 = scmp.ne.s32.totalorder %s275, %s277
      %p281 = scmp.eq.s32.totalorder %s31, 0
      %p282 = por %p280, %p281
      %p283 = scmp.ne.s32.totalorder %s275, %s277
      %p284 = scmp.eq.s32.totalorder %s36, 1
      %p285 = por %p283, %p284
      %p286 = scmp.ne.s32.totalorder %s277, %s278
      %p287 = scmp.eq.s32.totalorder %s36, 0
      %p288 = por %p286, %p287
      %p289 = scmp.ne.s32.totalorder %s277, %s278
      %p290 = scmp.eq.s32.totalorder %s37, 1
      %p291 = por %p289, %p290
      %p293 = scmp.ne.s32.totalorder %s278, %s292
      %p294 = scmp.eq.s32.totalorder %s37, 0
      %p295 = por %p293, %p294
      %s297 = sadd.s32 %s296, 1
      %p300 = scmp.eq.s32.totalorder %s31, 1
      %p301 = scmp.ne.s32.totalorder %s296, %s298
      %p302 = scmp.eq.s32.totalorder %s31, 0
      %p303 = por %p301, %p302
      %p304 = scmp.ne.s32.totalorder %s296, %s298
      %p305 = scmp.eq.s32.totalorder %s36, 1
      %p306 = por %p304, %p305
      %p307 = scmp.ne.s32.totalorder %s298, %s299
      %p308 = scmp.eq.s32.totalorder %s36, 0
      %p309 = por %p307, %p308
      %p310 = scmp.ne.s32.totalorder %s298, %s299
      %p311 = scmp.eq.s32.totalorder %s37, 1
      %p312 = por %p310, %p311
      %p314 = scmp.ne.s32.totalorder %s299, %s313
      %p315 = scmp.eq.s32.totalorder %s37, 0
      %p316 = por %p314, %p315
      %s318 = sadd.s32 %s317, 1
      %p321 = scmp.eq.s32.totalorder %s31, 1
      %p322 = scmp.ne.s32.totalorder %s317, %s319
      %p323 = scmp.eq.s32.totalorder %s31, 0
      %p324 = por %p322, %p323
      %p325 = scmp.ne.s32.totalorder %s317, %s319
      %p326 = scmp.eq.s32.totalorder %s36, 1
      %p327 = por %p325, %p326
      %p328 = scmp.ne.s32.totalorder %s319, %s320
      %p329 = scmp.eq.s32.totalorder %s36, 0
      %p330 = por %p328, %p329
      %p331 = scmp.ne.s32.totalorder %s319, %s320
      %p332 = scmp.eq.s32.totalorder %s37, 1
      %p333 = por %p331, %p332
      %p335 = scmp.ne.s32.totalorder %s320, %s334
      %p336 = scmp.eq.s32.totalorder %s37, 0
      %p337 = por %p335, %p336
      %s339 = sadd.s32 %s338, 1
      %p342 = scmp.eq.s32.totalorder %s31, 1
      %p343 = scmp.ne.s32.totalorder %s338, %s340
      %p344 = scmp.eq.s32.totalorder %s31, 0
      %p345 = por %p343, %p344
      %p346 = scmp.ne.s32.totalorder %s338, %s340
      %p347 = scmp.eq.s32.totalorder %s36, 1
      %p348 = por %p346, %p347
      %p349 = scmp.ne.s32.totalorder %s340, %s341
      %p350 = scmp.eq.s32.totalorder %s36, 0
      %p351 = por %p349, %p350
      %p352 = scmp.ne.s32.totalorder %s340, %s341
      %p353 = scmp.eq.s32.totalorder %s37, 1
      %p354 = por %p352, %p353
      %p356 = scmp.ne.s32.totalorder %s341, %s355
      %p357 = scmp.eq.s32.totalorder %s37, 0
      %p358 = por %p356, %p357
      %s360 = sadd.s32 %s359, 1
      %p363 = scmp.eq.s32.totalorder %s31, 1
      %p364 = scmp.ne.s32.totalorder %s359, %s361
      %p365 = scmp.eq.s32.totalorder %s31, 0
      %p366 = por %p364, %p365
      %p367 = scmp.ne.s32.totalorder %s359, %s361
      %p368 = scmp.eq.s32.totalorder %s36, 1
      %p369 = por %p367, %p368
      %p370 = scmp.ne.s32.totalorder %s361, %s362
      %p371 = scmp.eq.s32.totalorder %s36, 0
      %p372 = por %p370, %p371
      %p373 = scmp.ne.s32.totalorder %s361, %s362
      %p374 = scmp.eq.s32.totalorder %s37, 1
      %p375 = por %p373, %p374
      %p377 = scmp.ne.s32.totalorder %s362, %s376
      %p378 = scmp.eq.s32.totalorder %s37, 0
      %p379 = por %p377, %p378
      %s381 = sadd.s32 %s380, 1
      %p384 = scmp.eq.s32.totalorder %s31, 1
      %p385 = scmp.ne.s32.totalorder %s380, %s382
      %p386 = scmp.eq.s32.totalorder %s31, 0
      %p387 = por %p385, %p386
      %p388 = scmp.ne.s32.totalorder %s380, %s382
      %p389 = scmp.eq.s32.totalorder %s36, 1
      %p390 = por %p388, %p389
      %p391 = scmp.ne.s32.totalorder %s382, %s383
      %p392 = scmp.eq.s32.totalorder %s36, 0
      %p393 = por %p391, %p392
      %p394 = scmp.ne.s32.totalorder %s382, %s383
      %p395 = scmp.eq.s32.totalorder %s37, 1
      %p396 = por %p394, %p395
      %p398 = scmp.ne.s32.totalorder %s383, %s397
      %p399 = scmp.eq.s32.totalorder %s37, 0
      %p400 = por %p398, %p399
      %s401 = ssub.s32 %s31, %s38
      %p402 = scmp.eq.s32.totalorder %s401, 0
      %s404 = sadd.s32 %s403, 1
      %s405 = scalar_select %p402, %s403, %s404
      %p408 = pneg %p402
      %p409 = scmp.eq.s32.totalorder %s31, 1
      %p410 = por %p408, %p409
      %p411 = scmp.ne.s32.totalorder %s403, %s406
      %p412 = scmp.eq.s32.totalorder %s31, 0
      %p413 = por %p411, %p412
      %p414 = scmp.ne.s32.totalorder %s403, %s406
      %p415 = scmp.eq.s32.totalorder %s36, 1
      %p416 = por %p414, %p415
      %p417 = scmp.ne.s32.totalorder %s406, %s407
      %p418 = scmp.eq.s32.totalorder %s36, 0
      %p419 = por %p417, %p418
      %p420 = scmp.ne.s32.totalorder %s406, %s407
      %p421 = scmp.eq.s32.totalorder %s37, 1
      %p422 = por %p420, %p421
      %p424 = scmp.ne.s32.totalorder %s407, %s423
      %p425 = scmp.eq.s32.totalorder %s37, 0
      %p426 = por %p424, %p425
      %p427 = scmp.le.s32.totalorder 1, %s31
      %p428 = scmp.lt.s32.totalorder %s31, 3
      %p429 = pnand %p427, %p428
      %p430 = pneg %p429
      // Predicated region
      $region9: #{tpu_custom_call.1} parent=5 // pred_check
        _
      $region10: #{tpu_custom_call.1} parent=5 // pred_check_branch
        %432 = sbr.rel (%p429) target = $region12
      $region11: #{tpu_custom_call.1} parent=5 // pred_region
        %s433 = ssub.s32 %s31, 1
        // Predicated region
        $region13: #{tpu_custom_call.1} parent=11 // pred_check
          %p434 = pneg %p78
        $region14: #{tpu_custom_call.1} parent=11 // pred_check_branch
          %436 = sbr.rel (%p434) target = $region16
        $region15: #{tpu_custom_call.1} parent=11 // pred_region
          _
        $region16: #{tpu_custom_call.1} parent=11 // pred_fallthru
          _
        // Predicated region
        $region17: #{tpu_custom_call.1} parent=11 // pred_check
          %p437 = pneg %p99
        $region18: #{tpu_custom_call.1} parent=11 // pred_check_branch
          %439 = sbr.rel (%p437) target = $region20
        $region19: #{tpu_custom_call.1} parent=11 // pred_region
          _
        $region20: #{tpu_custom_call.1} parent=11 // pred_fallthru
          _
        // Predicated region
        $region21: #{tpu_custom_call.1} parent=11 // pred_check
          %p440 = pneg %p120
        $region22: #{tpu_custom_call.1} parent=11 // pred_check_branch
          %442 = sbr.rel (%p440) target = $region24
        $region23: #{tpu_custom_call.1} parent=11 // pred_region
          %s444 = ssub.s32 16, 16
          %445 = vsyncadd [#allocation5], %s444
          %s447 = sshll.u32 [#allocation4], 4
          %s448 = int_to_ptr.vmem [resolvable:$true] %s447
          %450 = dma.hbm_to_vmem [thread:$0]  %s3, 16, %s448, [#allocation5]
        $region24: #{tpu_custom_call.1} parent=11 // pred_fallthru
          _
        // Predicated region
        $region25: #{tpu_custom_call.1} parent=11 // pred_check
          %p451 = pneg %p141
        $region26: #{tpu_custom_call.1} parent=11 // pred_check_branch
          %453 = sbr.rel (%p451) target = $region28
        $region27: #{tpu_custom_call.1} parent=11 // pred_region
          %s455 = ssub.s32 16, 16
          %456 = vsyncadd [#allocation8], %s455
          %s458 = sshll.u32 [#allocation7], 4
          %s459 = int_to_ptr.vmem [resolvable:$true] %s458
          %461 = dma.hbm_to_vmem [thread:$0]  %s4, 16, %s459, [#allocation8]
        $region28: #{tpu_custom_call.1} parent=11 // pred_fallthru
          _
        // Predicated region
        $region29: #{tpu_custom_call.1} parent=11 // pred_check
          %p462 = pneg %p162
        $region30: #{tpu_custom_call.1} parent=11 // pred_check_branch
          %464 = sbr.rel (%p462) target = $region32
        $region31: #{tpu_custom_call.1} parent=11 // pred_region
          _
        $region32: #{tpu_custom_call.1} parent=11 // pred_fallthru
          _
        // Predicated region
        $region33: #{tpu_custom_call.1} parent=11 // pred_check
          %p465 = pneg %p183
        $region34: #{tpu_custom_call.1} parent=11 // pred_check_branch
          %467 = sbr.rel (%p465) target = $region36
        $region35: #{tpu_custom_call.1} parent=11 // pred_region
          %s469 = ssub.s32 112, 112
          %470 = vsyncadd [#allocation8], %s469
          %s471 = sshll.u32 [#allocation9], 4
          %s472 = int_to_ptr.vmem [resolvable:$true] %s471
          %477 = dma.hbm_to_vmem [thread:$0]  %s6, 112, %s472, [#allocation8], 16, 16, 1
        $region36: #{tpu_custom_call.1} parent=11 // pred_fallthru
          _
        // Predicated region
        $region37: #{tpu_custom_call.1} parent=11 // pred_check
          %p478 = pneg %p204
        $region38: #{tpu_custom_call.1} parent=11 // pred_check_branch
          %480 = sbr.rel (%p478) target = $region40
        $region39: #{tpu_custom_call.1} parent=11 // pred_region
          _
        $region40: #{tpu_custom_call.1} parent=11 // pred_fallthru
          _
        // Predicated region
        $region41: #{tpu_custom_call.1} parent=11 // pred_check
          %p481 = pneg %p225
        $region42: #{tpu_custom_call.1} parent=11 // pred_check_branch
          %483 = sbr.rel (%p481) target = $region44
        $region43: #{tpu_custom_call.1} parent=11 // pred_region
          %s485 = ssub.s32 112, 112
          %486 = vsyncadd [#allocation11], %s485
          %s487 = sshll.u32 [#allocation10], 4
          %s488 = int_to_ptr.vmem [resolvable:$true] %s487
          %493 = dma.hbm_to_vmem [thread:$0]  %s8, 112, %s488, [#allocation11], 16, 16, 1
        $region44: #{tpu_custom_call.1} parent=11 // pred_fallthru
          _
        // Predicated region
        $region45: #{tpu_custom_call.1} parent=11 // pred_check
          %p494 = pneg %p246
        $region46: #{tpu_custom_call.1} parent=11 // pred_check_branch
          %496 = sbr.rel (%p494) target = $region48
        $region47: #{tpu_custom_call.1} parent=11 // pred_region
          _
        $region48: #{tpu_custom_call.1} parent=11 // pred_fallthru
          _
        // Predicated region
        $region49: #{tpu_custom_call.1} parent=11 // pred_check
          %p497 = pneg %p267
        $region50: #{tpu_custom_call.1} parent=11 // pred_check_branch
          %499 = sbr.rel (%p497) target = $region52
        $region51: #{tpu_custom_call.1} parent=11 // pred_region
          %s501 = ssub.s32 16, 16
          %502 = vsyncadd [#allocation11], %s501
          %s504 = sshll.u32 [#allocation12], 4
          %s505 = int_to_ptr.vmem [resolvable:$true] %s504
          %507 = dma.hbm_to_vmem [thread:$0]  %s10, 16, %s505, [#allocation11]
        $region52: #{tpu_custom_call.1} parent=11 // pred_fallthru
          _
        // Predicated region
        $region53: #{tpu_custom_call.1} parent=11 // pred_check
          %p508 = pneg %p288
        $region54: #{tpu_custom_call.1} parent=11 // pred_check_branch
          %510 = sbr.rel (%p508) target = $region56
        $region55: #{tpu_custom_call.1} parent=11 // pred_region
          %s512 = ssub.s32 16, 16
          %513 = vsyncadd [#allocation14], %s512
          %s515 = sshll.u32 [#allocation13], 4
          %s516 = int_to_ptr.vmem [resolvable:$true] %s515
          %518 = dma.hbm_to_vmem [thread:$0]  %s11, 16, %s516, [#allocation14]
        $region56: #{tpu_custom_call.1} parent=11 // pred_fallthru
          _
        // Predicated region
        $region57: #{tpu_custom_call.1} parent=11 // pred_check
          %p519 = pneg %p309
        $region58: #{tpu_custom_call.1} parent=11 // pred_check_branch
          %521 = sbr.rel (%p519) target = $region60
        $region59: #{tpu_custom_call.1} parent=11 // pred_region
          %s523 = ssub.s32 16, 16
          %524 = vsyncadd [#allocation14], %s523
          %s526 = sshll.u32 [#allocation15], 4
          %s527 = int_to_ptr.vmem [resolvable:$true] %s526
          %529 = dma.hbm_to_vmem [thread:$0]  %s12, 16, %s527, [#allocation14]
        $region60: #{tpu_custom_call.1} parent=11 // pred_fallthru
          _
        // Predicated region
        $region61: #{tpu_custom_call.1} parent=11 // pred_check
          %p530 = pneg %p330
        $region62: #{tpu_custom_call.1} parent=11 // pred_check_branch
          %532 = sbr.rel (%p530) target = $region64
        $region63: #{tpu_custom_call.1} parent=11 // pred_region
          _
        $region64: #{tpu_custom_call.1} parent=11 // pred_fallthru
          _
        // Predicated region
        $region65: #{tpu_custom_call.1} parent=11 // pred_check
          %p533 = pneg %p351
        $region66: #{tpu_custom_call.1} parent=11 // pred_check_branch
          %535 = sbr.rel (%p533) target = $region68
        $region67: #{tpu_custom_call.1} parent=11 // pred_region
          %s537 = ssub.s32 16, 16
          %538 = vsyncadd [#allocation17], %s537
          %s540 = sshll.u32 [#allocation16], 4
          %s541 = int_to_ptr.vmem [resolvable:$true] %s540
          %543 = dma.hbm_to_vmem [thread:$0]  %s14, 16, %s541, [#allocation17]
        $region68: #{tpu_custom_call.1} parent=11 // pred_fallthru
          _
        // Predicated region
        $region69: #{tpu_custom_call.1} parent=11 // pred_check
          %p544 = pneg %p372
        $region70: #{tpu_custom_call.1} parent=11 // pred_check_branch
          %546 = sbr.rel (%p544) target = $region72
        $region71: #{tpu_custom_call.1} parent=11 // pred_region
          _
        $region72: #{tpu_custom_call.1} parent=11 // pred_fallthru
          _
        // Predicated region
        $region73: #{tpu_custom_call.1} parent=11 // pred_check
          %p547 = pneg %p393
        $region74: #{tpu_custom_call.1} parent=11 // pred_check_branch
          %549 = sbr.rel (%p547) target = $region76
        $region75: #{tpu_custom_call.1} parent=11 // pred_region
          _
        $region76: #{tpu_custom_call.1} parent=11 // pred_fallthru
          _
      $region12: #{tpu_custom_call.1} parent=5 // pred_fallthru
        _
      %p550 = scmp.lt.s32.totalorder %s31, 2
      // Predicated region
      $region77: #{tpu_custom_call.1} parent=5 // pred_check
        %p551 = pneg %p550
      $region78: #{tpu_custom_call.1} parent=5 // pred_check_branch
        %553 = sbr.rel (%p551) target = $region80
      $region79: #{tpu_custom_call.1} parent=5 // pred_region
        // Predicated region
        $region81: #{tpu_custom_call.1} parent=79 // pred_check
          %p554 = pneg %p51
        $region82: #{tpu_custom_call.1} parent=79 // pred_check_branch
          %556 = sbr.rel (%p554) target = $region84
        $region83: #{tpu_custom_call.1} parent=79 // pred_region
          %s557 = smul.u32 2, %s31
          %p558 = scmp.lt.s32.totalorder %s557, 3
          %s559 = scalar_select %p558, %s557, 3
          %s560 = smul.addr %s559, 4
          %s561 = smul.addr %s560, 8
          %s562 = scalar_lea.vmem %s0, %s561
          %s563 = smul.u32 2, %s31
        $region84: #{tpu_custom_call.1} parent=79 // pred_fallthru
          _
      $region80: #{tpu_custom_call.1} parent=5 // pred_fallthru
        _
      %p564 = scmp.le.s32.totalorder 1, %s31
      %p565 = scmp.lt.s32.totalorder %s31, 3
      %p566 = pnand %p564, %p565
      %p567 = pneg %p566
      // Predicated region
      $region85: #{tpu_custom_call.1} parent=5 // pred_check
        _
      $region86: #{tpu_custom_call.1} parent=5 // pred_check_branch
        %569 = sbr.rel (%p566) target = $region88
      $region87: #{tpu_custom_call.1} parent=5 // pred_region
        %s570 = ssub.s32 %s31, 1
        // Predicated region
        $region89: #{tpu_custom_call.1} parent=87 // pred_check
          %p571 = pneg %p120
        $region90: #{tpu_custom_call.1} parent=87 // pred_check_branch
          %573 = sbr.rel (%p571) target = $region92
        $region91: #{tpu_custom_call.1} parent=87 // pred_region
          %574 = dma.done [#allocation5], 16
        $region92: #{tpu_custom_call.1} parent=87 // pred_fallthru
          _
        // Predicated region
        $region93: #{tpu_custom_call.1} parent=87 // pred_check
          %p575 = pneg %p141
        $region94: #{tpu_custom_call.1} parent=87 // pred_check_branch
          %577 = sbr.rel (%p575) target = $region96
        $region95: #{tpu_custom_call.1} parent=87 // pred_region
          %578 = dma.done [#allocation8], 16
        $region96: #{tpu_custom_call.1} parent=87 // pred_fallthru
          _
        // Predicated region
        $region97: #{tpu_custom_call.1} parent=87 // pred_check
          %p579 = pneg %p183
        $region98: #{tpu_custom_call.1} parent=87 // pred_check_branch
          %581 = sbr.rel (%p579) target = $region100
        $region99: #{tpu_custom_call.1} parent=87 // pred_region
          %582 = dma.done [#allocation8], 112
        $region100: #{tpu_custom_call.1} parent=87 // pred_fallthru
          _
        // Predicated region
        $region101: #{tpu_custom_call.1} parent=87 // pred_check
          %p583 = pneg %p225
        $region102: #{tpu_custom_call.1} parent=87 // pred_check_branch
          %585 = sbr.rel (%p583) target = $region104
        $region103: #{tpu_custom_call.1} parent=87 // pred_region
          %586 = dma.done [#allocation11], 112
        $region104: #{tpu_custom_call.1} parent=87 // pred_fallthru
          _
        // Predicated region
        $region105: #{tpu_custom_call.1} parent=87 // pred_check
          %p587 = pneg %p267
        $region106: #{tpu_custom_call.1} parent=87 // pred_check_branch
          %589 = sbr.rel (%p587) target = $region108
        $region107: #{tpu_custom_call.1} parent=87 // pred_region
          %590 = dma.done [#allocation11], 16
        $region108: #{tpu_custom_call.1} parent=87 // pred_fallthru
          _
        // Predicated region
        $region109: #{tpu_custom_call.1} parent=87 // pred_check
          %p591 = pneg %p288
        $region110: #{tpu_custom_call.1} parent=87 // pred_check_branch
          %593 = sbr.rel (%p591) target = $region112
        $region111: #{tpu_custom_call.1} parent=87 // pred_region
          %594 = dma.done [#allocation14], 16
        $region112: #{tpu_custom_call.1} parent=87 // pred_fallthru
          _
        // Predicated region
        $region113: #{tpu_custom_call.1} parent=87 // pred_check
          %p595 = pneg %p309
        $region114: #{tpu_custom_call.1} parent=87 // pred_check_branch
          %597 = sbr.rel (%p595) target = $region116
        $region115: #{tpu_custom_call.1} parent=87 // pred_region
          %598 = dma.done [#allocation14], 16
        $region116: #{tpu_custom_call.1} parent=87 // pred_fallthru
          _
        // Predicated region
        $region117: #{tpu_custom_call.1} parent=87 // pred_check
          %p599 = pneg %p351
        $region118: #{tpu_custom_call.1} parent=87 // pred_check_branch
          %601 = sbr.rel (%p599) target = $region120
        $region119: #{tpu_custom_call.1} parent=87 // pred_region
          %602 = dma.done [#allocation17], 16
        $region120: #{tpu_custom_call.1} parent=87 // pred_fallthru
          _
        %s603 = smul.u32 2, %s36
        %p604 = scmp.lt.s32.totalorder %s603, 3
        %s605 = scalar_select %p604, %s603, 3
        %s606 = smul.addr %s605, 4
        %s607 = smul.addr %s606, 8
        %s608 = scalar_lea.vmem %s0, %s607
        %p609 = pneg %p57
        %p610 = pneg %p54
        %p611 = pneg %p78
        %p612 = pneg %p75
        %p613 = pneg %p99
        %p614 = pneg %p96
        %p615 = pneg %p120
        %p616 = pneg %p117
        %p617 = pneg %p141
        %p618 = pneg %p138
        %p619 = pneg %p162
        %p620 = pneg %p159
        %p621 = pneg %p183
        %p622 = pneg %p180
        %p623 = pneg %p204
        %p624 = pneg %p201
        %p625 = pneg %p225
        %p626 = pneg %p222
        %p627 = pneg %p246
        %p628 = pneg %p243
        %p629 = pneg %p267
        %p630 = pneg %p264
        %p631 = pneg %p288
        %p632 = pneg %p285
        %p633 = pneg %p309
        %p634 = pneg %p306
        %p635 = pneg %p330
        %p636 = pneg %p327
        %p637 = pneg %p351
        %p638 = pneg %p348
        %p639 = pneg %p372
        %p640 = pneg %p369
        %p641 = pneg %p393
        %p642 = pneg %p390
        %p643 = pneg %p419
        %p644 = pneg %p416
        %s645 = sand.u32 %s406, 1
        %s646 = scalar_lea.sflag [#allocation6], %s645
        %s647 = sand.u32 %s406, 1
        %s648 = smul.addr %s647, 64
        %s649 = scalar_lea.vmem [#allocation18], %s648
        %s650 = smul.u32 2, %s36
        %p651 = scmp.lt.s32.totalorder %s650, 3
        %s652 = scalar_select %p651, %s650, 3
        %s653 = smul.addr %s652, 4
        %s654 = smul.addr %s653, 8
        %s655 = scalar_lea.vmem %s0, %s654
        %s656 = smul.u32 2, %s36
        %s657 = smul.u32 2, %s36
        %v659 = vld [vmem:[%s655] sm:$0xff]
        %v660 = vld [vmem:[%s655 + $0x8] sm:$0xff]
        %v661 = vld [vmem:[%s655 + $0x10] sm:$0xff]
        %v662 = vld [vmem:[%s655 + $0x18] sm:$0xff]
        %v663 = vld [vmem:[%s655 + $0x20] sm:$0xff]
        %v664 = vld [vmem:[%s655 + $0x28] sm:$0xff]
        %v665 = vld [vmem:[%s655 + $0x30] sm:$0xff]
        %v666 = vld [vmem:[%s655 + $0x38] sm:$0xff]
        %v667 = vpack.c.bf16 %v660, %v659
        %v668 = vpack.c.bf16 %v662, %v661
        %v669 = vpack.c.bf16 %v664, %v663
        %v670 = vpack.c.bf16 %v666, %v665
        %v671 = vld [vmem:[%s1] sm:$0xf]
        %v672 = vld [vmem:[%s1 + $0x4] sm:$0xf]
        %v673 = vld [vmem:[%s1 + $0x8] sm:$0xf]
        %v674 = vld [vmem:[%s1 + $0xc] sm:$0xf]
        %v675 = vld [vmem:[%s1 + $0x10] sm:$0xf]
        %v676 = vld [vmem:[%s1 + $0x14] sm:$0xf]
        %v677 = vld [vmem:[%s1 + $0x18] sm:$0xf]
        %v678 = vld [vmem:[%s1 + $0x1c] sm:$0xf]
        %v679 = vld [vmem:[%s2] sm:$0x1]
        %v681 = vlaneseq
        %v682 = vshrl.u32 %v681, 7
        %v683 = vsub.s32 0, %v682
        %v684 = vrot.slane %v679, %v683
        %v694 = vunpack.c.l.b16 %v671
        %v695 = vunpack.c.l.b16 %v672
        %v696 = vunpack.c.l.b16 %v673
        %v697 = vunpack.c.l.b16 %v674
        %v698 = vunpack.c.l.b16 %v675
        %v699 = vunpack.c.l.b16 %v676
        %v700 = vunpack.c.l.b16 %v677
        %v701 = vunpack.c.l.b16 %v678
        %v702 = vpack.c.b16 %v695, %v694
        %v703 = vpack.c.b16 %v697, %v696
        %v704 = vpack.c.b16 %v699, %v698
        %v705 = vpack.c.b16 %v701, %v700
        %vm710 = vcmask 523264
        %v712 = vsel %vm710, %v667, 0
        %v715 = vsel %vm710, %v668, 0
        %v718 = vsel %vm710, %v669, 0
        %v721 = vsel %vm710, %v670, 0
        %723 = vmatprep.subr.bf16.mxu0 0
        %724 = vmatpush1.bf16.msra.mxu0 %v702
        %725 = vmatprep.subr.bf16.mxu0 0
        %726 = vmatpush1.bf16.msra.mxu0 %v703
        %727 = vmatprep.subr.bf16.mxu0 0
        %728 = vmatpush1.bf16.msra.mxu0 %v704
        %729 = vmatprep.subr.bf16.mxu0 0
        %730 = vmatpush1.bf16.msra.mxu0 %v705
        %731 = vmatprep.subr.bf16.mxu0 0
        %732 = vmatpush1.bf16.msra.mxu0 0
        %733 = vmatprep.subr.bf16.mxu0 0
        %734 = vmatpush1.bf16.msra.mxu0 0
        %735 = vmatprep.subr.bf16.mxu0 0
        %736 = vmatpush1.bf16.msra.mxu0 0
        %737 = vmatprep.subr.bf16.mxu0 0
        %738 = vmatpush1.bf16.msra.mxu0 0
        %739 = vmatprep.subr.bf16.mxu0 0
        %740 = vmatpush1.bf16.msra.mxu0 0
        %741 = vmatprep.subr.bf16.mxu0 0
        %742 = vmatpush1.bf16.msra.mxu0 0
        %743 = vmatprep.subr.bf16.mxu0 0
        %744 = vmatpush1.bf16.msra.mxu0 0
        %745 = vmatprep.subr.bf16.mxu0 0
        %746 = vmatpush1.bf16.msra.mxu0 0
        %747 = vmatprep.subr.bf16.mxu0 0
        %748 = vmatpush1.bf16.msra.mxu0 0
        %749 = vmatprep.subr.bf16.mxu0 0
        %750 = vmatpush1.bf16.msra.mxu0 0
        %751 = vmatprep.subr.bf16.mxu0 0
        %752 = vmatpush1.bf16.msra.mxu0 0
        %753 = vmatprep.subr.bf16.mxu0 0
        %754 = vmatpush1.bf16.msra.mxu0 0
        %755 = vmatprep.mubr.bf16.mxu0 0
        %756 = vmatmul.mubr.bf16.gmra.mrb[0].mxu0 %v712
        %v757 = vpop.f32.mrb[0].mxu0
        %v758 = vadd.f32 %v684, %v757
        %v759 = vpop.f32.mrb[0].mxu0
        %v760 = vpop.f32.mrb[0].mxu0
        %v761 = vadd.f32 %v684, %v760
        %v762 = vpop.f32.mrb[0].mxu0
        %763 = vmatprep.mubr.bf16.mxu0 0
        %764 = vmatmul.mubr.bf16.gmra.mrb[0].mxu0 %v715
        %v765 = vpop.f32.mrb[0].mxu0
        %v766 = vadd.f32 %v684, %v765
        %v767 = vpop.f32.mrb[0].mxu0
        %v768 = vpop.f32.mrb[0].mxu0
        %v769 = vadd.f32 %v684, %v768
        %v770 = vpop.f32.mrb[0].mxu0
        %771 = vmatprep.mubr.bf16.mxu0 0
        %772 = vmatmul.mubr.bf16.gmra.mrb[0].mxu0 %v718
        %v773 = vpop.f32.mrb[0].mxu0
        %v774 = vadd.f32 %v684, %v773
        %v775 = vpop.f32.mrb[0].mxu0
        %v776 = vpop.f32.mrb[0].mxu0
        %v777 = vadd.f32 %v684, %v776
        %v778 = vpop.f32.mrb[0].mxu0
        %779 = vmatprep.mubr.bf16.mxu0 0
        %780 = vmatmul.mubr.bf16.gmra.mrb[0].mxu0 %v721
        %v781 = vpop.f32.mrb[0].mxu0
        %v782 = vadd.f32 %v684, %v781
        %v783 = vpop.f32.mrb[0].mxu0
        %v784 = vpop.f32.mrb[0].mxu0
        %v785 = vadd.f32 %v684, %v784
        %v786 = vpop.f32.mrb[0].mxu0
        %787 = vdwg.mxu0
        %v788 = vmax.f32 %v758, 0.0
        %v789 = vmax.f32 %v761, 0.0
        %v790 = vmax.f32 %v766, 0.0
        %v791 = vmax.f32 %v769, 0.0
        %v792 = vmax.f32 %v774, 0.0
        %v793 = vmax.f32 %v777, 0.0
        %v794 = vmax.f32 %v782, 0.0
        %v795 = vmax.f32 %v785, 0.0
        %v796 = vld [vmem:[#allocation4] sm:$0x1]
        %v798 = vlaneseq
        %v799 = vshrl.u32 %v798, 7
        %v800 = vsub.s32 0, %v799
        %v801 = vrot.slane %v796, %v800
        %v803 = vmul.f32 %v788, %v801
        %v804 = vmul.f32 %v789, %v801
        %v805 = vmul.f32 %v790, %v801
        %v806 = vmul.f32 %v791, %v801
        %v807 = vmul.f32 %v792, %v801
        %v808 = vmul.f32 %v793, %v801
        %v809 = vmul.f32 %v794, %v801
        %v810 = vmul.f32 %v795, %v801
        %v811 = vld [vmem:[#allocation7] sm:$0x1]
        %v813 = vlaneseq
        %v814 = vshrl.u32 %v813, 7
        %v815 = vsub.s32 0, %v814
        %v816 = vrot.slane %v811, %v815
        %v818 = vadd.f32 %v803, %v816
        %v819 = vadd.f32 %v804, %v816
        %v820 = vadd.f32 %v805, %v816
        %v821 = vadd.f32 %v806, %v816
        %v822 = vadd.f32 %v807, %v816
        %v823 = vadd.f32 %v808, %v816
        %v824 = vadd.f32 %v809, %v816
        %v825 = vadd.f32 %v810, %v816
        %v826 = vpack.c.bf16 %v819, %v818
        %v827 = vpack.c.bf16 %v821, %v820
        %v828 = vpack.c.bf16 %v823, %v822
        %v829 = vpack.c.bf16 %v825, %v824
        %830 = vst.msk [vmem:[#allocation2] sm:$0xff] %vm710, %v826
        %831 = vst.msk [vmem:[#allocation2 + $0x8] sm:$0xff] %vm710, %v827
        %832 = vst.msk [vmem:[#allocation2 + $0x10] sm:$0xff] %vm710, %v828
        %833 = vst.msk [vmem:[#allocation2 + $0x18] sm:$0xff] %vm710, %v829
        %vm834 = vcmask 57344
        %835 = vst.msk [vmem:[#allocation3] sm:$0x1] %vm834, 0
        %836 = vst.msk [vmem:[#allocation3 + $0x14] sm:$0x1] %vm834, 0
        %vm837 = vcmask 58369
        %838 = vst.msk [vmem:[#allocation3 + $0x10] sm:$0x2] %vm837, 0
        %839 = vst.msk [vmem:[#allocation3 + $0x24] sm:$0x2] %vm837, 0
        %v840 = vld [vmem:[#allocation2] sm:$0xff]
        %v841 = vld [vmem:[#allocation2 + $0x8] sm:$0xff]
        %v842 = vld [vmem:[#allocation2 + $0x10] sm:$0xff]
        %v843 = vld [vmem:[#allocation2 + $0x18] sm:$0xff]
        %v844 = vunpack.c.l.bf16 %v840
        %v845 = vunpack.c.h.bf16 %v840
        %v846 = vunpack.c.l.bf16 %v841
        %v847 = vunpack.c.h.bf16 %v841
        %v848 = vunpack.c.l.bf16 %v842
        %v849 = vunpack.c.h.bf16 %v842
        %v850 = vunpack.c.l.bf16 %v843
        %v851 = vunpack.c.h.bf16 %v843
        %v852 = vpack.c.bf16 %v845, %v844
        %v853 = vpack.c.bf16 %v847, %v846
        %v854 = vpack.c.bf16 %v849, %v848
        %v855 = vpack.c.bf16 %v851, %v850
        %v860 = vunpack.c.l.b16 %v852
        %v861 = vunpack.c.h.b16 %v852
        %v862 = vunpack.c.l.b16 %v853
        %v863 = vunpack.c.h.b16 %v853
        %v864 = vunpack.c.l.b16 %v854
        %v865 = vunpack.c.h.b16 %v854
        %v866 = vunpack.c.l.b16 %v855
        %v867 = vunpack.c.h.b16 %v855
        %v868 = vpack.c.b16 %v860, %v860
        %v869 = vpack.c.b16 %v861, %v861
        %v870 = vpack.c.b16 %v862, %v862
        %v871 = vpack.c.b16 %v863, %v863
        %v872 = vpack.c.b16 %v864, %v864
        %v873 = vpack.c.b16 %v865, %v865
        %v874 = vpack.c.b16 %v866, %v866
        %v875 = vpack.c.b16 %v867, %v867
        %vm876 = vcmask 1040384
        %vm877 = vcmask 1044484
        %vm878 = vmor %vm876, %vm877
        %v879 = vrot.slane %v868, 7
        %v880 = vrot.slane %v879, 4
        %v881 = vrot.slane %v869, 7
        %v882 = vsel %vm878, %v880, %v881
        %v883 = vrot.slane %v881, 4
        %v884 = vrot.slane %v870, 7
        %v885 = vsel %vm878, %v883, %v884
        %v886 = vrot.slane %v884, 4
        %v887 = vrot.slane %v871, 7
        %v888 = vsel %vm878, %v886, %v887
        %v889 = vrot.slane %v887, 4
        %v890 = vrot.slane %v872, 7
        %v891 = vrot.slane %v890, 4
        %v892 = vrot.slane %v873, 7
        %v893 = vsel %vm878, %v891, %v892
        %v894 = vrot.slane %v892, 4
        %v895 = vrot.slane %v874, 7
        %v896 = vsel %vm878, %v894, %v895
        %v897 = vrot.slane %v895, 4
        %v898 = vrot.slane %v875, 7
        %v899 = vsel %vm878, %v897, %v898
        %v900 = vrot.slane %v898, 4
        %vm911 = vcmask 60417
        %912 = vst.msk [vmem:[#allocation3] sm:$0xe] %vm911, %v879
        %vm913 = vcmask 60416
        %914 = vst.msk [vmem:[#allocation3 + $0x4] sm:$0xf] %vm913, %v882
        %915 = vst.msk [vmem:[#allocation3 + $0x8] sm:$0xf] %vm913, %v885
        %916 = vst.msk [vmem:[#allocation3 + $0xc] sm:$0xf] %vm913, %v888
        %917 = vst.msk [vmem:[#allocation3 + $0x10] sm:$0x1] %vm834, %v889
        %918 = vst.msk [vmem:[#allocation3 + $0x14] sm:$0xe] %vm911, %v890
        %919 = vst.msk [vmem:[#allocation3 + $0x18] sm:$0xf] %vm913, %v893
        %920 = vst.msk [vmem:[#allocation3 + $0x1c] sm:$0xf] %vm913, %v896
        %921 = vst.msk [vmem:[#allocation3 + $0x20] sm:$0xf] %vm913, %v899
        %922 = vst.msk [vmem:[#allocation3 + $0x24] sm:$0x1] %vm834, %v900
        %v923 = vld [vmem:[%s5] sm:$0xf]
        %v924 = vld [vmem:[%s5 + $0x4] sm:$0xf]
        %v925 = vld [vmem:[%s5 + $0x8] sm:$0xf]
        %v926 = vld [vmem:[#allocation9] sm:$0x1]
        %v928 = vlaneseq
        %v929 = vshrl.u32 %v928, 7
        %v930 = vsub.s32 0, %v929
        %v931 = vrot.slane %v926, %v930
        %v933 = vadd.f32 %v931, 0.0
        %v934 = vld [vmem:[#allocation3] sm:$0xf]
        %v935 = vld [vmem:[#allocation3 + $0x4] sm:$0xf]
        %v936 = vld [vmem:[#allocation3 + $0x8] sm:$0xf]
        %v937 = vld [vmem:[#allocation3 + $0xc] sm:$0xf]
        %v938 = vld [vmem:[#allocation3 + $0x14] sm:$0xf]
        %v939 = vld [vmem:[#allocation3 + $0x18] sm:$0xf]
        %v940 = vld [vmem:[#allocation3 + $0x1c] sm:$0xf]
        %v941 = vld [vmem:[#allocation3 + $0x20] sm:$0xf]
        %v950 = vunpack.c.l.b16 %v934
        %v951 = vunpack.c.l.b16 %v935
        %v952 = vunpack.c.l.b16 %v936
        %v953 = vunpack.c.l.b16 %v937
        %v954 = vunpack.c.l.b16 %v938
        %v955 = vunpack.c.l.b16 %v939
        %v956 = vunpack.c.l.b16 %v940
        %v957 = vunpack.c.l.b16 %v941
        %v958 = vpack.c.b16 %v951, %v950
        %v959 = vpack.c.b16 %v953, %v952
        %v960 = vpack.c.b16 %v955, %v954
        %v961 = vpack.c.b16 %v957, %v956
        %vm962 = vcmask 64512
        %v964 = vsel %vm962, %v958, 0
        %v967 = vsel %vm962, %v959, 0
        %v970 = vsel %vm962, %v960, 0
        %v973 = vsel %vm962, %v961, 0
        %vm975 = vcmask 1043456
        %v977 = vsel %vm975, %v923, 0
        %979 = vmatprep.subr.bf16.mxu0 0
        %980 = vmatpush1.bf16.msra.mxu0 %v977
        %981 = vmatprep.subr.bf16.mxu0 0
        %982 = vmatpush1.bf16.msra.mxu0 0
        %983 = vmatprep.subr.bf16.mxu0 0
        %984 = vmatpush1.bf16.msra.mxu0 0
        %985 = vmatprep.subr.bf16.mxu0 0
        %986 = vmatpush1.bf16.msra.mxu0 0
        %987 = vmatprep.subr.bf16.mxu0 0
        %988 = vmatpush1.bf16.msra.mxu0 0
        %989 = vmatprep.subr.bf16.mxu0 0
        %990 = vmatpush1.bf16.msra.mxu0 0
        %991 = vmatprep.subr.bf16.mxu0 0
        %992 = vmatpush1.bf16.msra.mxu0 0
        %993 = vmatprep.subr.bf16.mxu0 0
        %994 = vmatpush1.bf16.msra.mxu0 0
        %995 = vmatprep.subr.bf16.mxu0 0
        %996 = vmatpush1.bf16.msra.mxu0 0
        %997 = vmatprep.subr.bf16.mxu0 0
        %998 = vmatpush1.bf16.msra.mxu0 0
        %999 = vmatprep.subr.bf16.mxu0 0
        %1000 = vmatpush1.bf16.msra.mxu0 0
        %1001 = vmatprep.subr.bf16.mxu0 0
        %1002 = vmatpush1.bf16.msra.mxu0 0
        %1003 = vmatprep.subr.bf16.mxu0 0
        %1004 = vmatpush1.bf16.msra.mxu0 0
        %1005 = vmatprep.subr.bf16.mxu0 0
        %1006 = vmatpush1.bf16.msra.mxu0 0
        %1007 = vmatprep.subr.bf16.mxu0 0
        %1008 = vmatpush1.bf16.msra.mxu0 0
        %1009 = vmatprep.subr.bf16.mxu0 0
        %1010 = vmatpush1.bf16.msra.mxu0 0
        %1011 = vmatprep.mubr.bf16.mxu0 0
        %1012 = vmatmul.mubr.bf16.gmra.mrb[0].mxu0 %v964
        %v1013 = vpop.f32.mrb[0].mxu0
        %v1014 = vadd.f32 0.0, %v1013
        %v1015 = vpop.f32.mrb[0].mxu0
        %v1016 = vpop.f32.mrb[0].mxu0
        %v1017 = vadd.f32 0.0, %v1016
        %v1018 = vpop.f32.mrb[0].mxu0
        %1019 = vmatprep.mubr.bf16.mxu0 0
        %1020 = vmatmul.mubr.bf16.gmra.mrb[0].mxu0 %v967
        %v1021 = vpop.f32.mrb[0].mxu0
        %v1022 = vadd.f32 0.0, %v1021
        %v1023 = vpop.f32.mrb[0].mxu0
        %v1024 = vpop.f32.mrb[0].mxu0
        %v1025 = vadd.f32 0.0, %v1024
        %v1026 = vpop.f32.mrb[0].mxu0
        %1027 = vmatprep.mubr.bf16.mxu0 0
        %1028 = vmatmul.mubr.bf16.gmra.mrb[0].mxu0 %v970
        %v1029 = vpop.f32.mrb[0].mxu0
        %v1030 = vadd.f32 0.0, %v1029
        %v1031 = vpop.f32.mrb[0].mxu0
        %v1032 = vpop.f32.mrb[0].mxu0
        %v1033 = vadd.f32 0.0, %v1032
        %v1034 = vpop.f32.mrb[0].mxu0
        %1035 = vmatprep.mubr.bf16.mxu0 0
        %1036 = vmatmul.mubr.bf16.gmra.mrb[0].mxu0 %v973
        %v1037 = vpop.f32.mrb[0].mxu0
        %v1038 = vadd.f32 0.0, %v1037
        %v1039 = vpop.f32.mrb[0].mxu0
        %v1040 = vpop.f32.mrb[0].mxu0
        %v1041 = vadd.f32 0.0, %v1040
        %v1042 = vpop.f32.mrb[0].mxu0
        %1043 = vdwg.mxu0
        %v1044 = vadd.f32 %v933, %v1014
        %v1045 = vadd.f32 %v933, %v1017
        %v1046 = vadd.f32 %v933, %v1022
        %v1047 = vadd.f32 %v933, %v1025
        %v1048 = vadd.f32 %v933, %v1030
        %v1049 = vadd.f32 %v933, %v1033
        %v1050 = vadd.f32 %v933, %v1038
        %v1051 = vadd.f32 %v933, %v1041
        %v1052 = vld [vmem:[#allocation3] sm:$0xe]
        %v1053 = vld [vmem:[#allocation3 + $0x4] sm:$0xf]
        %v1054 = vld [vmem:[#allocation3 + $0x8] sm:$0xf]
        %v1055 = vld [vmem:[#allocation3 + $0xc] sm:$0xf]
        %v1056 = vld [vmem:[#allocation3 + $0x10] sm:$0x1]
        %v1057 = vld [vmem:[#allocation3 + $0x14] sm:$0xe]
        %v1058 = vld [vmem:[#allocation3 + $0x18] sm:$0xf]
        %v1059 = vld [vmem:[#allocation3 + $0x1c] sm:$0xf]
        %v1060 = vld [vmem:[#allocation3 + $0x20] sm:$0xf]
        %v1061 = vld [vmem:[#allocation3 + $0x24] sm:$0x1]
        %vm1072 = vcmask 1042432
        %vm1073 = vcmask 1046532
        %vm1074 = vmor %vm1072, %vm1073
        %v1075 = vrot.slane %v1052, 5
        %v1076 = vrot.slane %v1075, 4
        %v1077 = vrot.slane %v1053, 5
        %v1078 = vsel %vm1074, %v1076, %v1077
        %v1079 = vrot.slane %v1077, 4
        %v1080 = vrot.slane %v1054, 5
        %v1081 = vsel %vm1074, %v1079, %v1080
        %v1082 = vrot.slane %v1080, 4
        %v1083 = vrot.slane %v1055, 5
        %v1084 = vsel %vm1074, %v1082, %v1083
        %v1085 = vrot.slane %v1083, 4
        %v1086 = vrot.slane %v1056, 5
        %v1087 = vsel %vm1074, %v1085, %v1086
        %v1088 = vrot.slane %v1057, 5
        %v1089 = vrot.slane %v1088, 4
        %v1090 = vrot.slane %v1058, 5
        %v1091 = vsel %vm1074, %v1089, %v1090
        %v1092 = vrot.slane %v1090, 4
        %v1093 = vrot.slane %v1059, 5
        %v1094 = vsel %vm1074, %v1092, %v1093
        %v1095 = vrot.slane %v1093, 4
        %v1096 = vrot.slane %v1060, 5
        %v1097 = vsel %vm1074, %v1095, %v1096
        %v1098 = vrot.slane %v1096, 4
        %v1099 = vrot.slane %v1061, 5
        %v1100 = vsel %vm1074, %v1098, %v1099
        %v1101 = vunpack.c.l.b16 %v1078
        %v1102 = vunpack.c.l.b16 %v1081
        %v1103 = vunpack.c.l.b16 %v1084
        %v1104 = vunpack.c.l.b16 %v1087
        %v1105 = vunpack.c.l.b16 %v1091
        %v1106 = vunpack.c.l.b16 %v1094
        %v1107 = vunpack.c.l.b16 %v1097
        %v1108 = vunpack.c.l.b16 %v1100
        %v1109 = vpack.c.b16 %v1102, %v1101
        %v1110 = vpack.c.b16 %v1104, %v1103
        %v1111 = vpack.c.b16 %v1106, %v1105
        %v1112 = vpack.c.b16 %v1108, %v1107
        %v1114 = vsel %vm962, %v1109, 0
        %v1117 = vsel %vm962, %v1110, 0
        %v1120 = vsel %vm962, %v1111, 0
        %v1123 = vsel %vm962, %v1112, 0
        %v1126 = vsel %vm975, %v924, 0
        %1128 = vmatprep.subr.bf16.mxu0 0
        %1129 = vmatpush1.bf16.msra.mxu0 %v1126
        %1130 = vmatprep.subr.bf16.mxu0 0
        %1131 = vmatpush1.bf16.msra.mxu0 0
        %1132 = vmatprep.subr.bf16.mxu0 0
        %1133 = vmatpush1.bf16.msra.mxu0 0
        %1134 = vmatprep.subr.bf16.mxu0 0
        %1135 = vmatpush1.bf16.msra.mxu0 0
        %1136 = vmatprep.subr.bf16.mxu0 0
        %1137 = vmatpush1.bf16.msra.mxu0 0
        %1138 = vmatprep.subr.bf16.mxu0 0
        %1139 = vmatpush1.bf16.msra.mxu0 0
        %1140 = vmatprep.subr.bf16.mxu0 0
        %1141 = vmatpush1.bf16.msra.mxu0 0
        %1142 = vmatprep.subr.bf16.mxu0 0
        %1143 = vmatpush1.bf16.msra.mxu0 0
        %1144 = vmatprep.subr.bf16.mxu0 0
        %1145 = vmatpush1.bf16.msra.mxu0 0
        %1146 = vmatprep.subr.bf16.mxu0 0
        %1147 = vmatpush1.bf16.msra.mxu0 0
        %1148 = vmatprep.subr.bf16.mxu0 0
        %1149 = vmatpush1.bf16.msra.mxu0 0
        %1150 = vmatprep.subr.bf16.mxu0 0
        %1151 = vmatpush1.bf16.msra.mxu0 0
        %1152 = vmatprep.subr.bf16.mxu0 0
        %1153 = vmatpush1.bf16.msra.mxu0 0
        %1154 = vmatprep.subr.bf16.mxu0 0
        %1155 = vmatpush1.bf16.msra.mxu0 0
        %1156 = vmatprep.subr.bf16.mxu0 0
        %1157 = vmatpush1.bf16.msra.mxu0 0
        %1158 = vmatprep.subr.bf16.mxu0 0
        %1159 = vmatpush1.bf16.msra.mxu0 0
        %1160 = vmatprep.mubr.bf16.mxu0 0
        %1161 = vmatmul.mubr.bf16.gmra.mrb[0].mxu0 %v1114
        %v1162 = vpop.f32.mrb[0].mxu0
        %v1163 = vadd.f32 0.0, %v1162
        %v1164 = vpop.f32.mrb[0].mxu0
        %v1165 = vpop.f32.mrb[0].mxu0
        %v1166 = vadd.f32 0.0, %v1165
        %v1167 = vpop.f32.mrb[0].mxu0
        %1168 = vmatprep.mubr.bf16.mxu0 0
        %1169 = vmatmul.mubr.bf16.gmra.mrb[0].mxu0 %v1117
        %v1170 = vpop.f32.mrb[0].mxu0
        %v1171 = vadd.f32 0.0, %v1170
        %v1172 = vpop.f32.mrb[0].mxu0
        %v1173 = vpop.f32.mrb[0].mxu0
        %v1174 = vadd.f32 0.0, %v1173
        %v1175 = vpop.f32.mrb[0].mxu0
        %1176 = vmatprep.mubr.bf16.mxu0 0
        %1177 = vmatmul.mubr.bf16.gmra.mrb[0].mxu0 %v1120
        %v1178 = vpop.f32.mrb[0].mxu0
        %v1179 = vadd.f32 0.0, %v1178
        %v1180 = vpop.f32.mrb[0].mxu0
        %v1181 = vpop.f32.mrb[0].mxu0
        %v1182 = vadd.f32 0.0, %v1181
        %v1183 = vpop.f32.mrb[0].mxu0
        %1184 = vmatprep.mubr.bf16.mxu0 0
        %1185 = vmatmul.mubr.bf16.gmra.mrb[0].mxu0 %v1123
        %v1186 = vpop.f32.mrb[0].mxu0
        %v1187 = vadd.f32 0.0, %v1186
        %v1188 = vpop.f32.mrb[0].mxu0
        %v1189 = vpop.f32.mrb[0].mxu0
        %v1190 = vadd.f32 0.0, %v1189
        %v1191 = vpop.f32.mrb[0].mxu0
        %1192 = vdwg.mxu0
        %v1193 = vadd.f32 %v1044, %v1163
        %v1194 = vadd.f32 %v1045, %v1166
        %v1195 = vadd.f32 %v1046, %v1171
        %v1196 = vadd.f32 %v1047, %v1174
        %v1197 = vadd.f32 %v1048, %v1179
        %v1198 = vadd.f32 %v1049, %v1182
        %v1199 = vadd.f32 %v1050, %v1187
        %v1200 = vadd.f32 %v1051, %v1190
        %v1201 = vld [vmem:[#allocation3] sm:$0xc]
        %v1202 = vld [vmem:[#allocation3 + $0x10] sm:$0x3]
        %v1203 = vld [vmem:[#allocation3 + $0x14] sm:$0xc]
        %v1204 = vld [vmem:[#allocation3 + $0x24] sm:$0x3]
        %vm1209 = vcmask 1041408
        %vm1210 = vcmask 1045508
        %vm1211 = vmor %vm1209, %vm1210
        %v1212 = vrot.slane %v1201, 6
        %v1213 = vrot.slane %v1212, 4
        %v1214 = vrot.slane %v1053, 6
        %v1215 = vsel %vm1211, %v1213, %v1214
        %v1216 = vrot.slane %v1214, 4
        %v1217 = vrot.slane %v1054, 6
        %v1218 = vsel %vm1211, %v1216, %v1217
        %v1219 = vrot.slane %v1217, 4
        %v1220 = vrot.slane %v1055, 6
        %v1221 = vsel %vm1211, %v1219, %v1220
        %v1222 = vrot.slane %v1220, 4
        %v1223 = vrot.slane %v1202, 6
        %v1224 = vsel %vm1211, %v1222, %v1223
        %v1225 = vrot.slane %v1203, 6
        %v1226 = vrot.slane %v1225, 4
        %v1227 = vrot.slane %v1058, 6
        %v1228 = vsel %vm1211, %v1226, %v1227
        %v1229 = vrot.slane %v1227, 4
        %v1230 = vrot.slane %v1059, 6
        %v1231 = vsel %vm1211, %v1229, %v1230
        %v1232 = vrot.slane %v1230, 4
        %v1233 = vrot.slane %v1060, 6
        %v1234 = vsel %vm1211, %v1232, %v1233
        %v1235 = vrot.slane %v1233, 4
        %v1236 = vrot.slane %v1204, 6
        %v1237 = vsel %vm1211, %v1235, %v1236
        %v1238 = vunpack.c.l.b16 %v1215
        %v1239 = vunpack.c.l.b16 %v1218
        %v1240 = vunpack.c.l.b16 %v1221
        %v1241 = vunpack.c.l.b16 %v1224
        %v1242 = vunpack.c.l.b16 %v1228
        %v1243 = vunpack.c.l.b16 %v1231
        %v1244 = vunpack.c.l.b16 %v1234
        %v1245 = vunpack.c.l.b16 %v1237
        %v1246 = vpack.c.b16 %v1239, %v1238
        %v1247 = vpack.c.b16 %v1241, %v1240
        %v1248 = vpack.c.b16 %v1243, %v1242
        %v1249 = vpack.c.b16 %v1245, %v1244
        %v1251 = vsel %vm962, %v1246, 0
        %v1254 = vsel %vm962, %v1247, 0
        %v1257 = vsel %vm962, %v1248, 0
        %v1260 = vsel %vm962, %v1249, 0
        %v1263 = vsel %vm975, %v925, 0
        %1265 = vmatprep.subr.bf16.mxu0 0
        %1266 = vmatpush1.bf16.msra.mxu0 %v1263
        %1267 = vmatprep.subr.bf16.mxu0 0
        %1268 = vmatpush1.bf16.msra.mxu0 0
        %1269 = vmatprep.subr.bf16.mxu0 0
        %1270 = vmatpush1.bf16.msra.mxu0 0
        %1271 = vmatprep.subr.bf16.mxu0 0
        %1272 = vmatpush1.bf16.msra.mxu0 0
        %1273 = vmatprep.subr.bf16.mxu0 0
        %1274 = vmatpush1.bf16.msra.mxu0 0
        %1275 = vmatprep.subr.bf16.mxu0 0
        %1276 = vmatpush1.bf16.msra.mxu0 0
        %1277 = vmatprep.subr.bf16.mxu0 0
        %1278 = vmatpush1.bf16.msra.mxu0 0
        %1279 = vmatprep.subr.bf16.mxu0 0
        %1280 = vmatpush1.bf16.msra.mxu0 0
        %1281 = vmatprep.subr.bf16.mxu0 0
        %1282 = vmatpush1.bf16.msra.mxu0 0
        %1283 = vmatprep.subr.bf16.mxu0 0
        %1284 = vmatpush1.bf16.msra.mxu0 0
        %1285 = vmatprep.subr.bf16.mxu0 0
        %1286 = vmatpush1.bf16.msra.mxu0 0
        %1287 = vmatprep.subr.bf16.mxu0 0
        %1288 = vmatpush1.bf16.msra.mxu0 0
        %1289 = vmatprep.subr.bf16.mxu0 0
        %1290 = vmatpush1.bf16.msra.mxu0 0
        %1291 = vmatprep.subr.bf16.mxu0 0
        %1292 = vmatpush1.bf16.msra.mxu0 0
        %1293 = vmatprep.subr.bf16.mxu0 0
        %1294 = vmatpush1.bf16.msra.mxu0 0
        %1295 = vmatprep.subr.bf16.mxu0 0
        %1296 = vmatpush1.bf16.msra.mxu0 0
        %1297 = vmatprep.mubr.bf16.mxu0 0
        %1298 = vmatmul.mubr.bf16.gmra.mrb[0].mxu0 %v1251
        %v1299 = vpop.f32.mrb[0].mxu0
        %v1300 = vadd.f32 0.0, %v1299
        %v1301 = vpop.f32.mrb[0].mxu0
        %v1302 = vpop.f32.mrb[0].mxu0
        %v1303 = vadd.f32 0.0, %v1302
        %v1304 = vpop.f32.mrb[0].mxu0
        %1305 = vmatprep.mubr.bf16.mxu0 0
        %1306 = vmatmul.mubr.bf16.gmra.mrb[0].mxu0 %v1254
        %v1307 = vpop.f32.mrb[0].mxu0
        %v1308 = vadd.f32 0.0, %v1307
        %v1309 = vpop.f32.mrb[0].mxu0
        %v1310 = vpop.f32.mrb[0].mxu0
        %v1311 = vadd.f32 0.0, %v1310
        %v1312 = vpop.f32.mrb[0].mxu0
        %1313 = vmatprep.mubr.bf16.mxu0 0
        %1314 = vmatmul.mubr.bf16.gmra.mrb[0].mxu0 %v1257
        %v1315 = vpop.f32.mrb[0].mxu0
        %v1316 = vadd.f32 0.0, %v1315
        %v1317 = vpop.f32.mrb[0].mxu0
        %v1318 = vpop.f32.mrb[0].mxu0
        %v1319 = vadd.f32 0.0, %v1318
        %v1320 = vpop.f32.mrb[0].mxu0
        %1321 = vmatprep.mubr.bf16.mxu0 0
        %1322 = vmatmul.mubr.bf16.gmra.mrb[0].mxu0 %v1260
        %v1323 = vpop.f32.mrb[0].mxu0
        %v1324 = vadd.f32 0.0, %v1323
        %v1325 = vpop.f32.mrb[0].mxu0
        %v1326 = vpop.f32.mrb[0].mxu0
        %v1327 = vadd.f32 0.0, %v1326
        %v1328 = vpop.f32.mrb[0].mxu0
        %1329 = vdwg.mxu0
        %v1330 = vadd.f32 %v1193, %v1300
        %v1331 = vadd.f32 %v1194, %v1303
        %v1332 = vadd.f32 %v1195, %v1308
        %v1333 = vadd.f32 %v1196, %v1311
        %v1334 = vadd.f32 %v1197, %v1316
        %v1335 = vadd.f32 %v1198, %v1319
        %v1336 = vadd.f32 %v1199, %v1324
        %v1337 = vadd.f32 %v1200, %v1327
        %v1338 = vmax.f32 %v1330, 0.0
        %v1339 = vmax.f32 %v1331, 0.0
        %v1340 = vmax.f32 %v1332, 0.0
        %v1341 = vmax.f32 %v1333, 0.0
        %v1342 = vmax.f32 %v1334, 0.0
        %v1343 = vmax.f32 %v1335, 0.0
        %v1344 = vmax.f32 %v1336, 0.0
        %v1345 = vmax.f32 %v1337, 0.0
        %v1346 = vld [vmem:[%s7] sm:$0x1]
        %v1348 = vlaneseq
        %v1349 = vshrl.u32 %v1348, 7
        %v1350 = vsub.s32 0, %v1349
        %v1351 = vrot.slane %v1346, %v1350
        %v1353 = vmul.f32 %v1338, %v1351
        %v1354 = vmul.f32 %v1339, %v1351
        %v1355 = vmul.f32 %v1340, %v1351
        %v1356 = vmul.f32 %v1341, %v1351
        %v1357 = vmul.f32 %v1342, %v1351
        %v1358 = vmul.f32 %v1343, %v1351
        %v1359 = vmul.f32 %v1344, %v1351
        %v1360 = vmul.f32 %v1345, %v1351
        %v1361 = vld [vmem:[#allocation10] sm:$0x1]
        %v1363 = vlaneseq
        %v1364 = vshrl.u32 %v1363, 7
        %v1365 = vsub.s32 0, %v1364
        %v1366 = vrot.slane %v1361, %v1365
        %v1368 = vadd.f32 %v1353, %v1366
        %v1369 = vadd.f32 %v1354, %v1366
        %v1370 = vadd.f32 %v1355, %v1366
        %v1371 = vadd.f32 %v1356, %v1366
        %v1372 = vadd.f32 %v1357, %v1366
        %v1373 = vadd.f32 %v1358, %v1366
        %v1374 = vadd.f32 %v1359, %v1366
        %v1375 = vadd.f32 %v1360, %v1366
        %v1376 = vpack.c.bf16 %v1369, %v1368
        %v1377 = vpack.c.bf16 %v1371, %v1370
        %v1378 = vpack.c.bf16 %v1373, %v1372
        %v1379 = vpack.c.bf16 %v1375, %v1374
        %1380 = vst.msk [vmem:[#allocation2] sm:$0xff] %vm962, %v1376
        %1381 = vst.msk [vmem:[#allocation2 + $0x8] sm:$0xff] %vm962, %v1377
        %1382 = vst.msk [vmem:[#allocation2 + $0x10] sm:$0xff] %vm962, %v1378
        %1383 = vst.msk [vmem:[#allocation2 + $0x18] sm:$0xff] %vm962, %v1379
        %v1384 = vld [vmem:[#allocation2] sm:$0xff]
        %v1385 = vld [vmem:[#allocation2 + $0x8] sm:$0xff]
        %v1386 = vld [vmem:[#allocation2 + $0x10] sm:$0xff]
        %v1387 = vld [vmem:[#allocation2 + $0x18] sm:$0xff]
        %v1388 = vunpack.c.l.bf16 %v1384
        %v1389 = vunpack.c.h.bf16 %v1384
        %v1390 = vunpack.c.l.bf16 %v1385
        %v1391 = vunpack.c.h.bf16 %v1385
        %v1392 = vunpack.c.l.bf16 %v1386
        %v1393 = vunpack.c.h.bf16 %v1386
        %v1394 = vunpack.c.l.bf16 %v1387
        %v1395 = vunpack.c.h.bf16 %v1387
        %1404 = vrot.lane.b32.xlu0 %v1388, 120
        %v1405 = vpop.permute.xlu0 %1404
        %1406 = vrot.lane.b32.xlu0 %v1389, 120
        %v1407 = vpop.permute.xlu0 %1406
        %1408 = vrot.lane.b32.xlu0 %v1390, 120
        %v1409 = vpop.permute.xlu0 %1408
        %1410 = vrot.lane.b32.xlu0 %v1391, 120
        %v1411 = vpop.permute.xlu0 %1410
        %1412 = vrot.lane.b32.xlu0 %v1392, 120
        %v1413 = vpop.permute.xlu0 %1412
        %1414 = vrot.lane.b32.xlu0 %v1393, 120
        %v1415 = vpop.permute.xlu0 %1414
        %1416 = vrot.lane.b32.xlu0 %v1394, 120
        %v1417 = vpop.permute.xlu0 %1416
        %1418 = vrot.lane.b32.xlu0 %v1395, 120
        %v1419 = vpop.permute.xlu0 %1418
        %v1428 = vadd.f32 %v844, %v1405
        %v1429 = vadd.f32 %v845, %v1407
        %v1430 = vadd.f32 %v846, %v1409
        %v1431 = vadd.f32 %v847, %v1411
        %v1432 = vadd.f32 %v848, %v1413
        %v1433 = vadd.f32 %v849, %v1415
        %v1434 = vadd.f32 %v850, %v1417
        %v1435 = vadd.f32 %v851, %v1419
        %v1436 = vpack.c.bf16 %v1429, %v1428
        %v1437 = vpack.c.bf16 %v1431, %v1430
        %v1438 = vpack.c.bf16 %v1433, %v1432
        %v1439 = vpack.c.bf16 %v1435, %v1434
        %v1444 = vunpack.c.l.b16 %v1436
        %v1445 = vunpack.c.h.b16 %v1436
        %v1446 = vunpack.c.l.b16 %v1437
        %v1447 = vunpack.c.h.b16 %v1437
        %v1448 = vunpack.c.l.b16 %v1438
        %v1449 = vunpack.c.h.b16 %v1438
        %v1450 = vunpack.c.l.b16 %v1439
        %v1451 = vunpack.c.h.b16 %v1439
        %v1452 = vpack.c.b16 %v1444, %v1444
        %v1453 = vpack.c.b16 %v1445, %v1445
        %v1454 = vpack.c.b16 %v1446, %v1446
        %v1455 = vpack.c.b16 %v1447, %v1447
        %v1456 = vpack.c.b16 %v1448, %v1448
        %v1457 = vpack.c.b16 %v1449, %v1449
        %v1458 = vpack.c.b16 %v1450, %v1450
        %v1459 = vpack.c.b16 %v1451, %v1451
        %v1460 = vrot.slane %v1452, 7
        %v1461 = vrot.slane %v1460, 4
        %v1462 = vrot.slane %v1453, 7
        %v1463 = vsel %vm878, %v1461, %v1462
        %v1464 = vrot.slane %v1462, 4
        %v1465 = vrot.slane %v1454, 7
        %v1466 = vsel %vm878, %v1464, %v1465
        %v1467 = vrot.slane %v1465, 4
        %v1468 = vrot.slane %v1455, 7
        %v1469 = vsel %vm878, %v1467, %v1468
        %v1470 = vrot.slane %v1468, 4
        %v1471 = vrot.slane %v1456, 7
        %v1472 = vrot.slane %v1471, 4
        %v1473 = vrot.slane %v1457, 7
        %v1474 = vsel %vm878, %v1472, %v1473
        %v1475 = vrot.slane %v1473, 4
        %v1476 = vrot.slane %v1458, 7
        %v1477 = vsel %vm878, %v1475, %v1476
        %v1478 = vrot.slane %v1476, 4
        %v1479 = vrot.slane %v1459, 7
        %v1480 = vsel %vm878, %v1478, %v1479
        %v1481 = vrot.slane %v1479, 4
        %1492 = vst.msk [vmem:[#allocation3] sm:$0xe] %vm911, %v1460
        %1493 = vst.msk [vmem:[#allocation3 + $0x4] sm:$0xf] %vm913, %v1463
        %1494 = vst.msk [vmem:[#allocation3 + $0x8] sm:$0xf] %vm913, %v1466
        %1495 = vst.msk [vmem:[#allocation3 + $0xc] sm:$0xf] %vm913, %v1469
        %1496 = vst.msk [vmem:[#allocation3 + $0x10] sm:$0x1] %vm834, %v1470
        %1497 = vst.msk [vmem:[#allocation3 + $0x14] sm:$0xe] %vm911, %v1471
        %1498 = vst.msk [vmem:[#allocation3 + $0x18] sm:$0xf] %vm913, %v1474
        %1499 = vst.msk [vmem:[#allocation3 + $0x1c] sm:$0xf] %vm913, %v1477
        %1500 = vst.msk [vmem:[#allocation3 + $0x20] sm:$0xf] %vm913, %v1480
        %1501 = vst.msk [vmem:[#allocation3 + $0x24] sm:$0x1] %vm834, %v1481
        %s1502 = scalar_lea.vmem %s5, 12
        %v1503 = vld [vmem:[%s1502] sm:$0xf]
        %v1504 = vld [vmem:[%s1502 + $0x4] sm:$0xf]
        %v1505 = vld [vmem:[%s1502 + $0x8] sm:$0xf]
        %s1506 = scalar_lea.vmem [#allocation9], 1
        %v1507 = vld [vmem:[%s1506] sm:$0x1]
        %v1509 = vlaneseq
        %v1510 = vshrl.u32 %v1509, 7
        %v1511 = vsub.s32 0, %v1510
        %v1512 = vrot.slane %v1507, %v1511
        %v1514 = vadd.f32 %v1512, 0.0
        %v1515 = vld [vmem:[#allocation3] sm:$0xf]
        %v1516 = vld [vmem:[#allocation3 + $0x4] sm:$0xf]
        %v1517 = vld [vmem:[#allocation3 + $0x8] sm:$0xf]
        %v1518 = vld [vmem:[#allocation3 + $0xc] sm:$0xf]
        %v1519 = vld [vmem:[#allocation3 + $0x14] sm:$0xf]
        %v1520 = vld [vmem:[#allocation3 + $0x18] sm:$0xf]
        %v1521 = vld [vmem:[#allocation3 + $0x1c] sm:$0xf]
        %v1522 = vld [vmem:[#allocation3 + $0x20] sm:$0xf]
        %v1531 = vunpack.c.l.b16 %v1515
        %v1532 = vunpack.c.l.b16 %v1516
        %v1533 = vunpack.c.l.b16 %v1517
        %v1534 = vunpack.c.l.b16 %v1518
        %v1535 = vunpack.c.l.b16 %v1519
        %v1536 = vunpack.c.l.b16 %v1520
        %v1537 = vunpack.c.l.b16 %v1521
        %v1538 = vunpack.c.l.b16 %v1522
        %v1539 = vpack.c.b16 %v1532, %v1531
        %v1540 = vpack.c.b16 %v1534, %v1533
        %v1541 = vpack.c.b16 %v1536, %v1535
        %v1542 = vpack.c.b16 %v1538, %v1537
        %v1544 = vsel %vm962, %v1539, 0
        %v1547 = vsel %vm962, %v1540, 0
        %v1550 = vsel %vm962, %v1541, 0
        %v1553 = vsel %vm962, %v1542, 0
        %v1556 = vsel %vm975, %v1503, 0
        %1558 = vmatprep.subr.bf16.mxu0 0
        %1559 = vmatpush1.bf16.msra.mxu0 %v1556
        %1560 = vmatprep.subr.bf16.mxu0 0
        %1561 = vmatpush1.bf16.msra.mxu0 0
        %1562 = vmatprep.subr.bf16.mxu0 0
        %1563 = vmatpush1.bf16.msra.mxu0 0
        %1564 = vmatprep.subr.bf16.mxu0 0
        %1565 = vmatpush1.bf16.msra.mxu0 0
        %1566 = vmatprep.subr.bf16.mxu0 0
        %1567 = vmatpush1.bf16.msra.mxu0 0
        %1568 = vmatprep.subr.bf16.mxu0 0
        %1569 = vmatpush1.bf16.msra.mxu0 0
        %1570 = vmatprep.subr.bf16.mxu0 0
        %1571 = vmatpush1.bf16.msra.mxu0 0
        %1572 = vmatprep.subr.bf16.mxu0 0
        %1573 = vmatpush1.bf16.msra.mxu0 0
        %1574 = vmatprep.subr.bf16.mxu0 0
        %1575 = vmatpush1.bf16.msra.mxu0 0
        %1576 = vmatprep.subr.bf16.mxu0 0
        %1577 = vmatpush1.bf16.msra.mxu0 0
        %1578 = vmatprep.subr.bf16.mxu0 0
        %1579 = vmatpush1.bf16.msra.mxu0 0
        %1580 = vmatprep.subr.bf16.mxu0 0
        %1581 = vmatpush1.bf16.msra.mxu0 0
        %1582 = vmatprep.subr.bf16.mxu0 0
        %1583 = vmatpush1.bf16.msra.mxu0 0
        %1584 = vmatprep.subr.bf16.mxu0 0
        %1585 = vmatpush1.bf16.msra.mxu0 0
        %1586 = vmatprep.subr.bf16.mxu0 0
        %1587 = vmatpush1.bf16.msra.mxu0 0
        %1588 = vmatprep.subr.bf16.mxu0 0
        %1589 = vmatpush1.bf16.msra.mxu0 0
        %1590 = vmatprep.mubr.bf16.mxu0 0
        %1591 = vmatmul.mubr.bf16.gmra.mrb[0].mxu0 %v1544
        %v1592 = vpop.f32.mrb[0].mxu0
        %v1593 = vadd.f32 0.0, %v1592
        %v1594 = vpop.f32.mrb[0].mxu0
        %v1595 = vpop.f32.mrb[0].mxu0
        %v1596 = vadd.f32 0.0, %v1595
        %v1597 = vpop.f32.mrb[0].mxu0
        %1598 = vmatprep.mubr.bf16.mxu0 0
        %1599 = vmatmul.mubr.bf16.gmra.mrb[0].mxu0 %v1547
        %v1600 = vpop.f32.mrb[0].mxu0
        %v1601 = vadd.f32 0.0, %v1600
        %v1602 = vpop.f32.mrb[0].mxu0
        %v1603 = vpop.f32.mrb[0].mxu0
        %v1604 = vadd.f32 0.0, %v1603
        %v1605 = vpop.f32.mrb[0].mxu0
        %1606 = vmatprep.mubr.bf16.mxu0 0
        %1607 = vmatmul.mubr.bf16.gmra.mrb[0].mxu0 %v1550
        %v1608 = vpop.f32.mrb[0].mxu0
        %v1609 = vadd.f32 0.0, %v1608
        %v1610 = vpop.f32.mrb[0].mxu0
        %v1611 = vpop.f32.mrb[0].mxu0
        %v1612 = vadd.f32 0.0, %v1611
        %v1613 = vpop.f32.mrb[0].mxu0
        %1614 = vmatprep.mubr.bf16.mxu0 0
        %1615 = vmatmul.mubr.bf16.gmra.mrb[0].mxu0 %v1553
        %v1616 = vpop.f32.mrb[0].mxu0
        %v1617 = vadd.f32 0.0, %v1616
        %v1618 = vpop.f32.mrb[0].mxu0
        %v1619 = vpop.f32.mrb[0].mxu0
        %v1620 = vadd.f32 0.0, %v1619
        %v1621 = vpop.f32.mrb[0].mxu0
        %1622 = vdwg.mxu0
        %v1623 = vadd.f32 %v1514, %v1593
        %v1624 = vadd.f32 %v1514, %v1596
        %v1625 = vadd.f32 %v1514, %v1601
        %v1626 = vadd.f32 %v1514, %v1604
        %v1627 = vadd.f32 %v1514, %v1609
        %v1628 = vadd.f32 %v1514, %v1612
        %v1629 = vadd.f32 %v1514, %v1617
        %v1630 = vadd.f32 %v1514, %v1620
        %v1631 = vld [vmem:[#allocation3] sm:$0xe]
        %v1632 = vld [vmem:[#allocation3 + $0x4] sm:$0xf]
        %v1633 = vld [vmem:[#allocation3 + $0x8] sm:$0xf]
        %v1634 = vld [vmem:[#allocation3 + $0xc] sm:$0xf]
        %v1635 = vld [vmem:[#allocation3 + $0x10] sm:$0x1]
        %v1636 = vld [vmem:[#allocation3 + $0x14] sm:$0xe]
        %v1637 = vld [vmem:[#allocation3 + $0x18] sm:$0xf]
        %v1638 = vld [vmem:[#allocation3 + $0x1c] sm:$0xf]
        %v1639 = vld [vmem:[#allocation3 + $0x20] sm:$0xf]
        %v1640 = vld [vmem:[#allocation3 + $0x24] sm:$0x1]
        %v1651 = vrot.slane %v1631, 5
        %v1652 = vrot.slane %v1651, 4
        %v1653 = vrot.slane %v1632, 5
        %v1654 = vsel %vm1074, %v1652, %v1653
        %v1655 = vrot.slane %v1653, 4
        %v1656 = vrot.slane %v1633, 5
        %v1657 = vsel %vm1074, %v1655, %v1656
        %v1658 = vrot.slane %v1656, 4
        %v1659 = vrot.slane %v1634, 5
        %v1660 = vsel %vm1074, %v1658, %v1659
        %v1661 = vrot.slane %v1659, 4
        %v1662 = vrot.slane %v1635, 5
        %v1663 = vsel %vm1074, %v1661, %v1662
        %v1664 = vrot.slane %v1636, 5
        %v1665 = vrot.slane %v1664, 4
        %v1666 = vrot.slane %v1637, 5
        %v1667 = vsel %vm1074, %v1665, %v1666
        %v1668 = vrot.slane %v1666, 4
        %v1669 = vrot.slane %v1638, 5
        %v1670 = vsel %vm1074, %v1668, %v1669
        %v1671 = vrot.slane %v1669, 4
        %v1672 = vrot.slane %v1639, 5
        %v1673 = vsel %vm1074, %v1671, %v1672
        %v1674 = vrot.slane %v1672, 4
        %v1675 = vrot.slane %v1640, 5
        %v1676 = vsel %vm1074, %v1674, %v1675
        %v1677 = vunpack.c.l.b16 %v1654
        %v1678 = vunpack.c.l.b16 %v1657
        %v1679 = vunpack.c.l.b16 %v1660
        %v1680 = vunpack.c.l.b16 %v1663
        %v1681 = vunpack.c.l.b16 %v1667
        %v1682 = vunpack.c.l.b16 %v1670
        %v1683 = vunpack.c.l.b16 %v1673
        %v1684 = vunpack.c.l.b16 %v1676
        %v1685 = vpack.c.b16 %v1678, %v1677
        %v1686 = vpack.c.b16 %v1680, %v1679
        %v1687 = vpack.c.b16 %v1682, %v1681
        %v1688 = vpack.c.b16 %v1684, %v1683
        %v1690 = vsel %vm962, %v1685, 0
        %v1693 = vsel %vm962, %v1686, 0
        %v1696 = vsel %vm962, %v1687, 0
        %v1699 = vsel %vm962, %v1688, 0
        %v1702 = vsel %vm975, %v1504, 0
        %1704 = vmatprep.subr.bf16.mxu0 0
        %1705 = vmatpush1.bf16.msra.mxu0 %v1702
        %1706 = vmatprep.subr.bf16.mxu0 0
        %1707 = vmatpush1.bf16.msra.mxu0 0
        %1708 = vmatprep.subr.bf16.mxu0 0
        %1709 = vmatpush1.bf16.msra.mxu0 0
        %1710 = vmatprep.subr.bf16.mxu0 0
        %1711 = vmatpush1.bf16.msra.mxu0 0
        %1712 = vmatprep.subr.bf16.mxu0 0
        %1713 = vmatpush1.bf16.msra.mxu0 0
        %1714 = vmatprep.subr.bf16.mxu0 0
        %1715 = vmatpush1.bf16.msra.mxu0 0
        %1716 = vmatprep.subr.bf16.mxu0 0
        %1717 = vmatpush1.bf16.msra.mxu0 0
        %1718 = vmatprep.subr.bf16.mxu0 0
        %1719 = vmatpush1.bf16.msra.mxu0 0
        %1720 = vmatprep.subr.bf16.mxu0 0
        %1721 = vmatpush1.bf16.msra.mxu0 0
        %1722 = vmatprep.subr.bf16.mxu0 0
        %1723 = vmatpush1.bf16.msra.mxu0 0
        %1724 = vmatprep.subr.bf16.mxu0 0
        %1725 = vmatpush1.bf16.msra.mxu0 0
        %1726 = vmatprep.subr.bf16.mxu0 0
        %1727 = vmatpush1.bf16.msra.mxu0 0
        %1728 = vmatprep.subr.bf16.mxu0 0
        %1729 = vmatpush1.bf16.msra.mxu0 0
        %1730 = vmatprep.subr.bf16.mxu0 0
        %1731 = vmatpush1.bf16.msra.mxu0 0
        %1732 = vmatprep.subr.bf16.mxu0 0
        %1733 = vmatpush1.bf16.msra.mxu0 0
        %1734 = vmatprep.subr.bf16.mxu0 0
        %1735 = vmatpush1.bf16.msra.mxu0 0
        %1736 = vmatprep.mubr.bf16.mxu0 0
        %1737 = vmatmul.mubr.bf16.gmra.mrb[0].mxu0 %v1690
        %v1738 = vpop.f32.mrb[0].mxu0
        %v1739 = vadd.f32 0.0, %v1738
        %v1740 = vpop.f32.mrb[0].mxu0
        %v1741 = vpop.f32.mrb[0].mxu0
        %v1742 = vadd.f32 0.0, %v1741
        %v1743 = vpop.f32.mrb[0].mxu0
        %1744 = vmatprep.mubr.bf16.mxu0 0
        %1745 = vmatmul.mubr.bf16.gmra.mrb[0].mxu0 %v1693
        %v1746 = vpop.f32.mrb[0].mxu0
        %v1747 = vadd.f32 0.0, %v1746
        %v1748 = vpop.f32.mrb[0].mxu0
        %v1749 = vpop.f32.mrb[0].mxu0
        %v1750 = vadd.f32 0.0, %v1749
        %v1751 = vpop.f32.mrb[0].mxu0
        %1752 = vmatprep.mubr.bf16.mxu0 0
        %1753 = vmatmul.mubr.bf16.gmra.mrb[0].mxu0 %v1696
        %v1754 = vpop.f32.mrb[0].mxu0
        %v1755 = vadd.f32 0.0, %v1754
        %v1756 = vpop.f32.mrb[0].mxu0
        %v1757 = vpop.f32.mrb[0].mxu0
        %v1758 = vadd.f32 0.0, %v1757
        %v1759 = vpop.f32.mrb[0].mxu0
        %1760 = vmatprep.mubr.bf16.mxu0 0
        %1761 = vmatmul.mubr.bf16.gmra.mrb[0].mxu0 %v1699
        %v1762 = vpop.f32.mrb[0].mxu0
        %v1763 = vadd.f32 0.0, %v1762
        %v1764 = vpop.f32.mrb[0].mxu0
        %v1765 = vpop.f32.mrb[0].mxu0
        %v1766 = vadd.f32 0.0, %v1765
        %v1767 = vpop.f32.mrb[0].mxu0
        %1768 = vdwg.mxu0
        %v1769 = vadd.f32 %v1623, %v1739
        %v1770 = vadd.f32 %v1624, %v1742
        %v1771 = vadd.f32 %v1625, %v1747
        %v1772 = vadd.f32 %v1626, %v1750
        %v1773 = vadd.f32 %v1627, %v1755
        %v1774 = vadd.f32 %v1628, %v1758
        %v1775 = vadd.f32 %v1629, %v1763
        %v1776 = vadd.f32 %v1630, %v1766
        %v1777 = vld [vmem:[#allocation3] sm:$0xc]
        %v1778 = vld [vmem:[#allocation3 + $0x10] sm:$0x3]
        %v1779 = vld [vmem:[#allocation3 + $0x14] sm:$0xc]
        %v1780 = vld [vmem:[#allocation3 + $0x24] sm:$0x3]
        %v1785 = vrot.slane %v1777, 6
        %v1786 = vrot.slane %v1785, 4
        %v1787 = vrot.slane %v1632, 6
        %v1788 = vsel %vm1211, %v1786, %v1787
        %v1789 = vrot.slane %v1787, 4
        %v1790 = vrot.slane %v1633, 6
        %v1791 = vsel %vm1211, %v1789, %v1790
        %v1792 = vrot.slane %v1790, 4
        %v1793 = vrot.slane %v1634, 6
        %v1794 = vsel %vm1211, %v1792, %v1793
        %v1795 = vrot.slane %v1793, 4
        %v1796 = vrot.slane %v1778, 6
        %v1797 = vsel %vm1211, %v1795, %v1796
        %v1798 = vrot.slane %v1779, 6
        %v1799 = vrot.slane %v1798, 4
        %v1800 = vrot.slane %v1637, 6
        %v1801 = vsel %vm1211, %v1799, %v1800
        %v1802 = vrot.slane %v1800, 4
        %v1803 = vrot.slane %v1638, 6
        %v1804 = vsel %vm1211, %v1802, %v1803
        %v1805 = vrot.slane %v1803, 4
        %v1806 = vrot.slane %v1639, 6
        %v1807 = vsel %vm1211, %v1805, %v1806
        %v1808 = vrot.slane %v1806, 4
        %v1809 = vrot.slane %v1780, 6
        %v1810 = vsel %vm1211, %v1808, %v1809
        %v1811 = vunpack.c.l.b16 %v1788
        %v1812 = vunpack.c.l.b16 %v1791
        %v1813 = vunpack.c.l.b16 %v1794
        %v1814 = vunpack.c.l.b16 %v1797
        %v1815 = vunpack.c.l.b16 %v1801
        %v1816 = vunpack.c.l.b16 %v1804
        %v1817 = vunpack.c.l.b16 %v1807
        %v1818 = vunpack.c.l.b16 %v1810
        %v1819 = vpack.c.b16 %v1812, %v1811
        %v1820 = vpack.c.b16 %v1814, %v1813
        %v1821 = vpack.c.b16 %v1816, %v1815
        %v1822 = vpack.c.b16 %v1818, %v1817
        %v1824 = vsel %vm962, %v1819, 0
        %v1827 = vsel %vm962, %v1820, 0
        %v1830 = vsel %vm962, %v1821, 0
        %v1833 = vsel %vm962, %v1822, 0
        %v1836 = vsel %vm975, %v1505, 0
        %1838 = vmatprep.subr.bf16.mxu0 0
        %1839 = vmatpush1.bf16.msra.mxu0 %v1836
        %1840 = vmatprep.subr.bf16.mxu0 0
        %1841 = vmatpush1.bf16.msra.mxu0 0
        %1842 = vmatprep.subr.bf16.mxu0 0
        %1843 = vmatpush1.bf16.msra.mxu0 0
        %1844 = vmatprep.subr.bf16.mxu0 0
        %1845 = vmatpush1.bf16.msra.mxu0 0
        %1846 = vmatprep.subr.bf16.mxu0 0
        %1847 = vmatpush1.bf16.msra.mxu0 0
        %1848 = vmatprep.subr.bf16.mxu0 0
        %1849 = vmatpush1.bf16.msra.mxu0 0
        %1850 = vmatprep.subr.bf16.mxu0 0
        %1851 = vmatpush1.bf16.msra.mxu0 0
        %1852 = vmatprep.subr.bf16.mxu0 0
        %1853 = vmatpush1.bf16.msra.mxu0 0
        %1854 = vmatprep.subr.bf16.mxu0 0
        %1855 = vmatpush1.bf16.msra.mxu0 0
        %1856 = vmatprep.subr.bf16.mxu0 0
        %1857 = vmatpush1.bf16.msra.mxu0 0
        %1858 = vmatprep.subr.bf16.mxu0 0
        %1859 = vmatpush1.bf16.msra.mxu0 0
        %1860 = vmatprep.subr.bf16.mxu0 0
        %1861 = vmatpush1.bf16.msra.mxu0 0
        %1862 = vmatprep.subr.bf16.mxu0 0
        %1863 = vmatpush1.bf16.msra.mxu0 0
        %1864 = vmatprep.subr.bf16.mxu0 0
        %1865 = vmatpush1.bf16.msra.mxu0 0
        %1866 = vmatprep.subr.bf16.mxu0 0
        %1867 = vmatpush1.bf16.msra.mxu0 0
        %1868 = vmatprep.subr.bf16.mxu0 0
        %1869 = vmatpush1.bf16.msra.mxu0 0
        %1870 = vmatprep.mubr.bf16.mxu0 0
        %1871 = vmatmul.mubr.bf16.gmra.mrb[0].mxu0 %v1824
        %v1872 = vpop.f32.mrb[0].mxu0
        %v1873 = vadd.f32 0.0, %v1872
        %v1874 = vpop.f32.mrb[0].mxu0
        %v1875 = vpop.f32.mrb[0].mxu0
        %v1876 = vadd.f32 0.0, %v1875
        %v1877 = vpop.f32.mrb[0].mxu0
        %1878 = vmatprep.mubr.bf16.mxu0 0
        %1879 = vmatmul.mubr.bf16.gmra.mrb[0].mxu0 %v1827
        %v1880 = vpop.f32.mrb[0].mxu0
        %v1881 = vadd.f32 0.0, %v1880
        %v1882 = vpop.f32.mrb[0].mxu0
        %v1883 = vpop.f32.mrb[0].mxu0
        %v1884 = vadd.f32 0.0, %v1883
        %v1885 = vpop.f32.mrb[0].mxu0
        %1886 = vmatprep.mubr.bf16.mxu0 0
        %1887 = vmatmul.mubr.bf16.gmra.mrb[0].mxu0 %v1830
        %v1888 = vpop.f32.mrb[0].mxu0
        %v1889 = vadd.f32 0.0, %v1888
        %v1890 = vpop.f32.mrb[0].mxu0
        %v1891 = vpop.f32.mrb[0].mxu0
        %v1892 = vadd.f32 0.0, %v1891
        %v1893 = vpop.f32.mrb[0].mxu0
        %1894 = vmatprep.mubr.bf16.mxu0 0
        %1895 = vmatmul.mubr.bf16.gmra.mrb[0].mxu0 %v1833
        %v1896 = vpop.f32.mrb[0].mxu0
        %v1897 = vadd.f32 0.0, %v1896
        %v1898 = vpop.f32.mrb[0].mxu0
        %v1899 = vpop.f32.mrb[0].mxu0
        %v1900 = vadd.f32 0.0, %v1899
        %v1901 = vpop.f32.mrb[0].mxu0
        %1902 = vdwg.mxu0
        %v1903 = vadd.f32 %v1769, %v1873
        %v1904 = vadd.f32 %v1770, %v1876
        %v1905 = vadd.f32 %v1771, %v1881
        %v1906 = vadd.f32 %v1772, %v1884
        %v1907 = vadd.f32 %v1773, %v1889
        %v1908 = vadd.f32 %v1774, %v1892
        %v1909 = vadd.f32 %v1775, %v1897
        %v1910 = vadd.f32 %v1776, %v1900
        %v1911 = vmax.f32 %v1903, 0.0
        %v1912 = vmax.f32 %v1904, 0.0
        %v1913 = vmax.f32 %v1905, 0.0
        %v1914 = vmax.f32 %v1906, 0.0
        %v1915 = vmax.f32 %v1907, 0.0
        %v1916 = vmax.f32 %v1908, 0.0
        %v1917 = vmax.f32 %v1909, 0.0
        %v1918 = vmax.f32 %v1910, 0.0
        %s1919 = scalar_lea.vmem %s7, 1
        %v1920 = vld [vmem:[%s1919] sm:$0x1]
        %v1922 = vlaneseq
        %v1923 = vshrl.u32 %v1922, 7
        %v1924 = vsub.s32 0, %v1923
        %v1925 = vrot.slane %v1920, %v1924
        %v1927 = vmul.f32 %v1911, %v1925
        %v1928 = vmul.f32 %v1912, %v1925
        %v1929 = vmul.f32 %v1913, %v1925
        %v1930 = vmul.f32 %v1914, %v1925
        %v1931 = vmul.f32 %v1915, %v1925
        %v1932 = vmul.f32 %v1916, %v1925
        %v1933 = vmul.f32 %v1917, %v1925
        %v1934 = vmul.f32 %v1918, %v1925
        %s1935 = scalar_lea.vmem [#allocation10], 1
        %v1936 = vld [vmem:[%s1935] sm:$0x1]
        %v1938 = vlaneseq
        %v1939 = vshrl.u32 %v1938, 7
        %v1940 = vsub.s32 0, %v1939
        %v1941 = vrot.slane %v1936, %v1940
        %v1943 = vadd.f32 %v1927, %v1941
        %v1944 = vadd.f32 %v1928, %v1941
        %v1945 = vadd.f32 %v1929, %v1941
        %v1946 = vadd.f32 %v1930, %v1941
        %v1947 = vadd.f32 %v1931, %v1941
        %v1948 = vadd.f32 %v1932, %v1941
        %v1949 = vadd.f32 %v1933, %v1941
        %v1950 = vadd.f32 %v1934, %v1941
        %v1951 = vpack.c.bf16 %v1944, %v1943
        %v1952 = vpack.c.bf16 %v1946, %v1945
        %v1953 = vpack.c.bf16 %v1948, %v1947
        %v1954 = vpack.c.bf16 %v1950, %v1949
        %1959 = vrot.lane.b32.xlu0 %v1951, 8
        %v1960 = vpop.permute.xlu0 %1959
        %1961 = vrot.lane.b32.xlu0 %v1952, 8
        %v1962 = vpop.permute.xlu0 %1961
        %1963 = vrot.lane.b32.xlu0 %v1953, 8
        %v1964 = vpop.permute.xlu0 %1963
        %1965 = vrot.lane.b32.xlu0 %v1954, 8
        %v1966 = vpop.permute.xlu0 %1965
        %vm1971 = vcmask 130112
        %1972 = vst.msk [vmem:[#allocation2] sm:$0xff] %vm1971, %v1960
        %1973 = vst.msk [vmem:[#allocation2 + $0x8] sm:$0xff] %vm1971, %v1962
        %1974 = vst.msk [vmem:[#allocation2 + $0x10] sm:$0xff] %vm1971, %v1964
        %1975 = vst.msk [vmem:[#allocation2 + $0x18] sm:$0xff] %vm1971, %v1966
        %v1976 = vld [vmem:[#allocation2] sm:$0xff]
        %v1977 = vld [vmem:[#allocation2 + $0x8] sm:$0xff]
        %v1978 = vld [vmem:[#allocation2 + $0x10] sm:$0xff]
        %v1979 = vld [vmem:[#allocation2 + $0x18] sm:$0xff]
        %v1980 = vunpack.c.l.bf16 %v1976
        %v1981 = vunpack.c.h.bf16 %v1976
        %v1982 = vunpack.c.l.bf16 %v1977
        %v1983 = vunpack.c.h.bf16 %v1977
        %v1984 = vunpack.c.l.bf16 %v1978
        %v1985 = vunpack.c.h.bf16 %v1978
        %v1986 = vunpack.c.l.bf16 %v1979
        %v1987 = vunpack.c.h.bf16 %v1979
        %1996 = vrot.lane.b32.xlu0 %v1980, 112
        %v1997 = vpop.permute.xlu0 %1996
        %1998 = vrot.lane.b32.xlu0 %v1981, 112
        %v1999 = vpop.permute.xlu0 %1998
        %2000 = vrot.lane.b32.xlu0 %v1982, 112
        %v2001 = vpop.permute.xlu0 %2000
        %2002 = vrot.lane.b32.xlu0 %v1983, 112
        %v2003 = vpop.permute.xlu0 %2002
        %2004 = vrot.lane.b32.xlu0 %v1984, 112
        %v2005 = vpop.permute.xlu0 %2004
        %2006 = vrot.lane.b32.xlu0 %v1985, 112
        %v2007 = vpop.permute.xlu0 %2006
        %2008 = vrot.lane.b32.xlu0 %v1986, 112
        %v2009 = vpop.permute.xlu0 %2008
        %2010 = vrot.lane.b32.xlu0 %v1987, 112
        %v2011 = vpop.permute.xlu0 %2010
        %v2020 = vadd.f32 %v1428, %v1997
        %v2021 = vadd.f32 %v1429, %v1999
        %v2022 = vadd.f32 %v1430, %v2001
        %v2023 = vadd.f32 %v1431, %v2003
        %v2024 = vadd.f32 %v1432, %v2005
        %v2025 = vadd.f32 %v1433, %v2007
        %v2026 = vadd.f32 %v1434, %v2009
        %v2027 = vadd.f32 %v1435, %v2011
        %v2028 = vpack.c.bf16 %v2021, %v2020
        %v2029 = vpack.c.bf16 %v2023, %v2022
        %v2030 = vpack.c.bf16 %v2025, %v2024
        %v2031 = vpack.c.bf16 %v2027, %v2026
        %v2036 = vunpack.c.l.b16 %v2028
        %v2037 = vunpack.c.h.b16 %v2028
        %v2038 = vunpack.c.l.b16 %v2029
        %v2039 = vunpack.c.h.b16 %v2029
        %v2040 = vunpack.c.l.b16 %v2030
        %v2041 = vunpack.c.h.b16 %v2030
        %v2042 = vunpack.c.l.b16 %v2031
        %v2043 = vunpack.c.h.b16 %v2031
        %v2044 = vpack.c.b16 %v2036, %v2036
        %v2045 = vpack.c.b16 %v2037, %v2037
        %v2046 = vpack.c.b16 %v2038, %v2038
        %v2047 = vpack.c.b16 %v2039, %v2039
        %v2048 = vpack.c.b16 %v2040, %v2040
        %v2049 = vpack.c.b16 %v2041, %v2041
        %v2050 = vpack.c.b16 %v2042, %v2042
        %v2051 = vpack.c.b16 %v2043, %v2043
        %v2052 = vrot.slane %v2044, 7
        %v2053 = vrot.slane %v2052, 4
        %v2054 = vrot.slane %v2045, 7
        %v2055 = vsel %vm878, %v2053, %v2054
        %v2056 = vrot.slane %v2054, 4
        %v2057 = vrot.slane %v2046, 7
        %v2058 = vsel %vm878, %v2056, %v2057
        %v2059 = vrot.slane %v2057, 4
        %v2060 = vrot.slane %v2047, 7
        %v2061 = vsel %vm878, %v2059, %v2060
        %v2062 = vrot.slane %v2060, 4
        %v2063 = vrot.slane %v2048, 7
        %v2064 = vrot.slane %v2063, 4
        %v2065 = vrot.slane %v2049, 7
        %v2066 = vsel %vm878, %v2064, %v2065
        %v2067 = vrot.slane %v2065, 4
        %v2068 = vrot.slane %v2050, 7
        %v2069 = vsel %vm878, %v2067, %v2068
        %v2070 = vrot.slane %v2068, 4
        %v2071 = vrot.slane %v2051, 7
        %v2072 = vsel %vm878, %v2070, %v2071
        %v2073 = vrot.slane %v2071, 4
        %2084 = vst.msk [vmem:[#allocation3] sm:$0xe] %vm911, %v2052
        %2085 = vst.msk [vmem:[#allocation3 + $0x4] sm:$0xf] %vm913, %v2055
        %2086 = vst.msk [vmem:[#allocation3 + $0x8] sm:$0xf] %vm913, %v2058
        %2087 = vst.msk [vmem:[#allocation3 + $0xc] sm:$0xf] %vm913, %v2061
        %2088 = vst.msk [vmem:[#allocation3 + $0x10] sm:$0x1] %vm834, %v2062
        %2089 = vst.msk [vmem:[#allocation3 + $0x14] sm:$0xe] %vm911, %v2063
        %2090 = vst.msk [vmem:[#allocation3 + $0x18] sm:$0xf] %vm913, %v2066
        %2091 = vst.msk [vmem:[#allocation3 + $0x1c] sm:$0xf] %vm913, %v2069
        %2092 = vst.msk [vmem:[#allocation3 + $0x20] sm:$0xf] %vm913, %v2072
        %2093 = vst.msk [vmem:[#allocation3 + $0x24] sm:$0x1] %vm834, %v2073
        %s2094 = scalar_lea.vmem %s5, 24
        %v2095 = vld [vmem:[%s2094] sm:$0xf]
        %v2096 = vld [vmem:[%s2094 + $0x4] sm:$0xf]
        %v2097 = vld [vmem:[%s2094 + $0x8] sm:$0xf]
        %s2098 = scalar_lea.vmem [#allocation9], 2
        %v2099 = vld [vmem:[%s2098] sm:$0x1]
        %v2101 = vlaneseq
        %v2102 = vshrl.u32 %v2101, 7
        %v2103 = vsub.s32 0, %v2102
        %v2104 = vrot.slane %v2099, %v2103
        %v2106 = vadd.f32 %v2104, 0.0
        %v2107 = vld [vmem:[#allocation3] sm:$0xf]
        %v2108 = vld [vmem:[#allocation3 + $0x4] sm:$0xf]
        %v2109 = vld [vmem:[#allocation3 + $0x8] sm:$0xf]
        %v2110 = vld [vmem:[#allocation3 + $0xc] sm:$0xf]
        %v2111 = vld [vmem:[#allocation3 + $0x14] sm:$0xf]
        %v2112 = vld [vmem:[#allocation3 + $0x18] sm:$0xf]
        %v2113 = vld [vmem:[#allocation3 + $0x1c] sm:$0xf]
        %v2114 = vld [vmem:[#allocation3 + $0x20] sm:$0xf]
        %v2123 = vunpack.c.l.b16 %v2107
        %v2124 = vunpack.c.l.b16 %v2108
        %v2125 = vunpack.c.l.b16 %v2109
        %v2126 = vunpack.c.l.b16 %v2110
        %v2127 = vunpack.c.l.b16 %v2111
        %v2128 = vunpack.c.l.b16 %v2112
        %v2129 = vunpack.c.l.b16 %v2113
        %v2130 = vunpack.c.l.b16 %v2114
        %v2131 = vpack.c.b16 %v2124, %v2123
        %v2132 = vpack.c.b16 %v2126, %v2125
        %v2133 = vpack.c.b16 %v2128, %v2127
        %v2134 = vpack.c.b16 %v2130, %v2129
        %v2136 = vsel %vm962, %v2131, 0
        %v2139 = vsel %vm962, %v2132, 0
        %v2142 = vsel %vm962, %v2133, 0
        %v2145 = vsel %vm962, %v2134, 0
        %v2148 = vsel %vm975, %v2095, 0
        %2150 = vmatprep.subr.bf16.mxu0 0
        %2151 = vmatpush1.bf16.msra.mxu0 %v2148
        %2152 = vmatprep.subr.bf16.mxu0 0
        %2153 = vmatpush1.bf16.msra.mxu0 0
        %2154 = vmatprep.subr.bf16.mxu0 0
        %2155 = vmatpush1.bf16.msra.mxu0 0
        %2156 = vmatprep.subr.bf16.mxu0 0
        %2157 = vmatpush1.bf16.msra.mxu0 0
        %2158 = vmatprep.subr.bf16.mxu0 0
        %2159 = vmatpush1.bf16.msra.mxu0 0
        %2160 = vmatprep.subr.bf16.mxu0 0
        %2161 = vmatpush1.bf16.msra.mxu0 0
        %2162 = vmatprep.subr.bf16.mxu0 0
        %2163 = vmatpush1.bf16.msra.mxu0 0
        %2164 = vmatprep.subr.bf16.mxu0 0
        %2165 = vmatpush1.bf16.msra.mxu0 0
        %2166 = vmatprep.subr.bf16.mxu0 0
        %2167 = vmatpush1.bf16.msra.mxu0 0
        %2168 = vmatprep.subr.bf16.mxu0 0
        %2169 = vmatpush1.bf16.msra.mxu0 0
        %2170 = vmatprep.subr.bf16.mxu0 0
        %2171 = vmatpush1.bf16.msra.mxu0 0
        %2172 = vmatprep.subr.bf16.mxu0 0
        %2173 = vmatpush1.bf16.msra.mxu0 0
        %2174 = vmatprep.subr.bf16.mxu0 0
        %2175 = vmatpush1.bf16.msra.mxu0 0
        %2176 = vmatprep.subr.bf16.mxu0 0
        %2177 = vmatpush1.bf16.msra.mxu0 0
        %2178 = vmatprep.subr.bf16.mxu0 0
        %2179 = vmatpush1.bf16.msra.mxu0 0
        %2180 = vmatprep.subr.bf16.mxu0 0
        %2181 = vmatpush1.bf16.msra.mxu0 0
        %2182 = vmatprep.mubr.bf16.mxu0 0
        %2183 = vmatmul.mubr.bf16.gmra.mrb[0].mxu0 %v2136
        %v2184 = vpop.f32.mrb[0].mxu0
        %v2185 = vadd.f32 0.0, %v2184
        %v2186 = vpop.f32.mrb[0].mxu0
        %v2187 = vpop.f32.mrb[0].mxu0
        %v2188 = vadd.f32 0.0, %v2187
        %v2189 = vpop.f32.mrb[0].mxu0
        %2190 = vmatprep.mubr.bf16.mxu0 0
        %2191 = vmatmul.mubr.bf16.gmra.mrb[0].mxu0 %v2139
        %v2192 = vpop.f32.mrb[0].mxu0
        %v2193 = vadd.f32 0.0, %v2192
        %v2194 = vpop.f32.mrb[0].mxu0
        %v2195 = vpop.f32.mrb[0].mxu0
        %v2196 = vadd.f32 0.0, %v2195
        %v2197 = vpop.f32.mrb[0].mxu0
        %2198 = vmatprep.mubr.bf16.mxu0 0
        %2199 = vmatmul.mubr.bf16.gmra.mrb[0].mxu0 %v2142
        %v2200 = vpop.f32.mrb[0].mxu0
        %v2201 = vadd.f32 0.0, %v2200
        %v2202 = vpop.f32.mrb[0].mxu0
        %v2203 = vpop.f32.mrb[0].mxu0
        %v2204 = vadd.f32 0.0, %v2203
        %v2205 = vpop.f32.mrb[0].mxu0
        %2206 = vmatprep.mubr.bf16.mxu0 0
        %2207 = vmatmul.mubr.bf16.gmra.mrb[0].mxu0 %v2145
        %v2208 = vpop.f32.mrb[0].mxu0
        %v2209 = vadd.f32 0.0, %v2208
        %v2210 = vpop.f32.mrb[0].mxu0
        %v2211 = vpop.f32.mrb[0].mxu0
        %v2212 = vadd.f32 0.0, %v2211
        %v2213 = vpop.f32.mrb[0].mxu0
        %2214 = vdwg.mxu0
        %v2215 = vadd.f32 %v2106, %v2185
        %v2216 = vadd.f32 %v2106, %v2188
        %v2217 = vadd.f32 %v2106, %v2193
        %v2218 = vadd.f32 %v2106, %v2196
        %v2219 = vadd.f32 %v2106, %v2201
        %v2220 = vadd.f32 %v2106, %v2204
        %v2221 = vadd.f32 %v2106, %v2209
        %v2222 = vadd.f32 %v2106, %v2212
        %v2223 = vld [vmem:[#allocation3] sm:$0xe]
        %v2224 = vld [vmem:[#allocation3 + $0x4] sm:$0xf]
        %v2225 = vld [vmem:[#allocation3 + $0x8] sm:$0xf]
        %v2226 = vld [vmem:[#allocation3 + $0xc] sm:$0xf]
        %v2227 = vld [vmem:[#allocation3 + $0x10] sm:$0x1]
        %v2228 = vld [vmem:[#allocation3 + $0x14] sm:$0xe]
        %v2229 = vld [vmem:[#allocation3 + $0x18] sm:$0xf]
        %v2230 = vld [vmem:[#allocation3 + $0x1c] sm:$0xf]
        %v2231 = vld [vmem:[#allocation3 + $0x20] sm:$0xf]
        %v2232 = vld [vmem:[#allocation3 + $0x24] sm:$0x1]
        %v2243 = vrot.slane %v2223, 5
        %v2244 = vrot.slane %v2243, 4
        %v2245 = vrot.slane %v2224, 5
        %v2246 = vsel %vm1074, %v2244, %v2245
        %v2247 = vrot.slane %v2245, 4
        %v2248 = vrot.slane %v2225, 5
        %v2249 = vsel %vm1074, %v2247, %v2248
        %v2250 = vrot.slane %v2248, 4
        %v2251 = vrot.slane %v2226, 5
        %v2252 = vsel %vm1074, %v2250, %v2251
        %v2253 = vrot.slane %v2251, 4
        %v2254 = vrot.slane %v2227, 5
        %v2255 = vsel %vm1074, %v2253, %v2254
        %v2256 = vrot.slane %v2228, 5
        %v2257 = vrot.slane %v2256, 4
        %v2258 = vrot.slane %v2229, 5
        %v2259 = vsel %vm1074, %v2257, %v2258
        %v2260 = vrot.slane %v2258, 4
        %v2261 = vrot.slane %v2230, 5
        %v2262 = vsel %vm1074, %v2260, %v2261
        %v2263 = vrot.slane %v2261, 4
        %v2264 = vrot.slane %v2231, 5
        %v2265 = vsel %vm1074, %v2263, %v2264
        %v2266 = vrot.slane %v2264, 4
        %v2267 = vrot.slane %v2232, 5
        %v2268 = vsel %vm1074, %v2266, %v2267
        %v2269 = vunpack.c.l.b16 %v2246
        %v2270 = vunpack.c.l.b16 %v2249
        %v2271 = vunpack.c.l.b16 %v2252
        %v2272 = vunpack.c.l.b16 %v2255
        %v2273 = vunpack.c.l.b16 %v2259
        %v2274 = vunpack.c.l.b16 %v2262
        %v2275 = vunpack.c.l.b16 %v2265
        %v2276 = vunpack.c.l.b16 %v2268
        %v2277 = vpack.c.b16 %v2270, %v2269
        %v2278 = vpack.c.b16 %v2272, %v2271
        %v2279 = vpack.c.b16 %v2274, %v2273
        %v2280 = vpack.c.b16 %v2276, %v2275
        %v2282 = vsel %vm962, %v2277, 0
        %v2285 = vsel %vm962, %v2278, 0
        %v2288 = vsel %vm962, %v2279, 0
        %v2291 = vsel %vm962, %v2280, 0
        %v2294 = vsel %vm975, %v2096, 0
        %2296 = vmatprep.subr.bf16.mxu0 0
        %2297 = vmatpush1.bf16.msra.mxu0 %v2294
        %2298 = vmatprep.subr.bf16.mxu0 0
        %2299 = vmatpush1.bf16.msra.mxu0 0
        %2300 = vmatprep.subr.bf16.mxu0 0
        %2301 = vmatpush1.bf16.msra.mxu0 0
        %2302 = vmatprep.subr.bf16.mxu0 0
        %2303 = vmatpush1.bf16.msra.mxu0 0
        %2304 = vmatprep.subr.bf16.mxu0 0
        %2305 = vmatpush1.bf16.msra.mxu0 0
        %2306 = vmatprep.subr.bf16.mxu0 0
        %2307 = vmatpush1.bf16.msra.mxu0 0
        %2308 = vmatprep.subr.bf16.mxu0 0
        %2309 = vmatpush1.bf16.msra.mxu0 0
        %2310 = vmatprep.subr.bf16.mxu0 0
        %2311 = vmatpush1.bf16.msra.mxu0 0
        %2312 = vmatprep.subr.bf16.mxu0 0
        %2313 = vmatpush1.bf16.msra.mxu0 0
        %2314 = vmatprep.subr.bf16.mxu0 0
        %2315 = vmatpush1.bf16.msra.mxu0 0
        %2316 = vmatprep.subr.bf16.mxu0 0
        %2317 = vmatpush1.bf16.msra.mxu0 0
        %2318 = vmatprep.subr.bf16.mxu0 0
        %2319 = vmatpush1.bf16.msra.mxu0 0
        %2320 = vmatprep.subr.bf16.mxu0 0
        %2321 = vmatpush1.bf16.msra.mxu0 0
        %2322 = vmatprep.subr.bf16.mxu0 0
        %2323 = vmatpush1.bf16.msra.mxu0 0
        %2324 = vmatprep.subr.bf16.mxu0 0
        %2325 = vmatpush1.bf16.msra.mxu0 0
        %2326 = vmatprep.subr.bf16.mxu0 0
        %2327 = vmatpush1.bf16.msra.mxu0 0
        %2328 = vmatprep.mubr.bf16.mxu0 0
        %2329 = vmatmul.mubr.bf16.gmra.mrb[0].mxu0 %v2282
        %v2330 = vpop.f32.mrb[0].mxu0
        %v2331 = vadd.f32 0.0, %v2330
        %v2332 = vpop.f32.mrb[0].mxu0
        %v2333 = vpop.f32.mrb[0].mxu0
        %v2334 = vadd.f32 0.0, %v2333
        %v2335 = vpop.f32.mrb[0].mxu0
        %2336 = vmatprep.mubr.bf16.mxu0 0
        %2337 = vmatmul.mubr.bf16.gmra.mrb[0].mxu0 %v2285
        %v2338 = vpop.f32.mrb[0].mxu0
        %v2339 = vadd.f32 0.0, %v2338
        %v2340 = vpop.f32.mrb[0].mxu0
        %v2341 = vpop.f32.mrb[0].mxu0
        %v2342 = vadd.f32 0.0, %v2341
        %v2343 = vpop.f32.mrb[0].mxu0
        %2344 = vmatprep.mubr.bf16.mxu0 0
        %2345 = vmatmul.mubr.bf16.gmra.mrb[0].mxu0 %v2288
        %v2346 = vpop.f32.mrb[0].mxu0
        %v2347 = vadd.f32 0.0, %v2346
        %v2348 = vpop.f32.mrb[0].mxu0
        %v2349 = vpop.f32.mrb[0].mxu0
        %v2350 = vadd.f32 0.0, %v2349
        %v2351 = vpop.f32.mrb[0].mxu0
        %2352 = vmatprep.mubr.bf16.mxu0 0
        %2353 = vmatmul.mubr.bf16.gmra.mrb[0].mxu0 %v2291
        %v2354 = vpop.f32.mrb[0].mxu0
        %v2355 = vadd.f32 0.0, %v2354
        %v2356 = vpop.f32.mrb[0].mxu0
        %v2357 = vpop.f32.mrb[0].mxu0
        %v2358 = vadd.f32 0.0, %v2357
        %v2359 = vpop.f32.mrb[0].mxu0
        %2360 = vdwg.mxu0
        %v2361 = vadd.f32 %v2215, %v2331
        %v2362 = vadd.f32 %v2216, %v2334
        %v2363 = vadd.f32 %v2217, %v2339
        %v2364 = vadd.f32 %v2218, %v2342
        %v2365 = vadd.f32 %v2219, %v2347
        %v2366 = vadd.f32 %v2220, %v2350
        %v2367 = vadd.f32 %v2221, %v2355
        %v2368 = vadd.f32 %v2222, %v2358
        %v2369 = vld [vmem:[#allocation3] sm:$0xc]
        %v2370 = vld [vmem:[#allocation3 + $0x10] sm:$0x3]
        %v2371 = vld [vmem:[#allocation3 + $0x14] sm:$0xc]
        %v2372 = vld [vmem:[#allocation3 + $0x24] sm:$0x3]
        %v2377 = vrot.slane %v2369, 6
        %v2378 = vrot.slane %v2377, 4
        %v2379 = vrot.slane %v2224, 6
        %v2380 = vsel %vm1211, %v2378, %v2379
        %v2381 = vrot.slane %v2379, 4
        %v2382 = vrot.slane %v2225, 6
        %v2383 = vsel %vm1211, %v2381, %v2382
        %v2384 = vrot.slane %v2382, 4
        %v2385 = vrot.slane %v2226, 6
        %v2386 = vsel %vm1211, %v2384, %v2385
        %v2387 = vrot.slane %v2385, 4
        %v2388 = vrot.slane %v2370, 6
        %v2389 = vsel %vm1211, %v2387, %v2388
        %v2390 = vrot.slane %v2371, 6
        %v2391 = vrot.slane %v2390, 4
        %v2392 = vrot.slane %v2229, 6
        %v2393 = vsel %vm1211, %v2391, %v2392
        %v2394 = vrot.slane %v2392, 4
        %v2395 = vrot.slane %v2230, 6
        %v2396 = vsel %vm1211, %v2394, %v2395
        %v2397 = vrot.slane %v2395, 4
        %v2398 = vrot.slane %v2231, 6
        %v2399 = vsel %vm1211, %v2397, %v2398
        %v2400 = vrot.slane %v2398, 4
        %v2401 = vrot.slane %v2372, 6
        %v2402 = vsel %vm1211, %v2400, %v2401
        %v2403 = vunpack.c.l.b16 %v2380
        %v2404 = vunpack.c.l.b16 %v2383
        %v2405 = vunpack.c.l.b16 %v2386
        %v2406 = vunpack.c.l.b16 %v2389
        %v2407 = vunpack.c.l.b16 %v2393
        %v2408 = vunpack.c.l.b16 %v2396
        %v2409 = vunpack.c.l.b16 %v2399
        %v2410 = vunpack.c.l.b16 %v2402
        %v2411 = vpack.c.b16 %v2404, %v2403
        %v2412 = vpack.c.b16 %v2406, %v2405
        %v2413 = vpack.c.b16 %v2408, %v2407
        %v2414 = vpack.c.b16 %v2410, %v2409
        %v2416 = vsel %vm962, %v2411, 0
        %v2419 = vsel %vm962, %v2412, 0
        %v2422 = vsel %vm962, %v2413, 0
        %v2425 = vsel %vm962, %v2414, 0
        %v2428 = vsel %vm975, %v2097, 0
        %2430 = vmatprep.subr.bf16.mxu0 0
        %2431 = vmatpush1.bf16.msra.mxu0 %v2428
        %2432 = vmatprep.subr.bf16.mxu0 0
        %2433 = vmatpush1.bf16.msra.mxu0 0
        %2434 = vmatprep.subr.bf16.mxu0 0
        %2435 = vmatpush1.bf16.msra.mxu0 0
        %2436 = vmatprep.subr.bf16.mxu0 0
        %2437 = vmatpush1.bf16.msra.mxu0 0
        %2438 = vmatprep.subr.bf16.mxu0 0
        %2439 = vmatpush1.bf16.msra.mxu0 0
        %2440 = vmatprep.subr.bf16.mxu0 0
        %2441 = vmatpush1.bf16.msra.mxu0 0
        %2442 = vmatprep.subr.bf16.mxu0 0
        %2443 = vmatpush1.bf16.msra.mxu0 0
        %2444 = vmatprep.subr.bf16.mxu0 0
        %2445 = vmatpush1.bf16.msra.mxu0 0
        %2446 = vmatprep.subr.bf16.mxu0 0
        %2447 = vmatpush1.bf16.msra.mxu0 0
        %2448 = vmatprep.subr.bf16.mxu0 0
        %2449 = vmatpush1.bf16.msra.mxu0 0
        %2450 = vmatprep.subr.bf16.mxu0 0
        %2451 = vmatpush1.bf16.msra.mxu0 0
        %2452 = vmatprep.subr.bf16.mxu0 0
        %2453 = vmatpush1.bf16.msra.mxu0 0
        %2454 = vmatprep.subr.bf16.mxu0 0
        %2455 = vmatpush1.bf16.msra.mxu0 0
        %2456 = vmatprep.subr.bf16.mxu0 0
        %2457 = vmatpush1.bf16.msra.mxu0 0
        %2458 = vmatprep.subr.bf16.mxu0 0
        %2459 = vmatpush1.bf16.msra.mxu0 0
        %2460 = vmatprep.subr.bf16.mxu0 0
        %2461 = vmatpush1.bf16.msra.mxu0 0
        %2462 = vmatprep.mubr.bf16.mxu0 0
        %2463 = vmatmul.mubr.bf16.gmra.mrb[0].mxu0 %v2416
        %v2464 = vpop.f32.mrb[0].mxu0
        %v2465 = vadd.f32 0.0, %v2464
        %v2466 = vpop.f32.mrb[0].mxu0
        %v2467 = vpop.f32.mrb[0].mxu0
        %v2468 = vadd.f32 0.0, %v2467
        %v2469 = vpop.f32.mrb[0].mxu0
        %2470 = vmatprep.mubr.bf16.mxu0 0
        %2471 = vmatmul.mubr.bf16.gmra.mrb[0].mxu0 %v2419
        %v2472 = vpop.f32.mrb[0].mxu0
        %v2473 = vadd.f32 0.0, %v2472
        %v2474 = vpop.f32.mrb[0].mxu0
        %v2475 = vpop.f32.mrb[0].mxu0
        %v2476 = vadd.f32 0.0, %v2475
        %v2477 = vpop.f32.mrb[0].mxu0
        %2478 = vmatprep.mubr.bf16.mxu0 0
        %2479 = vmatmul.mubr.bf16.gmra.mrb[0].mxu0 %v2422
        %v2480 = vpop.f32.mrb[0].mxu0
        %v2481 = vadd.f32 0.0, %v2480
        %v2482 = vpop.f32.mrb[0].mxu0
        %v2483 = vpop.f32.mrb[0].mxu0
        %v2484 = vadd.f32 0.0, %v2483
        %v2485 = vpop.f32.mrb[0].mxu0
        %2486 = vmatprep.mubr.bf16.mxu0 0
        %2487 = vmatmul.mubr.bf16.gmra.mrb[0].mxu0 %v2425
        %v2488 = vpop.f32.mrb[0].mxu0
        %v2489 = vadd.f32 0.0, %v2488
        %v2490 = vpop.f32.mrb[0].mxu0
        %v2491 = vpop.f32.mrb[0].mxu0
        %v2492 = vadd.f32 0.0, %v2491
        %v2493 = vpop.f32.mrb[0].mxu0
        %2494 = vdwg.mxu0
        %v2495 = vadd.f32 %v2361, %v2465
        %v2496 = vadd.f32 %v2362, %v2468
        %v2497 = vadd.f32 %v2363, %v2473
        %v2498 = vadd.f32 %v2364, %v2476
        %v2499 = vadd.f32 %v2365, %v2481
        %v2500 = vadd.f32 %v2366, %v2484
        %v2501 = vadd.f32 %v2367, %v2489
        %v2502 = vadd.f32 %v2368, %v2492
        %v2503 = vmax.f32 %v2495, 0.0
        %v2504 = vmax.f32 %v2496, 0.0
        %v2505 = vmax.f32 %v2497, 0.0
        %v2506 = vmax.f32 %v2498, 0.0
        %v2507 = vmax.f32 %v2499, 0.0
        %v2508 = vmax.f32 %v2500, 0.0
        %v2509 = vmax.f32 %v2501, 0.0
        %v2510 = vmax.f32 %v2502, 0.0
        %s2511 = scalar_lea.vmem %s7, 2
        %v2512 = vld [vmem:[%s2511] sm:$0x1]
        %v2514 = vlaneseq
        %v2515 = vshrl.u32 %v2514, 7
        %v2516 = vsub.s32 0, %v2515
        %v2517 = vrot.slane %v2512, %v2516
        %v2519 = vmul.f32 %v2503, %v2517
        %v2520 = vmul.f32 %v2504, %v2517
        %v2521 = vmul.f32 %v2505, %v2517
        %v2522 = vmul.f32 %v2506, %v2517
        %v2523 = vmul.f32 %v2507, %v2517
        %v2524 = vmul.f32 %v2508, %v2517
        %v2525 = vmul.f32 %v2509, %v2517
        %v2526 = vmul.f32 %v2510, %v2517
        %s2527 = scalar_lea.vmem [#allocation10], 2
        %v2528 = vld [vmem:[%s2527] sm:$0x1]
        %v2530 = vlaneseq
        %v2531 = vshrl.u32 %v2530, 7
        %v2532 = vsub.s32 0, %v2531
        %v2533 = vrot.slane %v2528, %v2532
        %v2535 = vadd.f32 %v2519, %v2533
        %v2536 = vadd.f32 %v2520, %v2533
        %v2537 = vadd.f32 %v2521, %v2533
        %v2538 = vadd.f32 %v2522, %v2533
        %v2539 = vadd.f32 %v2523, %v2533
        %v2540 = vadd.f32 %v2524, %v2533
        %v2541 = vadd.f32 %v2525, %v2533
        %v2542 = vadd.f32 %v2526, %v2533
        %v2543 = vpack.c.bf16 %v2536, %v2535
        %v2544 = vpack.c.bf16 %v2538, %v2537
        %v2545 = vpack.c.bf16 %v2540, %v2539
        %v2546 = vpack.c.bf16 %v2542, %v2541
        %2551 = vrot.lane.b32.xlu0 %v2543, 16
        %v2552 = vpop.permute.xlu0 %2551
        %2553 = vrot.lane.b32.xlu0 %v2544, 16
        %v2554 = vpop.permute.xlu0 %2553
        %2555 = vrot.lane.b32.xlu0 %v2545, 16
        %v2556 = vpop.permute.xlu0 %2555
        %2557 = vrot.lane.b32.xlu0 %v2546, 16
        %v2558 = vpop.permute.xlu0 %2557
        %vm2563 = vcmask 195712
        %2564 = vst.msk [vmem:[#allocation2] sm:$0xff] %vm2563, %v2552
        %2565 = vst.msk [vmem:[#allocation2 + $0x8] sm:$0xff] %vm2563, %v2554
        %2566 = vst.msk [vmem:[#allocation2 + $0x10] sm:$0xff] %vm2563, %v2556
        %2567 = vst.msk [vmem:[#allocation2 + $0x18] sm:$0xff] %vm2563, %v2558
        %v2568 = vld [vmem:[#allocation2] sm:$0xff]
        %v2569 = vld [vmem:[#allocation2 + $0x8] sm:$0xff]
        %v2570 = vld [vmem:[#allocation2 + $0x10] sm:$0xff]
        %v2571 = vld [vmem:[#allocation2 + $0x18] sm:$0xff]
        %v2572 = vunpack.c.l.bf16 %v2568
        %v2573 = vunpack.c.h.bf16 %v2568
        %v2574 = vunpack.c.l.bf16 %v2569
        %v2575 = vunpack.c.h.bf16 %v2569
        %v2576 = vunpack.c.l.bf16 %v2570
        %v2577 = vunpack.c.h.bf16 %v2570
        %v2578 = vunpack.c.l.bf16 %v2571
        %v2579 = vunpack.c.h.bf16 %v2571
        %2588 = vrot.lane.b32.xlu0 %v2572, 104
        %v2589 = vpop.permute.xlu0 %2588
        %2590 = vrot.lane.b32.xlu0 %v2573, 104
        %v2591 = vpop.permute.xlu0 %2590
        %2592 = vrot.lane.b32.xlu0 %v2574, 104
        %v2593 = vpop.permute.xlu0 %2592
        %2594 = vrot.lane.b32.xlu0 %v2575, 104
        %v2595 = vpop.permute.xlu0 %2594
        %2596 = vrot.lane.b32.xlu0 %v2576, 104
        %v2597 = vpop.permute.xlu0 %2596
        %2598 = vrot.lane.b32.xlu0 %v2577, 104
        %v2599 = vpop.permute.xlu0 %2598
        %2600 = vrot.lane.b32.xlu0 %v2578, 104
        %v2601 = vpop.permute.xlu0 %2600
        %2602 = vrot.lane.b32.xlu0 %v2579, 104
        %v2603 = vpop.permute.xlu0 %2602
        %v2612 = vadd.f32 %v2020, %v2589
        %v2613 = vadd.f32 %v2021, %v2591
        %v2614 = vadd.f32 %v2022, %v2593
        %v2615 = vadd.f32 %v2023, %v2595
        %v2616 = vadd.f32 %v2024, %v2597
        %v2617 = vadd.f32 %v2025, %v2599
        %v2618 = vadd.f32 %v2026, %v2601
        %v2619 = vadd.f32 %v2027, %v2603
        %v2620 = vpack.c.bf16 %v2613, %v2612
        %v2621 = vpack.c.bf16 %v2615, %v2614
        %v2622 = vpack.c.bf16 %v2617, %v2616
        %v2623 = vpack.c.bf16 %v2619, %v2618
        %v2628 = vunpack.c.l.b16 %v2620
        %v2629 = vunpack.c.h.b16 %v2620
        %v2630 = vunpack.c.l.b16 %v2621
        %v2631 = vunpack.c.h.b16 %v2621
        %v2632 = vunpack.c.l.b16 %v2622
        %v2633 = vunpack.c.h.b16 %v2622
        %v2634 = vunpack.c.l.b16 %v2623
        %v2635 = vunpack.c.h.b16 %v2623
        %v2636 = vpack.c.b16 %v2628, %v2628
        %v2637 = vpack.c.b16 %v2629, %v2629
        %v2638 = vpack.c.b16 %v2630, %v2630
        %v2639 = vpack.c.b16 %v2631, %v2631
        %v2640 = vpack.c.b16 %v2632, %v2632
        %v2641 = vpack.c.b16 %v2633, %v2633
        %v2642 = vpack.c.b16 %v2634, %v2634
        %v2643 = vpack.c.b16 %v2635, %v2635
        %v2644 = vrot.slane %v2636, 7
        %v2645 = vrot.slane %v2644, 4
        %v2646 = vrot.slane %v2637, 7
        %v2647 = vsel %vm878, %v2645, %v2646
        %v2648 = vrot.slane %v2646, 4
        %v2649 = vrot.slane %v2638, 7
        %v2650 = vsel %vm878, %v2648, %v2649
        %v2651 = vrot.slane %v2649, 4
        %v2652 = vrot.slane %v2639, 7
        %v2653 = vsel %vm878, %v2651, %v2652
        %v2654 = vrot.slane %v2652, 4
        %v2655 = vrot.slane %v2640, 7
        %v2656 = vrot.slane %v2655, 4
        %v2657 = vrot.slane %v2641, 7
        %v2658 = vsel %vm878, %v2656, %v2657
        %v2659 = vrot.slane %v2657, 4
        %v2660 = vrot.slane %v2642, 7
        %v2661 = vsel %vm878, %v2659, %v2660
        %v2662 = vrot.slane %v2660, 4
        %v2663 = vrot.slane %v2643, 7
        %v2664 = vsel %vm878, %v2662, %v2663
        %v2665 = vrot.slane %v2663, 4
        %2676 = vst.msk [vmem:[#allocation3] sm:$0xe] %vm911, %v2644
        %2677 = vst.msk [vmem:[#allocation3 + $0x4] sm:$0xf] %vm913, %v2647
        %2678 = vst.msk [vmem:[#allocation3 + $0x8] sm:$0xf] %vm913, %v2650
        %2679 = vst.msk [vmem:[#allocation3 + $0xc] sm:$0xf] %vm913, %v2653
        %2680 = vst.msk [vmem:[#allocation3 + $0x10] sm:$0x1] %vm834, %v2654
        %2681 = vst.msk [vmem:[#allocation3 + $0x14] sm:$0xe] %vm911, %v2655
        %2682 = vst.msk [vmem:[#allocation3 + $0x18] sm:$0xf] %vm913, %v2658
        %2683 = vst.msk [vmem:[#allocation3 + $0x1c] sm:$0xf] %vm913, %v2661
        %2684 = vst.msk [vmem:[#allocation3 + $0x20] sm:$0xf] %vm913, %v2664
        %2685 = vst.msk [vmem:[#allocation3 + $0x24] sm:$0x1] %vm834, %v2665
        %s2686 = scalar_lea.vmem %s5, 36
        %v2687 = vld [vmem:[%s2686] sm:$0xf]
        %v2688 = vld [vmem:[%s2686 + $0x4] sm:$0xf]
        %v2689 = vld [vmem:[%s2686 + $0x8] sm:$0xf]
        %s2690 = scalar_lea.vmem [#allocation9], 3
        %v2691 = vld [vmem:[%s2690] sm:$0x1]
        %v2693 = vlaneseq
        %v2694 = vshrl.u32 %v2693, 7
        %v2695 = vsub.s32 0, %v2694
        %v2696 = vrot.slane %v2691, %v2695
        %v2698 = vadd.f32 %v2696, 0.0
        %v2699 = vld [vmem:[#allocation3] sm:$0xf]
        %v2700 = vld [vmem:[#allocation3 + $0x4] sm:$0xf]
        %v2701 = vld [vmem:[#allocation3 + $0x8] sm:$0xf]
        %v2702 = vld [vmem:[#allocation3 + $0xc] sm:$0xf]
        %v2703 = vld [vmem:[#allocation3 + $0x14] sm:$0xf]
        %v2704 = vld [vmem:[#allocation3 + $0x18] sm:$0xf]
        %v2705 = vld [vmem:[#allocation3 + $0x1c] sm:$0xf]
        %v2706 = vld [vmem:[#allocation3 + $0x20] sm:$0xf]
        %v2715 = vunpack.c.l.b16 %v2699
        %v2716 = vunpack.c.l.b16 %v2700
        %v2717 = vunpack.c.l.b16 %v2701
        %v2718 = vunpack.c.l.b16 %v2702
        %v2719 = vunpack.c.l.b16 %v2703
        %v2720 = vunpack.c.l.b16 %v2704
        %v2721 = vunpack.c.l.b16 %v2705
        %v2722 = vunpack.c.l.b16 %v2706
        %v2723 = vpack.c.b16 %v2716, %v2715
        %v2724 = vpack.c.b16 %v2718, %v2717
        %v2725 = vpack.c.b16 %v2720, %v2719
        %v2726 = vpack.c.b16 %v2722, %v2721
        %v2728 = vsel %vm962, %v2723, 0
        %v2731 = vsel %vm962, %v2724, 0
        %v2734 = vsel %vm962, %v2725, 0
        %v2737 = vsel %vm962, %v2726, 0
        %v2740 = vsel %vm975, %v2687, 0
        %2742 = vmatprep.subr.bf16.mxu0 0
        %2743 = vmatpush1.bf16.msra.mxu0 %v2740
        %2744 = vmatprep.subr.bf16.mxu0 0
        %2745 = vmatpush1.bf16.msra.mxu0 0
        %2746 = vmatprep.subr.bf16.mxu0 0
        %2747 = vmatpush1.bf16.msra.mxu0 0
        %2748 = vmatprep.subr.bf16.mxu0 0
        %2749 = vmatpush1.bf16.msra.mxu0 0
        %2750 = vmatprep.subr.bf16.mxu0 0
        %2751 = vmatpush1.bf16.msra.mxu0 0
        %2752 = vmatprep.subr.bf16.mxu0 0
        %2753 = vmatpush1.bf16.msra.mxu0 0
        %2754 = vmatprep.subr.bf16.mxu0 0
        %2755 = vmatpush1.bf16.msra.mxu0 0
        %2756 = vmatprep.subr.bf16.mxu0 0
        %2757 = vmatpush1.bf16.msra.mxu0 0
        %2758 = vmatprep.subr.bf16.mxu0 0
        %2759 = vmatpush1.bf16.msra.mxu0 0
        %2760 = vmatprep.subr.bf16.mxu0 0
        %2761 = vmatpush1.bf16.msra.mxu0 0
        %2762 = vmatprep.subr.bf16.mxu0 0
        %2763 = vmatpush1.bf16.msra.mxu0 0
        %2764 = vmatprep.subr.bf16.mxu0 0
        %2765 = vmatpush1.bf16.msra.mxu0 0
        %2766 = vmatprep.subr.bf16.mxu0 0
        %2767 = vmatpush1.bf16.msra.mxu0 0
        %2768 = vmatprep.subr.bf16.mxu0 0
        %2769 = vmatpush1.bf16.msra.mxu0 0
        %2770 = vmatprep.subr.bf16.mxu0 0
        %2771 = vmatpush1.bf16.msra.mxu0 0
        %2772 = vmatprep.subr.bf16.mxu0 0
        %2773 = vmatpush1.bf16.msra.mxu0 0
        %2774 = vmatprep.mubr.bf16.mxu0 0
        %2775 = vmatmul.mubr.bf16.gmra.mrb[0].mxu0 %v2728
        %v2776 = vpop.f32.mrb[0].mxu0
        %v2777 = vadd.f32 0.0, %v2776
        %v2778 = vpop.f32.mrb[0].mxu0
        %v2779 = vpop.f32.mrb[0].mxu0
        %v2780 = vadd.f32 0.0, %v2779
        %v2781 = vpop.f32.mrb[0].mxu0
        %2782 = vmatprep.mubr.bf16.mxu0 0
        %2783 = vmatmul.mubr.bf16.gmra.mrb[0].mxu0 %v2731
        %v2784 = vpop.f32.mrb[0].mxu0
        %v2785 = vadd.f32 0.0, %v2784
        %v2786 = vpop.f32.mrb[0].mxu0
        %v2787 = vpop.f32.mrb[0].mxu0
        %v2788 = vadd.f32 0.0, %v2787
        %v2789 = vpop.f32.mrb[0].mxu0
        %2790 = vmatprep.mubr.bf16.mxu0 0
        %2791 = vmatmul.mubr.bf16.gmra.mrb[0].mxu0 %v2734
        %v2792 = vpop.f32.mrb[0].mxu0
        %v2793 = vadd.f32 0.0, %v2792
        %v2794 = vpop.f32.mrb[0].mxu0
        %v2795 = vpop.f32.mrb[0].mxu0
        %v2796 = vadd.f32 0.0, %v2795
        %v2797 = vpop.f32.mrb[0].mxu0
        %2798 = vmatprep.mubr.bf16.mxu0 0
        %2799 = vmatmul.mubr.bf16.gmra.mrb[0].mxu0 %v2737
        %v2800 = vpop.f32.mrb[0].mxu0
        %v2801 = vadd.f32 0.0, %v2800
        %v2802 = vpop.f32.mrb[0].mxu0
        %v2803 = vpop.f32.mrb[0].mxu0
        %v2804 = vadd.f32 0.0, %v2803
        %v2805 = vpop.f32.mrb[0].mxu0
        %2806 = vdwg.mxu0
        %v2807 = vadd.f32 %v2698, %v2777
        %v2808 = vadd.f32 %v2698, %v2780
        %v2809 = vadd.f32 %v2698, %v2785
        %v2810 = vadd.f32 %v2698, %v2788
        %v2811 = vadd.f32 %v2698, %v2793
        %v2812 = vadd.f32 %v2698, %v2796
        %v2813 = vadd.f32 %v2698, %v2801
        %v2814 = vadd.f32 %v2698, %v2804
        %v2815 = vld [vmem:[#allocation3] sm:$0xe]
        %v2816 = vld [vmem:[#allocation3 + $0x4] sm:$0xf]
        %v2817 = vld [vmem:[#allocation3 + $0x8] sm:$0xf]
        %v2818 = vld [vmem:[#allocation3 + $0xc] sm:$0xf]
        %v2819 = vld [vmem:[#allocation3 + $0x10] sm:$0x1]
        %v2820 = vld [vmem:[#allocation3 + $0x14] sm:$0xe]
        %v2821 = vld [vmem:[#allocation3 + $0x18] sm:$0xf]
        %v2822 = vld [vmem:[#allocation3 + $0x1c] sm:$0xf]
        %v2823 = vld [vmem:[#allocation3 + $0x20] sm:$0xf]
        %v2824 = vld [vmem:[#allocation3 + $0x24] sm:$0x1]
        %v2835 = vrot.slane %v2815, 5
        %v2836 = vrot.slane %v2835, 4
        %v2837 = vrot.slane %v2816, 5
        %v2838 = vsel %vm1074, %v2836, %v2837
        %v2839 = vrot.slane %v2837, 4
        %v2840 = vrot.slane %v2817, 5
        %v2841 = vsel %vm1074, %v2839, %v2840
        %v2842 = vrot.slane %v2840, 4
        %v2843 = vrot.slane %v2818, 5
        %v2844 = vsel %vm1074, %v2842, %v2843
        %v2845 = vrot.slane %v2843, 4
        %v2846 = vrot.slane %v2819, 5
        %v2847 = vsel %vm1074, %v2845, %v2846
        %v2848 = vrot.slane %v2820, 5
        %v2849 = vrot.slane %v2848, 4
        %v2850 = vrot.slane %v2821, 5
        %v2851 = vsel %vm1074, %v2849, %v2850
        %v2852 = vrot.slane %v2850, 4
        %v2853 = vrot.slane %v2822, 5
        %v2854 = vsel %vm1074, %v2852, %v2853
        %v2855 = vrot.slane %v2853, 4
        %v2856 = vrot.slane %v2823, 5
        %v2857 = vsel %vm1074, %v2855, %v2856
        %v2858 = vrot.slane %v2856, 4
        %v2859 = vrot.slane %v2824, 5
        %v2860 = vsel %vm1074, %v2858, %v2859
        %v2861 = vunpack.c.l.b16 %v2838
        %v2862 = vunpack.c.l.b16 %v2841
        %v2863 = vunpack.c.l.b16 %v2844
        %v2864 = vunpack.c.l.b16 %v2847
        %v2865 = vunpack.c.l.b16 %v2851
        %v2866 = vunpack.c.l.b16 %v2854
        %v2867 = vunpack.c.l.b16 %v2857
        %v2868 = vunpack.c.l.b16 %v2860
        %v2869 = vpack.c.b16 %v2862, %v2861
        %v2870 = vpack.c.b16 %v2864, %v2863
        %v2871 = vpack.c.b16 %v2866, %v2865
        %v2872 = vpack.c.b16 %v2868, %v2867
        %v2874 = vsel %vm962, %v2869, 0
        %v2877 = vsel %vm962, %v2870, 0
        %v2880 = vsel %vm962, %v2871, 0
        %v2883 = vsel %vm962, %v2872, 0
        %v2886 = vsel %vm975, %v2688, 0
        %2888 = vmatprep.subr.bf16.mxu0 0
        %2889 = vmatpush1.bf16.msra.mxu0 %v2886
        %2890 = vmatprep.subr.bf16.mxu0 0
        %2891 = vmatpush1.bf16.msra.mxu0 0
        %2892 = vmatprep.subr.bf16.mxu0 0
        %2893 = vmatpush1.bf16.msra.mxu0 0
        %2894 = vmatprep.subr.bf16.mxu0 0
        %2895 = vmatpush1.bf16.msra.mxu0 0
        %2896 = vmatprep.subr.bf16.mxu0 0
        %2897 = vmatpush1.bf16.msra.mxu0 0
        %2898 = vmatprep.subr.bf16.mxu0 0
        %2899 = vmatpush1.bf16.msra.mxu0 0
        %2900 = vmatprep.subr.bf16.mxu0 0
        %2901 = vmatpush1.bf16.msra.mxu0 0
        %2902 = vmatprep.subr.bf16.mxu0 0
        %2903 = vmatpush1.bf16.msra.mxu0 0
        %2904 = vmatprep.subr.bf16.mxu0 0
        %2905 = vmatpush1.bf16.msra.mxu0 0
        %2906 = vmatprep.subr.bf16.mxu0 0
        %2907 = vmatpush1.bf16.msra.mxu0 0
        %2908 = vmatprep.subr.bf16.mxu0 0
        %2909 = vmatpush1.bf16.msra.mxu0 0
        %2910 = vmatprep.subr.bf16.mxu0 0
        %2911 = vmatpush1.bf16.msra.mxu0 0
        %2912 = vmatprep.subr.bf16.mxu0 0
        %2913 = vmatpush1.bf16.msra.mxu0 0
        %2914 = vmatprep.subr.bf16.mxu0 0
        %2915 = vmatpush1.bf16.msra.mxu0 0
        %2916 = vmatprep.subr.bf16.mxu0 0
        %2917 = vmatpush1.bf16.msra.mxu0 0
        %2918 = vmatprep.subr.bf16.mxu0 0
        %2919 = vmatpush1.bf16.msra.mxu0 0
        %2920 = vmatprep.mubr.bf16.mxu0 0
        %2921 = vmatmul.mubr.bf16.gmra.mrb[0].mxu0 %v2874
        %v2922 = vpop.f32.mrb[0].mxu0
        %v2923 = vadd.f32 0.0, %v2922
        %v2924 = vpop.f32.mrb[0].mxu0
        %v2925 = vpop.f32.mrb[0].mxu0
        %v2926 = vadd.f32 0.0, %v2925
        %v2927 = vpop.f32.mrb[0].mxu0
        %2928 = vmatprep.mubr.bf16.mxu0 0
        %2929 = vmatmul.mubr.bf16.gmra.mrb[0].mxu0 %v2877
        %v2930 = vpop.f32.mrb[0].mxu0
        %v2931 = vadd.f32 0.0, %v2930
        %v2932 = vpop.f32.mrb[0].mxu0
        %v2933 = vpop.f32.mrb[0].mxu0
        %v2934 = vadd.f32 0.0, %v2933
        %v2935 = vpop.f32.mrb[0].mxu0
        %2936 = vmatprep.mubr.bf16.mxu0 0
        %2937 = vmatmul.mubr.bf16.gmra.mrb[0].mxu0 %v2880
        %v2938 = vpop.f32.mrb[0].mxu0
        %v2939 = vadd.f32 0.0, %v2938
        %v2940 = vpop.f32.mrb[0].mxu0
        %v2941 = vpop.f32.mrb[0].mxu0
        %v2942 = vadd.f32 0.0, %v2941
        %v2943 = vpop.f32.mrb[0].mxu0
        %2944 = vmatprep.mubr.bf16.mxu0 0
        %2945 = vmatmul.mubr.bf16.gmra.mrb[0].mxu0 %v2883
        %v2946 = vpop.f32.mrb[0].mxu0
        %v2947 = vadd.f32 0.0, %v2946
        %v2948 = vpop.f32.mrb[0].mxu0
        %v2949 = vpop.f32.mrb[0].mxu0
        %v2950 = vadd.f32 0.0, %v2949
        %v2951 = vpop.f32.mrb[0].mxu0
        %2952 = vdwg.mxu0
        %v2953 = vadd.f32 %v2807, %v2923
        %v2954 = vadd.f32 %v2808, %v2926
        %v2955 = vadd.f32 %v2809, %v2931
        %v2956 = vadd.f32 %v2810, %v2934
        %v2957 = vadd.f32 %v2811, %v2939
        %v2958 = vadd.f32 %v2812, %v2942
        %v2959 = vadd.f32 %v2813, %v2947
        %v2960 = vadd.f32 %v2814, %v2950
        %v2961 = vld [vmem:[#allocation3] sm:$0xc]
        %v2962 = vld [vmem:[#allocation3 + $0x10] sm:$0x3]
        %v2963 = vld [vmem:[#allocation3 + $0x14] sm:$0xc]
        %v2964 = vld [vmem:[#allocation3 + $0x24] sm:$0x3]
        %v2969 = vrot.slane %v2961, 6
        %v2970 = vrot.slane %v2969, 4
        %v2971 = vrot.slane %v2816, 6
        %v2972 = vsel %vm1211, %v2970, %v2971
        %v2973 = vrot.slane %v2971, 4
        %v2974 = vrot.slane %v2817, 6
        %v2975 = vsel %vm1211, %v2973, %v2974
        %v2976 = vrot.slane %v2974, 4
        %v2977 = vrot.slane %v2818, 6
        %v2978 = vsel %vm1211, %v2976, %v2977
        %v2979 = vrot.slane %v2977, 4
        %v2980 = vrot.slane %v2962, 6
        %v2981 = vsel %vm1211, %v2979, %v2980
        %v2982 = vrot.slane %v2963, 6
        %v2983 = vrot.slane %v2982, 4
        %v2984 = vrot.slane %v2821, 6
        %v2985 = vsel %vm1211, %v2983, %v2984
        %v2986 = vrot.slane %v2984, 4
        %v2987 = vrot.slane %v2822, 6
        %v2988 = vsel %vm1211, %v2986, %v2987
        %v2989 = vrot.slane %v2987, 4
        %v2990 = vrot.slane %v2823, 6
        %v2991 = vsel %vm1211, %v2989, %v2990
        %v2992 = vrot.slane %v2990, 4
        %v2993 = vrot.slane %v2964, 6
        %v2994 = vsel %vm1211, %v2992, %v2993
        %v2995 = vunpack.c.l.b16 %v2972
        %v2996 = vunpack.c.l.b16 %v2975
        %v2997 = vunpack.c.l.b16 %v2978
        %v2998 = vunpack.c.l.b16 %v2981
        %v2999 = vunpack.c.l.b16 %v2985
        %v3000 = vunpack.c.l.b16 %v2988
        %v3001 = vunpack.c.l.b16 %v2991
        %v3002 = vunpack.c.l.b16 %v2994
        %v3003 = vpack.c.b16 %v2996, %v2995
        %v3004 = vpack.c.b16 %v2998, %v2997
        %v3005 = vpack.c.b16 %v3000, %v2999
        %v3006 = vpack.c.b16 %v3002, %v3001
        %v3008 = vsel %vm962, %v3003, 0
        %v3011 = vsel %vm962, %v3004, 0
        %v3014 = vsel %vm962, %v3005, 0
        %v3017 = vsel %vm962, %v3006, 0
        %v3020 = vsel %vm975, %v2689, 0
        %3022 = vmatprep.subr.bf16.mxu0 0
        %3023 = vmatpush1.bf16.msra.mxu0 %v3020
        %3024 = vmatprep.subr.bf16.mxu0 0
        %3025 = vmatpush1.bf16.msra.mxu0 0
        %3026 = vmatprep.subr.bf16.mxu0 0
        %3027 = vmatpush1.bf16.msra.mxu0 0
        %3028 = vmatprep.subr.bf16.mxu0 0
        %3029 = vmatpush1.bf16.msra.mxu0 0
        %3030 = vmatprep.subr.bf16.mxu0 0
        %3031 = vmatpush1.bf16.msra.mxu0 0
        %3032 = vmatprep.subr.bf16.mxu0 0
        %3033 = vmatpush1.bf16.msra.mxu0 0
        %3034 = vmatprep.subr.bf16.mxu0 0
        %3035 = vmatpush1.bf16.msra.mxu0 0
        %3036 = vmatprep.subr.bf16.mxu0 0
        %3037 = vmatpush1.bf16.msra.mxu0 0
        %3038 = vmatprep.subr.bf16.mxu0 0
        %3039 = vmatpush1.bf16.msra.mxu0 0
        %3040 = vmatprep.subr.bf16.mxu0 0
        %3041 = vmatpush1.bf16.msra.mxu0 0
        %3042 = vmatprep.subr.bf16.mxu0 0
        %3043 = vmatpush1.bf16.msra.mxu0 0
        %3044 = vmatprep.subr.bf16.mxu0 0
        %3045 = vmatpush1.bf16.msra.mxu0 0
        %3046 = vmatprep.subr.bf16.mxu0 0
        %3047 = vmatpush1.bf16.msra.mxu0 0
        %3048 = vmatprep.subr.bf16.mxu0 0
        %3049 = vmatpush1.bf16.msra.mxu0 0
        %3050 = vmatprep.subr.bf16.mxu0 0
        %3051 = vmatpush1.bf16.msra.mxu0 0
        %3052 = vmatprep.subr.bf16.mxu0 0
        %3053 = vmatpush1.bf16.msra.mxu0 0
        %3054 = vmatprep.mubr.bf16.mxu0 0
        %3055 = vmatmul.mubr.bf16.gmra.mrb[0].mxu0 %v3008
        %v3056 = vpop.f32.mrb[0].mxu0
        %v3057 = vadd.f32 0.0, %v3056
        %v3058 = vpop.f32.mrb[0].mxu0
        %v3059 = vpop.f32.mrb[0].mxu0
        %v3060 = vadd.f32 0.0, %v3059
        %v3061 = vpop.f32.mrb[0].mxu0
        %3062 = vmatprep.mubr.bf16.mxu0 0
        %3063 = vmatmul.mubr.bf16.gmra.mrb[0].mxu0 %v3011
        %v3064 = vpop.f32.mrb[0].mxu0
        %v3065 = vadd.f32 0.0, %v3064
        %v3066 = vpop.f32.mrb[0].mxu0
        %v3067 = vpop.f32.mrb[0].mxu0
        %v3068 = vadd.f32 0.0, %v3067
        %v3069 = vpop.f32.mrb[0].mxu0
        %3070 = vmatprep.mubr.bf16.mxu0 0
        %3071 = vmatmul.mubr.bf16.gmra.mrb[0].mxu0 %v3014
        %v3072 = vpop.f32.mrb[0].mxu0
        %v3073 = vadd.f32 0.0, %v3072
        %v3074 = vpop.f32.mrb[0].mxu0
        %v3075 = vpop.f32.mrb[0].mxu0
        %v3076 = vadd.f32 0.0, %v3075
        %v3077 = vpop.f32.mrb[0].mxu0
        %3078 = vmatprep.mubr.bf16.mxu0 0
        %3079 = vmatmul.mubr.bf16.gmra.mrb[0].mxu0 %v3017
        %v3080 = vpop.f32.mrb[0].mxu0
        %v3081 = vadd.f32 0.0, %v3080
        %v3082 = vpop.f32.mrb[0].mxu0
        %v3083 = vpop.f32.mrb[0].mxu0
        %v3084 = vadd.f32 0.0, %v3083
        %v3085 = vpop.f32.mrb[0].mxu0
        %3086 = vdwg.mxu0
        %v3087 = vadd.f32 %v2953, %v3057
        %v3088 = vadd.f32 %v2954, %v3060
        %v3089 = vadd.f32 %v2955, %v3065
        %v3090 = vadd.f32 %v2956, %v3068
        %v3091 = vadd.f32 %v2957, %v3073
        %v3092 = vadd.f32 %v2958, %v3076
        %v3093 = vadd.f32 %v2959, %v3081
        %v3094 = vadd.f32 %v2960, %v3084
        %v3095 = vmax.f32 %v3087, 0.0
        %v3096 = vmax.f32 %v3088, 0.0
        %v3097 = vmax.f32 %v3089, 0.0
        %v3098 = vmax.f32 %v3090, 0.0
        %v3099 = vmax.f32 %v3091, 0.0
        %v3100 = vmax.f32 %v3092, 0.0
        %v3101 = vmax.f32 %v3093, 0.0
        %v3102 = vmax.f32 %v3094, 0.0
        %s3103 = scalar_lea.vmem %s7, 3
        %v3104 = vld [vmem:[%s3103] sm:$0x1]
        %v3106 = vlaneseq
        %v3107 = vshrl.u32 %v3106, 7
        %v3108 = vsub.s32 0, %v3107
        %v3109 = vrot.slane %v3104, %v3108
        %v3111 = vmul.f32 %v3095, %v3109
        %v3112 = vmul.f32 %v3096, %v3109
        %v3113 = vmul.f32 %v3097, %v3109
        %v3114 = vmul.f32 %v3098, %v3109
        %v3115 = vmul.f32 %v3099, %v3109
        %v3116 = vmul.f32 %v3100, %v3109
        %v3117 = vmul.f32 %v3101, %v3109
        %v3118 = vmul.f32 %v3102, %v3109
        %s3119 = scalar_lea.vmem [#allocation10], 3
        %v3120 = vld [vmem:[%s3119] sm:$0x1]
        %v3122 = vlaneseq
        %v3123 = vshrl.u32 %v3122, 7
        %v3124 = vsub.s32 0, %v3123
        %v3125 = vrot.slane %v3120, %v3124
        %v3127 = vadd.f32 %v3111, %v3125
        %v3128 = vadd.f32 %v3112, %v3125
        %v3129 = vadd.f32 %v3113, %v3125
        %v3130 = vadd.f32 %v3114, %v3125
        %v3131 = vadd.f32 %v3115, %v3125
        %v3132 = vadd.f32 %v3116, %v3125
        %v3133 = vadd.f32 %v3117, %v3125
        %v3134 = vadd.f32 %v3118, %v3125
        %v3135 = vpack.c.bf16 %v3128, %v3127
        %v3136 = vpack.c.bf16 %v3130, %v3129
        %v3137 = vpack.c.bf16 %v3132, %v3131
        %v3138 = vpack.c.bf16 %v3134, %v3133
        %3143 = vrot.lane.b32.xlu0 %v3135, 24
        %v3144 = vpop.permute.xlu0 %3143
        %3145 = vrot.lane.b32.xlu0 %v3136, 24
        %v3146 = vpop.permute.xlu0 %3145
        %3147 = vrot.lane.b32.xlu0 %v3137, 24
        %v3148 = vpop.permute.xlu0 %3147
        %3149 = vrot.lane.b32.xlu0 %v3138, 24
        %v3150 = vpop.permute.xlu0 %3149
        %vm3155 = vcmask 261312
        %3156 = vst.msk [vmem:[#allocation2] sm:$0xff] %vm3155, %v3144
        %3157 = vst.msk [vmem:[#allocation2 + $0x8] sm:$0xff] %vm3155, %v3146
        %3158 = vst.msk [vmem:[#allocation2 + $0x10] sm:$0xff] %vm3155, %v3148
        %3159 = vst.msk [vmem:[#allocation2 + $0x18] sm:$0xff] %vm3155, %v3150
        %v3160 = vld [vmem:[#allocation2] sm:$0xff]
        %v3161 = vld [vmem:[#allocation2 + $0x8] sm:$0xff]
        %v3162 = vld [vmem:[#allocation2 + $0x10] sm:$0xff]
        %v3163 = vld [vmem:[#allocation2 + $0x18] sm:$0xff]
        %v3164 = vunpack.c.l.bf16 %v3160
        %v3165 = vunpack.c.h.bf16 %v3160
        %v3166 = vunpack.c.l.bf16 %v3161
        %v3167 = vunpack.c.h.bf16 %v3161
        %v3168 = vunpack.c.l.bf16 %v3162
        %v3169 = vunpack.c.h.bf16 %v3162
        %v3170 = vunpack.c.l.bf16 %v3163
        %v3171 = vunpack.c.h.bf16 %v3163
        %3180 = vrot.lane.b32.xlu0 %v3164, 96
        %v3181 = vpop.permute.xlu0 %3180
        %3182 = vrot.lane.b32.xlu0 %v3165, 96
        %v3183 = vpop.permute.xlu0 %3182
        %3184 = vrot.lane.b32.xlu0 %v3166, 96
        %v3185 = vpop.permute.xlu0 %3184
        %3186 = vrot.lane.b32.xlu0 %v3167, 96
        %v3187 = vpop.permute.xlu0 %3186
        %3188 = vrot.lane.b32.xlu0 %v3168, 96
        %v3189 = vpop.permute.xlu0 %3188
        %3190 = vrot.lane.b32.xlu0 %v3169, 96
        %v3191 = vpop.permute.xlu0 %3190
        %3192 = vrot.lane.b32.xlu0 %v3170, 96
        %v3193 = vpop.permute.xlu0 %3192
        %3194 = vrot.lane.b32.xlu0 %v3171, 96
        %v3195 = vpop.permute.xlu0 %3194
        %v3204 = vadd.f32 %v2612, %v3181
        %v3205 = vadd.f32 %v2613, %v3183
        %v3206 = vadd.f32 %v2614, %v3185
        %v3207 = vadd.f32 %v2615, %v3187
        %v3208 = vadd.f32 %v2616, %v3189
        %v3209 = vadd.f32 %v2617, %v3191
        %v3210 = vadd.f32 %v2618, %v3193
        %v3211 = vadd.f32 %v2619, %v3195
        %v3212 = vpack.c.bf16 %v3205, %v3204
        %v3213 = vpack.c.bf16 %v3207, %v3206
        %v3214 = vpack.c.bf16 %v3209, %v3208
        %v3215 = vpack.c.bf16 %v3211, %v3210
        %v3220 = vunpack.c.l.b16 %v3212
        %v3221 = vunpack.c.h.b16 %v3212
        %v3222 = vunpack.c.l.b16 %v3213
        %v3223 = vunpack.c.h.b16 %v3213
        %v3224 = vunpack.c.l.b16 %v3214
        %v3225 = vunpack.c.h.b16 %v3214
        %v3226 = vunpack.c.l.b16 %v3215
        %v3227 = vunpack.c.h.b16 %v3215
        %v3228 = vpack.c.b16 %v3220, %v3220
        %v3229 = vpack.c.b16 %v3221, %v3221
        %v3230 = vpack.c.b16 %v3222, %v3222
        %v3231 = vpack.c.b16 %v3223, %v3223
        %v3232 = vpack.c.b16 %v3224, %v3224
        %v3233 = vpack.c.b16 %v3225, %v3225
        %v3234 = vpack.c.b16 %v3226, %v3226
        %v3235 = vpack.c.b16 %v3227, %v3227
        %v3236 = vrot.slane %v3228, 7
        %v3237 = vrot.slane %v3236, 4
        %v3238 = vrot.slane %v3229, 7
        %v3239 = vsel %vm878, %v3237, %v3238
        %v3240 = vrot.slane %v3238, 4
        %v3241 = vrot.slane %v3230, 7
        %v3242 = vsel %vm878, %v3240, %v3241
        %v3243 = vrot.slane %v3241, 4
        %v3244 = vrot.slane %v3231, 7
        %v3245 = vsel %vm878, %v3243, %v3244
        %v3246 = vrot.slane %v3244, 4
        %v3247 = vrot.slane %v3232, 7
        %v3248 = vrot.slane %v3247, 4
        %v3249 = vrot.slane %v3233, 7
        %v3250 = vsel %vm878, %v3248, %v3249
        %v3251 = vrot.slane %v3249, 4
        %v3252 = vrot.slane %v3234, 7
        %v3253 = vsel %vm878, %v3251, %v3252
        %v3254 = vrot.slane %v3252, 4
        %v3255 = vrot.slane %v3235, 7
        %v3256 = vsel %vm878, %v3254, %v3255
        %v3257 = vrot.slane %v3255, 4
        %3268 = vst.msk [vmem:[#allocation3] sm:$0xe] %vm911, %v3236
        %3269 = vst.msk [vmem:[#allocation3 + $0x4] sm:$0xf] %vm913, %v3239
        %3270 = vst.msk [vmem:[#allocation3 + $0x8] sm:$0xf] %vm913, %v3242
        %3271 = vst.msk [vmem:[#allocation3 + $0xc] sm:$0xf] %vm913, %v3245
        %3272 = vst.msk [vmem:[#allocation3 + $0x10] sm:$0x1] %vm834, %v3246
        %3273 = vst.msk [vmem:[#allocation3 + $0x14] sm:$0xe] %vm911, %v3247
        %3274 = vst.msk [vmem:[#allocation3 + $0x18] sm:$0xf] %vm913, %v3250
        %3275 = vst.msk [vmem:[#allocation3 + $0x1c] sm:$0xf] %vm913, %v3253
        %3276 = vst.msk [vmem:[#allocation3 + $0x20] sm:$0xf] %vm913, %v3256
        %3277 = vst.msk [vmem:[#allocation3 + $0x24] sm:$0x1] %vm834, %v3257
        %s3278 = scalar_lea.vmem %s5, 48
        %v3279 = vld [vmem:[%s3278] sm:$0xf]
        %v3280 = vld [vmem:[%s3278 + $0x4] sm:$0xf]
        %v3281 = vld [vmem:[%s3278 + $0x8] sm:$0xf]
        %s3282 = scalar_lea.vmem [#allocation9], 4
        %v3283 = vld [vmem:[%s3282] sm:$0x1]
        %v3285 = vlaneseq
        %v3286 = vshrl.u32 %v3285, 7
        %v3287 = vsub.s32 0, %v3286
        %v3288 = vrot.slane %v3283, %v3287
        %v3290 = vadd.f32 %v3288, 0.0
        %v3291 = vld [vmem:[#allocation3] sm:$0xf]
        %v3292 = vld [vmem:[#allocation3 + $0x4] sm:$0xf]
        %v3293 = vld [vmem:[#allocation3 + $0x8] sm:$0xf]
        %v3294 = vld [vmem:[#allocation3 + $0xc] sm:$0xf]
        %v3295 = vld [vmem:[#allocation3 + $0x14] sm:$0xf]
        %v3296 = vld [vmem:[#allocation3 + $0x18] sm:$0xf]
        %v3297 = vld [vmem:[#allocation3 + $0x1c] sm:$0xf]
        %v3298 = vld [vmem:[#allocation3 + $0x20] sm:$0xf]
        %v3307 = vunpack.c.l.b16 %v3291
        %v3308 = vunpack.c.l.b16 %v3292
        %v3309 = vunpack.c.l.b16 %v3293
        %v3310 = vunpack.c.l.b16 %v3294
        %v3311 = vunpack.c.l.b16 %v3295
        %v3312 = vunpack.c.l.b16 %v3296
        %v3313 = vunpack.c.l.b16 %v3297
        %v3314 = vunpack.c.l.b16 %v3298
        %v3315 = vpack.c.b16 %v3308, %v3307
        %v3316 = vpack.c.b16 %v3310, %v3309
        %v3317 = vpack.c.b16 %v3312, %v3311
        %v3318 = vpack.c.b16 %v3314, %v3313
        %v3320 = vsel %vm962, %v3315, 0
        %v3323 = vsel %vm962, %v3316, 0
        %v3326 = vsel %vm962, %v3317, 0
        %v3329 = vsel %vm962, %v3318, 0
        %v3332 = vsel %vm975, %v3279, 0
        %3334 = vmatprep.subr.bf16.mxu0 0
        %3335 = vmatpush1.bf16.msra.mxu0 %v3332
        %3336 = vmatprep.subr.bf16.mxu0 0
        %3337 = vmatpush1.bf16.msra.mxu0 0
        %3338 = vmatprep.subr.bf16.mxu0 0
        %3339 = vmatpush1.bf16.msra.mxu0 0
        %3340 = vmatprep.subr.bf16.mxu0 0
        %3341 = vmatpush1.bf16.msra.mxu0 0
        %3342 = vmatprep.subr.bf16.mxu0 0
        %3343 = vmatpush1.bf16.msra.mxu0 0
        %3344 = vmatprep.subr.bf16.mxu0 0
        %3345 = vmatpush1.bf16.msra.mxu0 0
        %3346 = vmatprep.subr.bf16.mxu0 0
        %3347 = vmatpush1.bf16.msra.mxu0 0
        %3348 = vmatprep.subr.bf16.mxu0 0
        %3349 = vmatpush1.bf16.msra.mxu0 0
        %3350 = vmatprep.subr.bf16.mxu0 0
        %3351 = vmatpush1.bf16.msra.mxu0 0
        %3352 = vmatprep.subr.bf16.mxu0 0
        %3353 = vmatpush1.bf16.msra.mxu0 0
        %3354 = vmatprep.subr.bf16.mxu0 0
        %3355 = vmatpush1.bf16.msra.mxu0 0
        %3356 = vmatprep.subr.bf16.mxu0 0
        %3357 = vmatpush1.bf16.msra.mxu0 0
        %3358 = vmatprep.subr.bf16.mxu0 0
        %3359 = vmatpush1.bf16.msra.mxu0 0
        %3360 = vmatprep.subr.bf16.mxu0 0
        %3361 = vmatpush1.bf16.msra.mxu0 0
        %3362 = vmatprep.subr.bf16.mxu0 0
        %3363 = vmatpush1.bf16.msra.mxu0 0
        %3364 = vmatprep.subr.bf16.mxu0 0
        %3365 = vmatpush1.bf16.msra.mxu0 0
        %3366 = vmatprep.mubr.bf16.mxu0 0
        %3367 = vmatmul.mubr.bf16.gmra.mrb[0].mxu0 %v3320
        %v3368 = vpop.f32.mrb[0].mxu0
        %v3369 = vadd.f32 0.0, %v3368
        %v3370 = vpop.f32.mrb[0].mxu0
        %v3371 = vpop.f32.mrb[0].mxu0
        %v3372 = vadd.f32 0.0, %v3371
        %v3373 = vpop.f32.mrb[0].mxu0
        %3374 = vmatprep.mubr.bf16.mxu0 0
        %3375 = vmatmul.mubr.bf16.gmra.mrb[0].mxu0 %v3323
        %v3376 = vpop.f32.mrb[0].mxu0
        %v3377 = vadd.f32 0.0, %v3376
        %v3378 = vpop.f32.mrb[0].mxu0
        %v3379 = vpop.f32.mrb[0].mxu0
        %v3380 = vadd.f32 0.0, %v3379
        %v3381 = vpop.f32.mrb[0].mxu0
        %3382 = vmatprep.mubr.bf16.mxu0 0
        %3383 = vmatmul.mubr.bf16.gmra.mrb[0].mxu0 %v3326
        %v3384 = vpop.f32.mrb[0].mxu0
        %v3385 = vadd.f32 0.0, %v3384
        %v3386 = vpop.f32.mrb[0].mxu0
        %v3387 = vpop.f32.mrb[0].mxu0
        %v3388 = vadd.f32 0.0, %v3387
        %v3389 = vpop.f32.mrb[0].mxu0
        %3390 = vmatprep.mubr.bf16.mxu0 0
        %3391 = vmatmul.mubr.bf16.gmra.mrb[0].mxu0 %v3329
        %v3392 = vpop.f32.mrb[0].mxu0
        %v3393 = vadd.f32 0.0, %v3392
        %v3394 = vpop.f32.mrb[0].mxu0
        %v3395 = vpop.f32.mrb[0].mxu0
        %v3396 = vadd.f32 0.0, %v3395
        %v3397 = vpop.f32.mrb[0].mxu0
        %3398 = vdwg.mxu0
        %v3399 = vadd.f32 %v3290, %v3369
        %v3400 = vadd.f32 %v3290, %v3372
        %v3401 = vadd.f32 %v3290, %v3377
        %v3402 = vadd.f32 %v3290, %v3380
        %v3403 = vadd.f32 %v3290, %v3385
        %v3404 = vadd.f32 %v3290, %v3388
        %v3405 = vadd.f32 %v3290, %v3393
        %v3406 = vadd.f32 %v3290, %v3396
        %v3407 = vld [vmem:[#allocation3] sm:$0xe]
        %v3408 = vld [vmem:[#allocation3 + $0x4] sm:$0xf]
        %v3409 = vld [vmem:[#allocation3 + $0x8] sm:$0xf]
        %v3410 = vld [vmem:[#allocation3 + $0xc] sm:$0xf]
        %v3411 = vld [vmem:[#allocation3 + $0x10] sm:$0x1]
        %v3412 = vld [vmem:[#allocation3 + $0x14] sm:$0xe]
        %v3413 = vld [vmem:[#allocation3 + $0x18] sm:$0xf]
        %v3414 = vld [vmem:[#allocation3 + $0x1c] sm:$0xf]
        %v3415 = vld [vmem:[#allocation3 + $0x20] sm:$0xf]
        %v3416 = vld [vmem:[#allocation3 + $0x24] sm:$0x1]
        %v3427 = vrot.slane %v3407, 5
        %v3428 = vrot.slane %v3427, 4
        %v3429 = vrot.slane %v3408, 5
        %v3430 = vsel %vm1074, %v3428, %v3429
        %v3431 = vrot.slane %v3429, 4
        %v3432 = vrot.slane %v3409, 5
        %v3433 = vsel %vm1074, %v3431, %v3432
        %v3434 = vrot.slane %v3432, 4
        %v3435 = vrot.slane %v3410, 5
        %v3436 = vsel %vm1074, %v3434, %v3435
        %v3437 = vrot.slane %v3435, 4
        %v3438 = vrot.slane %v3411, 5
        %v3439 = vsel %vm1074, %v3437, %v3438
        %v3440 = vrot.slane %v3412, 5
        %v3441 = vrot.slane %v3440, 4
        %v3442 = vrot.slane %v3413, 5
        %v3443 = vsel %vm1074, %v3441, %v3442
        %v3444 = vrot.slane %v3442, 4
        %v3445 = vrot.slane %v3414, 5
        %v3446 = vsel %vm1074, %v3444, %v3445
        %v3447 = vrot.slane %v3445, 4
        %v3448 = vrot.slane %v3415, 5
        %v3449 = vsel %vm1074, %v3447, %v3448
        %v3450 = vrot.slane %v3448, 4
        %v3451 = vrot.slane %v3416, 5
        %v3452 = vsel %vm1074, %v3450, %v3451
        %v3453 = vunpack.c.l.b16 %v3430
        %v3454 = vunpack.c.l.b16 %v3433
        %v3455 = vunpack.c.l.b16 %v3436
        %v3456 = vunpack.c.l.b16 %v3439
        %v3457 = vunpack.c.l.b16 %v3443
        %v3458 = vunpack.c.l.b16 %v3446
        %v3459 = vunpack.c.l.b16 %v3449
        %v3460 = vunpack.c.l.b16 %v3452
        %v3461 = vpack.c.b16 %v3454, %v3453
        %v3462 = vpack.c.b16 %v3456, %v3455
        %v3463 = vpack.c.b16 %v3458, %v3457
        %v3464 = vpack.c.b16 %v3460, %v3459
        %v3466 = vsel %vm962, %v3461, 0
        %v3469 = vsel %vm962, %v3462, 0
        %v3472 = vsel %vm962, %v3463, 0
        %v3475 = vsel %vm962, %v3464, 0
        %v3478 = vsel %vm975, %v3280, 0
        %3480 = vmatprep.subr.bf16.mxu0 0
        %3481 = vmatpush1.bf16.msra.mxu0 %v3478
        %3482 = vmatprep.subr.bf16.mxu0 0
        %3483 = vmatpush1.bf16.msra.mxu0 0
        %3484 = vmatprep.subr.bf16.mxu0 0
        %3485 = vmatpush1.bf16.msra.mxu0 0
        %3486 = vmatprep.subr.bf16.mxu0 0
        %3487 = vmatpush1.bf16.msra.mxu0 0
        %3488 = vmatprep.subr.bf16.mxu0 0
        %3489 = vmatpush1.bf16.msra.mxu0 0
        %3490 = vmatprep.subr.bf16.mxu0 0
        %3491 = vmatpush1.bf16.msra.mxu0 0
        %3492 = vmatprep.subr.bf16.mxu0 0
        %3493 = vmatpush1.bf16.msra.mxu0 0
        %3494 = vmatprep.subr.bf16.mxu0 0
        %3495 = vmatpush1.bf16.msra.mxu0 0
        %3496 = vmatprep.subr.bf16.mxu0 0
        %3497 = vmatpush1.bf16.msra.mxu0 0
        %3498 = vmatprep.subr.bf16.mxu0 0
        %3499 = vmatpush1.bf16.msra.mxu0 0
        %3500 = vmatprep.subr.bf16.mxu0 0
        %3501 = vmatpush1.bf16.msra.mxu0 0
        %3502 = vmatprep.subr.bf16.mxu0 0
        %3503 = vmatpush1.bf16.msra.mxu0 0
        %3504 = vmatprep.subr.bf16.mxu0 0
        %3505 = vmatpush1.bf16.msra.mxu0 0
        %3506 = vmatprep.subr.bf16.mxu0 0
        %3507 = vmatpush1.bf16.msra.mxu0 0
        %3508 = vmatprep.subr.bf16.mxu0 0
        %3509 = vmatpush1.bf16.msra.mxu0 0
        %3510 = vmatprep.subr.bf16.mxu0 0
        %3511 = vmatpush1.bf16.msra.mxu0 0
        %3512 = vmatprep.mubr.bf16.mxu0 0
        %3513 = vmatmul.mubr.bf16.gmra.mrb[0].mxu0 %v3466
        %v3514 = vpop.f32.mrb[0].mxu0
        %v3515 = vadd.f32 0.0, %v3514
        %v3516 = vpop.f32.mrb[0].mxu0
        %v3517 = vpop.f32.mrb[0].mxu0
        %v3518 = vadd.f32 0.0, %v3517
        %v3519 = vpop.f32.mrb[0].mxu0
        %3520 = vmatprep.mubr.bf16.mxu0 0
        %3521 = vmatmul.mubr.bf16.gmra.mrb[0].mxu0 %v3469
        %v3522 = vpop.f32.mrb[0].mxu0
        %v3523 = vadd.f32 0.0, %v3522
        %v3524 = vpop.f32.mrb[0].mxu0
        %v3525 = vpop.f32.mrb[0].mxu0
        %v3526 = vadd.f32 0.0, %v3525
        %v3527 = vpop.f32.mrb[0].mxu0
        %3528 = vmatprep.mubr.bf16.mxu0 0
        %3529 = vmatmul.mubr.bf16.gmra.mrb[0].mxu0 %v3472
        %v3530 = vpop.f32.mrb[0].mxu0
        %v3531 = vadd.f32 0.0, %v3530
        %v3532 = vpop.f32.mrb[0].mxu0
        %v3533 = vpop.f32.mrb[0].mxu0
        %v3534 = vadd.f32 0.0, %v3533
        %v3535 = vpop.f32.mrb[0].mxu0
        %3536 = vmatprep.mubr.bf16.mxu0 0
        %3537 = vmatmul.mubr.bf16.gmra.mrb[0].mxu0 %v3475
        %v3538 = vpop.f32.mrb[0].mxu0
        %v3539 = vadd.f32 0.0, %v3538
        %v3540 = vpop.f32.mrb[0].mxu0
        %v3541 = vpop.f32.mrb[0].mxu0
        %v3542 = vadd.f32 0.0, %v3541
        %v3543 = vpop.f32.mrb[0].mxu0
        %3544 = vdwg.mxu0
        %v3545 = vadd.f32 %v3399, %v3515
        %v3546 = vadd.f32 %v3400, %v3518
        %v3547 = vadd.f32 %v3401, %v3523
        %v3548 = vadd.f32 %v3402, %v3526
        %v3549 = vadd.f32 %v3403, %v3531
        %v3550 = vadd.f32 %v3404, %v3534
        %v3551 = vadd.f32 %v3405, %v3539
        %v3552 = vadd.f32 %v3406, %v3542
        %v3553 = vld [vmem:[#allocation3] sm:$0xc]
        %v3554 = vld [vmem:[#allocation3 + $0x10] sm:$0x3]
        %v3555 = vld [vmem:[#allocation3 + $0x14] sm:$0xc]
        %v3556 = vld [vmem:[#allocation3 + $0x24] sm:$0x3]
        %v3561 = vrot.slane %v3553, 6
        %v3562 = vrot.slane %v3561, 4
        %v3563 = vrot.slane %v3408, 6
        %v3564 = vsel %vm1211, %v3562, %v3563
        %v3565 = vrot.slane %v3563, 4
        %v3566 = vrot.slane %v3409, 6
        %v3567 = vsel %vm1211, %v3565, %v3566
        %v3568 = vrot.slane %v3566, 4
        %v3569 = vrot.slane %v3410, 6
        %v3570 = vsel %vm1211, %v3568, %v3569
        %v3571 = vrot.slane %v3569, 4
        %v3572 = vrot.slane %v3554, 6
        %v3573 = vsel %vm1211, %v3571, %v3572
        %v3574 = vrot.slane %v3555, 6
        %v3575 = vrot.slane %v3574, 4
        %v3576 = vrot.slane %v3413, 6
        %v3577 = vsel %vm1211, %v3575, %v3576
        %v3578 = vrot.slane %v3576, 4
        %v3579 = vrot.slane %v3414, 6
        %v3580 = vsel %vm1211, %v3578, %v3579
        %v3581 = vrot.slane %v3579, 4
        %v3582 = vrot.slane %v3415, 6
        %v3583 = vsel %vm1211, %v3581, %v3582
        %v3584 = vrot.slane %v3582, 4
        %v3585 = vrot.slane %v3556, 6
        %v3586 = vsel %vm1211, %v3584, %v3585
        %v3587 = vunpack.c.l.b16 %v3564
        %v3588 = vunpack.c.l.b16 %v3567
        %v3589 = vunpack.c.l.b16 %v3570
        %v3590 = vunpack.c.l.b16 %v3573
        %v3591 = vunpack.c.l.b16 %v3577
        %v3592 = vunpack.c.l.b16 %v3580
        %v3593 = vunpack.c.l.b16 %v3583
        %v3594 = vunpack.c.l.b16 %v3586
        %v3595 = vpack.c.b16 %v3588, %v3587
        %v3596 = vpack.c.b16 %v3590, %v3589
        %v3597 = vpack.c.b16 %v3592, %v3591
        %v3598 = vpack.c.b16 %v3594, %v3593
        %v3600 = vsel %vm962, %v3595, 0
        %v3603 = vsel %vm962, %v3596, 0
        %v3606 = vsel %vm962, %v3597, 0
        %v3609 = vsel %vm962, %v3598, 0
        %v3612 = vsel %vm975, %v3281, 0
        %3614 = vmatprep.subr.bf16.mxu0 0
        %3615 = vmatpush1.bf16.msra.mxu0 %v3612
        %3616 = vmatprep.subr.bf16.mxu0 0
        %3617 = vmatpush1.bf16.msra.mxu0 0
        %3618 = vmatprep.subr.bf16.mxu0 0
        %3619 = vmatpush1.bf16.msra.mxu0 0
        %3620 = vmatprep.subr.bf16.mxu0 0
        %3621 = vmatpush1.bf16.msra.mxu0 0
        %3622 = vmatprep.subr.bf16.mxu0 0
        %3623 = vmatpush1.bf16.msra.mxu0 0
        %3624 = vmatprep.subr.bf16.mxu0 0
        %3625 = vmatpush1.bf16.msra.mxu0 0
        %3626 = vmatprep.subr.bf16.mxu0 0
        %3627 = vmatpush1.bf16.msra.mxu0 0
        %3628 = vmatprep.subr.bf16.mxu0 0
        %3629 = vmatpush1.bf16.msra.mxu0 0
        %3630 = vmatprep.subr.bf16.mxu0 0
        %3631 = vmatpush1.bf16.msra.mxu0 0
        %3632 = vmatprep.subr.bf16.mxu0 0
        %3633 = vmatpush1.bf16.msra.mxu0 0
        %3634 = vmatprep.subr.bf16.mxu0 0
        %3635 = vmatpush1.bf16.msra.mxu0 0
        %3636 = vmatprep.subr.bf16.mxu0 0
        %3637 = vmatpush1.bf16.msra.mxu0 0
        %3638 = vmatprep.subr.bf16.mxu0 0
        %3639 = vmatpush1.bf16.msra.mxu0 0
        %3640 = vmatprep.subr.bf16.mxu0 0
        %3641 = vmatpush1.bf16.msra.mxu0 0
        %3642 = vmatprep.subr.bf16.mxu0 0
        %3643 = vmatpush1.bf16.msra.mxu0 0
        %3644 = vmatprep.subr.bf16.mxu0 0
        %3645 = vmatpush1.bf16.msra.mxu0 0
        %3646 = vmatprep.mubr.bf16.mxu0 0
        %3647 = vmatmul.mubr.bf16.gmra.mrb[0].mxu0 %v3600
        %v3648 = vpop.f32.mrb[0].mxu0
        %v3649 = vadd.f32 0.0, %v3648
        %v3650 = vpop.f32.mrb[0].mxu0
        %v3651 = vpop.f32.mrb[0].mxu0
        %v3652 = vadd.f32 0.0, %v3651
        %v3653 = vpop.f32.mrb[0].mxu0
        %3654 = vmatprep.mubr.bf16.mxu0 0
        %3655 = vmatmul.mubr.bf16.gmra.mrb[0].mxu0 %v3603
        %v3656 = vpop.f32.mrb[0].mxu0
        %v3657 = vadd.f32 0.0, %v3656
        %v3658 = vpop.f32.mrb[0].mxu0
        %v3659 = vpop.f32.mrb[0].mxu0
        %v3660 = vadd.f32 0.0, %v3659
        %v3661 = vpop.f32.mrb[0].mxu0
        %3662 = vmatprep.mubr.bf16.mxu0 0
        %3663 = vmatmul.mubr.bf16.gmra.mrb[0].mxu0 %v3606
        %v3664 = vpop.f32.mrb[0].mxu0
        %v3665 = vadd.f32 0.0, %v3664
        %v3666 = vpop.f32.mrb[0].mxu0
        %v3667 = vpop.f32.mrb[0].mxu0
        %v3668 = vadd.f32 0.0, %v3667
        %v3669 = vpop.f32.mrb[0].mxu0
        %3670 = vmatprep.mubr.bf16.mxu0 0
        %3671 = vmatmul.mubr.bf16.gmra.mrb[0].mxu0 %v3609
        %v3672 = vpop.f32.mrb[0].mxu0
        %v3673 = vadd.f32 0.0, %v3672
        %v3674 = vpop.f32.mrb[0].mxu0
        %v3675 = vpop.f32.mrb[0].mxu0
        %v3676 = vadd.f32 0.0, %v3675
        %v3677 = vpop.f32.mrb[0].mxu0
        %3678 = vdwg.mxu0
        %v3679 = vadd.f32 %v3545, %v3649
        %v3680 = vadd.f32 %v3546, %v3652
        %v3681 = vadd.f32 %v3547, %v3657
        %v3682 = vadd.f32 %v3548, %v3660
        %v3683 = vadd.f32 %v3549, %v3665
        %v3684 = vadd.f32 %v3550, %v3668
        %v3685 = vadd.f32 %v3551, %v3673
        %v3686 = vadd.f32 %v3552, %v3676
        %v3687 = vmax.f32 %v3679, 0.0
        %v3688 = vmax.f32 %v3680, 0.0
        %v3689 = vmax.f32 %v3681, 0.0
        %v3690 = vmax.f32 %v3682, 0.0
        %v3691 = vmax.f32 %v3683, 0.0
        %v3692 = vmax.f32 %v3684, 0.0
        %v3693 = vmax.f32 %v3685, 0.0
        %v3694 = vmax.f32 %v3686, 0.0
        %s3695 = scalar_lea.vmem %s7, 4
        %v3696 = vld [vmem:[%s3695] sm:$0x1]
        %v3698 = vlaneseq
        %v3699 = vshrl.u32 %v3698, 7
        %v3700 = vsub.s32 0, %v3699
        %v3701 = vrot.slane %v3696, %v3700
        %v3703 = vmul.f32 %v3687, %v3701
        %v3704 = vmul.f32 %v3688, %v3701
        %v3705 = vmul.f32 %v3689, %v3701
        %v3706 = vmul.f32 %v3690, %v3701
        %v3707 = vmul.f32 %v3691, %v3701
        %v3708 = vmul.f32 %v3692, %v3701
        %v3709 = vmul.f32 %v3693, %v3701
        %v3710 = vmul.f32 %v3694, %v3701
        %s3711 = scalar_lea.vmem [#allocation10], 4
        %v3712 = vld [vmem:[%s3711] sm:$0x1]
        %v3714 = vlaneseq
        %v3715 = vshrl.u32 %v3714, 7
        %v3716 = vsub.s32 0, %v3715
        %v3717 = vrot.slane %v3712, %v3716
        %v3719 = vadd.f32 %v3703, %v3717
        %v3720 = vadd.f32 %v3704, %v3717
        %v3721 = vadd.f32 %v3705, %v3717
        %v3722 = vadd.f32 %v3706, %v3717
        %v3723 = vadd.f32 %v3707, %v3717
        %v3724 = vadd.f32 %v3708, %v3717
        %v3725 = vadd.f32 %v3709, %v3717
        %v3726 = vadd.f32 %v3710, %v3717
        %v3727 = vpack.c.bf16 %v3720, %v3719
        %v3728 = vpack.c.bf16 %v3722, %v3721
        %v3729 = vpack.c.bf16 %v3724, %v3723
        %v3730 = vpack.c.bf16 %v3726, %v3725
        %3735 = vrot.lane.b32.xlu0 %v3727, 32
        %v3736 = vpop.permute.xlu0 %3735
        %3737 = vrot.lane.b32.xlu0 %v3728, 32
        %v3738 = vpop.permute.xlu0 %3737
        %3739 = vrot.lane.b32.xlu0 %v3729, 32
        %v3740 = vpop.permute.xlu0 %3739
        %3741 = vrot.lane.b32.xlu0 %v3730, 32
        %v3742 = vpop.permute.xlu0 %3741
        %vm3747 = vcmask 326912
        %3748 = vst.msk [vmem:[#allocation2] sm:$0xff] %vm3747, %v3736
        %3749 = vst.msk [vmem:[#allocation2 + $0x8] sm:$0xff] %vm3747, %v3738
        %3750 = vst.msk [vmem:[#allocation2 + $0x10] sm:$0xff] %vm3747, %v3740
        %3751 = vst.msk [vmem:[#allocation2 + $0x18] sm:$0xff] %vm3747, %v3742
        %v3752 = vld [vmem:[#allocation2] sm:$0xff]
        %v3753 = vld [vmem:[#allocation2 + $0x8] sm:$0xff]
        %v3754 = vld [vmem:[#allocation2 + $0x10] sm:$0xff]
        %v3755 = vld [vmem:[#allocation2 + $0x18] sm:$0xff]
        %v3756 = vunpack.c.l.bf16 %v3752
        %v3757 = vunpack.c.h.bf16 %v3752
        %v3758 = vunpack.c.l.bf16 %v3753
        %v3759 = vunpack.c.h.bf16 %v3753
        %v3760 = vunpack.c.l.bf16 %v3754
        %v3761 = vunpack.c.h.bf16 %v3754
        %v3762 = vunpack.c.l.bf16 %v3755
        %v3763 = vunpack.c.h.bf16 %v3755
        %3772 = vrot.lane.b32.xlu0 %v3756, 88
        %v3773 = vpop.permute.xlu0 %3772
        %3774 = vrot.lane.b32.xlu0 %v3757, 88
        %v3775 = vpop.permute.xlu0 %3774
        %3776 = vrot.lane.b32.xlu0 %v3758, 88
        %v3777 = vpop.permute.xlu0 %3776
        %3778 = vrot.lane.b32.xlu0 %v3759, 88
        %v3779 = vpop.permute.xlu0 %3778
        %3780 = vrot.lane.b32.xlu0 %v3760, 88
        %v3781 = vpop.permute.xlu0 %3780
        %3782 = vrot.lane.b32.xlu0 %v3761, 88
        %v3783 = vpop.permute.xlu0 %3782
        %3784 = vrot.lane.b32.xlu0 %v3762, 88
        %v3785 = vpop.permute.xlu0 %3784
        %3786 = vrot.lane.b32.xlu0 %v3763, 88
        %v3787 = vpop.permute.xlu0 %3786
        %v3796 = vadd.f32 %v3204, %v3773
        %v3797 = vadd.f32 %v3205, %v3775
        %v3798 = vadd.f32 %v3206, %v3777
        %v3799 = vadd.f32 %v3207, %v3779
        %v3800 = vadd.f32 %v3208, %v3781
        %v3801 = vadd.f32 %v3209, %v3783
        %v3802 = vadd.f32 %v3210, %v3785
        %v3803 = vadd.f32 %v3211, %v3787
        %v3804 = vpack.c.bf16 %v3797, %v3796
        %v3805 = vpack.c.bf16 %v3799, %v3798
        %v3806 = vpack.c.bf16 %v3801, %v3800
        %v3807 = vpack.c.bf16 %v3803, %v3802
        %v3812 = vunpack.c.l.b16 %v3804
        %v3813 = vunpack.c.h.b16 %v3804
        %v3814 = vunpack.c.l.b16 %v3805
        %v3815 = vunpack.c.h.b16 %v3805
        %v3816 = vunpack.c.l.b16 %v3806
        %v3817 = vunpack.c.h.b16 %v3806
        %v3818 = vunpack.c.l.b16 %v3807
        %v3819 = vunpack.c.h.b16 %v3807
        %v3820 = vpack.c.b16 %v3812, %v3812
        %v3821 = vpack.c.b16 %v3813, %v3813
        %v3822 = vpack.c.b16 %v3814, %v3814
        %v3823 = vpack.c.b16 %v3815, %v3815
        %v3824 = vpack.c.b16 %v3816, %v3816
        %v3825 = vpack.c.b16 %v3817, %v3817
        %v3826 = vpack.c.b16 %v3818, %v3818
        %v3827 = vpack.c.b16 %v3819, %v3819
        %v3828 = vrot.slane %v3820, 7
        %v3829 = vrot.slane %v3828, 4
        %v3830 = vrot.slane %v3821, 7
        %v3831 = vsel %vm878, %v3829, %v3830
        %v3832 = vrot.slane %v3830, 4
        %v3833 = vrot.slane %v3822, 7
        %v3834 = vsel %vm878, %v3832, %v3833
        %v3835 = vrot.slane %v3833, 4
        %v3836 = vrot.slane %v3823, 7
        %v3837 = vsel %vm878, %v3835, %v3836
        %v3838 = vrot.slane %v3836, 4
        %v3839 = vrot.slane %v3824, 7
        %v3840 = vrot.slane %v3839, 4
        %v3841 = vrot.slane %v3825, 7
        %v3842 = vsel %vm878, %v3840, %v3841
        %v3843 = vrot.slane %v3841, 4
        %v3844 = vrot.slane %v3826, 7
        %v3845 = vsel %vm878, %v3843, %v3844
        %v3846 = vrot.slane %v3844, 4
        %v3847 = vrot.slane %v3827, 7
        %v3848 = vsel %vm878, %v3846, %v3847
        %v3849 = vrot.slane %v3847, 4
        %3860 = vst.msk [vmem:[#allocation3] sm:$0xe] %vm911, %v3828
        %3861 = vst.msk [vmem:[#allocation3 + $0x4] sm:$0xf] %vm913, %v3831
        %3862 = vst.msk [vmem:[#allocation3 + $0x8] sm:$0xf] %vm913, %v3834
        %3863 = vst.msk [vmem:[#allocation3 + $0xc] sm:$0xf] %vm913, %v3837
        %3864 = vst.msk [vmem:[#allocation3 + $0x10] sm:$0x1] %vm834, %v3838
        %3865 = vst.msk [vmem:[#allocation3 + $0x14] sm:$0xe] %vm911, %v3839
        %3866 = vst.msk [vmem:[#allocation3 + $0x18] sm:$0xf] %vm913, %v3842
        %3867 = vst.msk [vmem:[#allocation3 + $0x1c] sm:$0xf] %vm913, %v3845
        %3868 = vst.msk [vmem:[#allocation3 + $0x20] sm:$0xf] %vm913, %v3848
        %3869 = vst.msk [vmem:[#allocation3 + $0x24] sm:$0x1] %vm834, %v3849
        %s3870 = scalar_lea.vmem %s5, 60
        %v3871 = vld [vmem:[%s3870] sm:$0xf]
        %v3872 = vld [vmem:[%s3870 + $0x4] sm:$0xf]
        %v3873 = vld [vmem:[%s3870 + $0x8] sm:$0xf]
        %s3874 = scalar_lea.vmem [#allocation9], 5
        %v3875 = vld [vmem:[%s3874] sm:$0x1]
        %v3877 = vlaneseq
        %v3878 = vshrl.u32 %v3877, 7
        %v3879 = vsub.s32 0, %v3878
        %v3880 = vrot.slane %v3875, %v3879
        %v3882 = vadd.f32 %v3880, 0.0
        %v3883 = vld [vmem:[#allocation3] sm:$0xf]
        %v3884 = vld [vmem:[#allocation3 + $0x4] sm:$0xf]
        %v3885 = vld [vmem:[#allocation3 + $0x8] sm:$0xf]
        %v3886 = vld [vmem:[#allocation3 + $0xc] sm:$0xf]
        %v3887 = vld [vmem:[#allocation3 + $0x14] sm:$0xf]
        %v3888 = vld [vmem:[#allocation3 + $0x18] sm:$0xf]
        %v3889 = vld [vmem:[#allocation3 + $0x1c] sm:$0xf]
        %v3890 = vld [vmem:[#allocation3 + $0x20] sm:$0xf]
        %v3899 = vunpack.c.l.b16 %v3883
        %v3900 = vunpack.c.l.b16 %v3884
        %v3901 = vunpack.c.l.b16 %v3885
        %v3902 = vunpack.c.l.b16 %v3886
        %v3903 = vunpack.c.l.b16 %v3887
        %v3904 = vunpack.c.l.b16 %v3888
        %v3905 = vunpack.c.l.b16 %v3889
        %v3906 = vunpack.c.l.b16 %v3890
        %v3907 = vpack.c.b16 %v3900, %v3899
        %v3908 = vpack.c.b16 %v3902, %v3901
        %v3909 = vpack.c.b16 %v3904, %v3903
        %v3910 = vpack.c.b16 %v3906, %v3905
        %v3912 = vsel %vm962, %v3907, 0
        %v3915 = vsel %vm962, %v3908, 0
        %v3918 = vsel %vm962, %v3909, 0
        %v3921 = vsel %vm962, %v3910, 0
        %v3924 = vsel %vm975, %v3871, 0
        %3926 = vmatprep.subr.bf16.mxu0 0
        %3927 = vmatpush1.bf16.msra.mxu0 %v3924
        %3928 = vmatprep.subr.bf16.mxu0 0
        %3929 = vmatpush1.bf16.msra.mxu0 0
        %3930 = vmatprep.subr.bf16.mxu0 0
        %3931 = vmatpush1.bf16.msra.mxu0 0
        %3932 = vmatprep.subr.bf16.mxu0 0
        %3933 = vmatpush1.bf16.msra.mxu0 0
        %3934 = vmatprep.subr.bf16.mxu0 0
        %3935 = vmatpush1.bf16.msra.mxu0 0
        %3936 = vmatprep.subr.bf16.mxu0 0
        %3937 = vmatpush1.bf16.msra.mxu0 0
        %3938 = vmatprep.subr.bf16.mxu0 0
        %3939 = vmatpush1.bf16.msra.mxu0 0
        %3940 = vmatprep.subr.bf16.mxu0 0
        %3941 = vmatpush1.bf16.msra.mxu0 0
        %3942 = vmatprep.subr.bf16.mxu0 0
        %3943 = vmatpush1.bf16.msra.mxu0 0
        %3944 = vmatprep.subr.bf16.mxu0 0
        %3945 = vmatpush1.bf16.msra.mxu0 0
        %3946 = vmatprep.subr.bf16.mxu0 0
        %3947 = vmatpush1.bf16.msra.mxu0 0
        %3948 = vmatprep.subr.bf16.mxu0 0
        %3949 = vmatpush1.bf16.msra.mxu0 0
        %3950 = vmatprep.subr.bf16.mxu0 0
        %3951 = vmatpush1.bf16.msra.mxu0 0
        %3952 = vmatprep.subr.bf16.mxu0 0
        %3953 = vmatpush1.bf16.msra.mxu0 0
        %3954 = vmatprep.subr.bf16.mxu0 0
        %3955 = vmatpush1.bf16.msra.mxu0 0
        %3956 = vmatprep.subr.bf16.mxu0 0
        %3957 = vmatpush1.bf16.msra.mxu0 0
        %3958 = vmatprep.mubr.bf16.mxu0 0
        %3959 = vmatmul.mubr.bf16.gmra.mrb[0].mxu0 %v3912
        %v3960 = vpop.f32.mrb[0].mxu0
        %v3961 = vadd.f32 0.0, %v3960
        %v3962 = vpop.f32.mrb[0].mxu0
        %v3963 = vpop.f32.mrb[0].mxu0
        %v3964 = vadd.f32 0.0, %v3963
        %v3965 = vpop.f32.mrb[0].mxu0
        %3966 = vmatprep.mubr.bf16.mxu0 0
        %3967 = vmatmul.mubr.bf16.gmra.mrb[0].mxu0 %v3915
        %v3968 = vpop.f32.mrb[0].mxu0
        %v3969 = vadd.f32 0.0, %v3968
        %v3970 = vpop.f32.mrb[0].mxu0
        %v3971 = vpop.f32.mrb[0].mxu0
        %v3972 = vadd.f32 0.0, %v3971
        %v3973 = vpop.f32.mrb[0].mxu0
        %3974 = vmatprep.mubr.bf16.mxu0 0
        %3975 = vmatmul.mubr.bf16.gmra.mrb[0].mxu0 %v3918
        %v3976 = vpop.f32.mrb[0].mxu0
        %v3977 = vadd.f32 0.0, %v3976
        %v3978 = vpop.f32.mrb[0].mxu0
        %v3979 = vpop.f32.mrb[0].mxu0
        %v3980 = vadd.f32 0.0, %v3979
        %v3981 = vpop.f32.mrb[0].mxu0
        %3982 = vmatprep.mubr.bf16.mxu0 0
        %3983 = vmatmul.mubr.bf16.gmra.mrb[0].mxu0 %v3921
        %v3984 = vpop.f32.mrb[0].mxu0
        %v3985 = vadd.f32 0.0, %v3984
        %v3986 = vpop.f32.mrb[0].mxu0
        %v3987 = vpop.f32.mrb[0].mxu0
        %v3988 = vadd.f32 0.0, %v3987
        %v3989 = vpop.f32.mrb[0].mxu0
        %3990 = vdwg.mxu0
        %v3991 = vadd.f32 %v3882, %v3961
        %v3992 = vadd.f32 %v3882, %v3964
        %v3993 = vadd.f32 %v3882, %v3969
        %v3994 = vadd.f32 %v3882, %v3972
        %v3995 = vadd.f32 %v3882, %v3977
        %v3996 = vadd.f32 %v3882, %v3980
        %v3997 = vadd.f32 %v3882, %v3985
        %v3998 = vadd.f32 %v3882, %v3988
        %v3999 = vld [vmem:[#allocation3] sm:$0xe]
        %v4000 = vld [vmem:[#allocation3 + $0x4] sm:$0xf]
        %v4001 = vld [vmem:[#allocation3 + $0x8] sm:$0xf]
        %v4002 = vld [vmem:[#allocation3 + $0xc] sm:$0xf]
        %v4003 = vld [vmem:[#allocation3 + $0x10] sm:$0x1]
        %v4004 = vld [vmem:[#allocation3 + $0x14] sm:$0xe]
        %v4005 = vld [vmem:[#allocation3 + $0x18] sm:$0xf]
        %v4006 = vld [vmem:[#allocation3 + $0x1c] sm:$0xf]
        %v4007 = vld [vmem:[#allocation3 + $0x20] sm:$0xf]
        %v4008 = vld [vmem:[#allocation3 + $0x24] sm:$0x1]
        %v4019 = vrot.slane %v3999, 5
        %v4020 = vrot.slane %v4019, 4
        %v4021 = vrot.slane %v4000, 5
        %v4022 = vsel %vm1074, %v4020, %v4021
        %v4023 = vrot.slane %v4021, 4
        %v4024 = vrot.slane %v4001, 5
        %v4025 = vsel %vm1074, %v4023, %v4024
        %v4026 = vrot.slane %v4024, 4
        %v4027 = vrot.slane %v4002, 5
        %v4028 = vsel %vm1074, %v4026, %v4027
        %v4029 = vrot.slane %v4027, 4
        %v4030 = vrot.slane %v4003, 5
        %v4031 = vsel %vm1074, %v4029, %v4030
        %v4032 = vrot.slane %v4004, 5
        %v4033 = vrot.slane %v4032, 4
        %v4034 = vrot.slane %v4005, 5
        %v4035 = vsel %vm1074, %v4033, %v4034
        %v4036 = vrot.slane %v4034, 4
        %v4037 = vrot.slane %v4006, 5
        %v4038 = vsel %vm1074, %v4036, %v4037
        %v4039 = vrot.slane %v4037, 4
        %v4040 = vrot.slane %v4007, 5
        %v4041 = vsel %vm1074, %v4039, %v4040
        %v4042 = vrot.slane %v4040, 4
        %v4043 = vrot.slane %v4008, 5
        %v4044 = vsel %vm1074, %v4042, %v4043
        %v4045 = vunpack.c.l.b16 %v4022
        %v4046 = vunpack.c.l.b16 %v4025
        %v4047 = vunpack.c.l.b16 %v4028
        %v4048 = vunpack.c.l.b16 %v4031
        %v4049 = vunpack.c.l.b16 %v4035
        %v4050 = vunpack.c.l.b16 %v4038
        %v4051 = vunpack.c.l.b16 %v4041
        %v4052 = vunpack.c.l.b16 %v4044
        %v4053 = vpack.c.b16 %v4046, %v4045
        %v4054 = vpack.c.b16 %v4048, %v4047
        %v4055 = vpack.c.b16 %v4050, %v4049
        %v4056 = vpack.c.b16 %v4052, %v4051
        %v4058 = vsel %vm962, %v4053, 0
        %v4061 = vsel %vm962, %v4054, 0
        %v4064 = vsel %vm962, %v4055, 0
        %v4067 = vsel %vm962, %v4056, 0
        %v4070 = vsel %vm975, %v3872, 0
        %4072 = vmatprep.subr.bf16.mxu0 0
        %4073 = vmatpush1.bf16.msra.mxu0 %v4070
        %4074 = vmatprep.subr.bf16.mxu0 0
        %4075 = vmatpush1.bf16.msra.mxu0 0
        %4076 = vmatprep.subr.bf16.mxu0 0
        %4077 = vmatpush1.bf16.msra.mxu0 0
        %4078 = vmatprep.subr.bf16.mxu0 0
        %4079 = vmatpush1.bf16.msra.mxu0 0
        %4080 = vmatprep.subr.bf16.mxu0 0
        %4081 = vmatpush1.bf16.msra.mxu0 0
        %4082 = vmatprep.subr.bf16.mxu0 0
        %4083 = vmatpush1.bf16.msra.mxu0 0
        %4084 = vmatprep.subr.bf16.mxu0 0
        %4085 = vmatpush1.bf16.msra.mxu0 0
        %4086 = vmatprep.subr.bf16.mxu0 0
        %4087 = vmatpush1.bf16.msra.mxu0 0
        %4088 = vmatprep.subr.bf16.mxu0 0
        %4089 = vmatpush1.bf16.msra.mxu0 0
        %4090 = vmatprep.subr.bf16.mxu0 0
        %4091 = vmatpush1.bf16.msra.mxu0 0
        %4092 = vmatprep.subr.bf16.mxu0 0
        %4093 = vmatpush1.bf16.msra.mxu0 0
        %4094 = vmatprep.subr.bf16.mxu0 0
        %4095 = vmatpush1.bf16.msra.mxu0 0
        %4096 = vmatprep.subr.bf16.mxu0 0
        %4097 = vmatpush1.bf16.msra.mxu0 0
        %4098 = vmatprep.subr.bf16.mxu0 0
        %4099 = vmatpush1.bf16.msra.mxu0 0
        %4100 = vmatprep.subr.bf16.mxu0 0
        %4101 = vmatpush1.bf16.msra.mxu0 0
        %4102 = vmatprep.subr.bf16.mxu0 0
        %4103 = vmatpush1.bf16.msra.mxu0 0
        %4104 = vmatprep.mubr.bf16.mxu0 0
        %4105 = vmatmul.mubr.bf16.gmra.mrb[0].mxu0 %v4058
        %v4106 = vpop.f32.mrb[0].mxu0
        %v4107 = vadd.f32 0.0, %v4106
        %v4108 = vpop.f32.mrb[0].mxu0
        %v4109 = vpop.f32.mrb[0].mxu0
        %v4110 = vadd.f32 0.0, %v4109
        %v4111 = vpop.f32.mrb[0].mxu0
        %4112 = vmatprep.mubr.bf16.mxu0 0
        %4113 = vmatmul.mubr.bf16.gmra.mrb[0].mxu0 %v4061
        %v4114 = vpop.f32.mrb[0].mxu0
        %v4115 = vadd.f32 0.0, %v4114
        %v4116 = vpop.f32.mrb[0].mxu0
        %v4117 = vpop.f32.mrb[0].mxu0
        %v4118 = vadd.f32 0.0, %v4117
        %v4119 = vpop.f32.mrb[0].mxu0
        %4120 = vmatprep.mubr.bf16.mxu0 0
        %4121 = vmatmul.mubr.bf16.gmra.mrb[0].mxu0 %v4064
        %v4122 = vpop.f32.mrb[0].mxu0
        %v4123 = vadd.f32 0.0, %v4122
        %v4124 = vpop.f32.mrb[0].mxu0
        %v4125 = vpop.f32.mrb[0].mxu0
        %v4126 = vadd.f32 0.0, %v4125
        %v4127 = vpop.f32.mrb[0].mxu0
        %4128 = vmatprep.mubr.bf16.mxu0 0
        %4129 = vmatmul.mubr.bf16.gmra.mrb[0].mxu0 %v4067
        %v4130 = vpop.f32.mrb[0].mxu0
        %v4131 = vadd.f32 0.0, %v4130
        %v4132 = vpop.f32.mrb[0].mxu0
        %v4133 = vpop.f32.mrb[0].mxu0
        %v4134 = vadd.f32 0.0, %v4133
        %v4135 = vpop.f32.mrb[0].mxu0
        %4136 = vdwg.mxu0
        %v4137 = vadd.f32 %v3991, %v4107
        %v4138 = vadd.f32 %v3992, %v4110
        %v4139 = vadd.f32 %v3993, %v4115
        %v4140 = vadd.f32 %v3994, %v4118
        %v4141 = vadd.f32 %v3995, %v4123
        %v4142 = vadd.f32 %v3996, %v4126
        %v4143 = vadd.f32 %v3997, %v4131
        %v4144 = vadd.f32 %v3998, %v4134
        %v4145 = vld [vmem:[#allocation3] sm:$0xc]
        %v4146 = vld [vmem:[#allocation3 + $0x10] sm:$0x3]
        %v4147 = vld [vmem:[#allocation3 + $0x14] sm:$0xc]
        %v4148 = vld [vmem:[#allocation3 + $0x24] sm:$0x3]
        %v4153 = vrot.slane %v4145, 6
        %v4154 = vrot.slane %v4153, 4
        %v4155 = vrot.slane %v4000, 6
        %v4156 = vsel %vm1211, %v4154, %v4155
        %v4157 = vrot.slane %v4155, 4
        %v4158 = vrot.slane %v4001, 6
        %v4159 = vsel %vm1211, %v4157, %v4158
        %v4160 = vrot.slane %v4158, 4
        %v4161 = vrot.slane %v4002, 6
        %v4162 = vsel %vm1211, %v4160, %v4161
        %v4163 = vrot.slane %v4161, 4
        %v4164 = vrot.slane %v4146, 6
        %v4165 = vsel %vm1211, %v4163, %v4164
        %v4166 = vrot.slane %v4147, 6
        %v4167 = vrot.slane %v4166, 4
        %v4168 = vrot.slane %v4005, 6
        %v4169 = vsel %vm1211, %v4167, %v4168
        %v4170 = vrot.slane %v4168, 4
        %v4171 = vrot.slane %v4006, 6
        %v4172 = vsel %vm1211, %v4170, %v4171
        %v4173 = vrot.slane %v4171, 4
        %v4174 = vrot.slane %v4007, 6
        %v4175 = vsel %vm1211, %v4173, %v4174
        %v4176 = vrot.slane %v4174, 4
        %v4177 = vrot.slane %v4148, 6
        %v4178 = vsel %vm1211, %v4176, %v4177
        %v4179 = vunpack.c.l.b16 %v4156
        %v4180 = vunpack.c.l.b16 %v4159
        %v4181 = vunpack.c.l.b16 %v4162
        %v4182 = vunpack.c.l.b16 %v4165
        %v4183 = vunpack.c.l.b16 %v4169
        %v4184 = vunpack.c.l.b16 %v4172
        %v4185 = vunpack.c.l.b16 %v4175
        %v4186 = vunpack.c.l.b16 %v4178
        %v4187 = vpack.c.b16 %v4180, %v4179
        %v4188 = vpack.c.b16 %v4182, %v4181
        %v4189 = vpack.c.b16 %v4184, %v4183
        %v4190 = vpack.c.b16 %v4186, %v4185
        %v4192 = vsel %vm962, %v4187, 0
        %v4195 = vsel %vm962, %v4188, 0
        %v4198 = vsel %vm962, %v4189, 0
        %v4201 = vsel %vm962, %v4190, 0
        %v4204 = vsel %vm975, %v3873, 0
        %4206 = vmatprep.subr.bf16.mxu0 0
        %4207 = vmatpush1.bf16.msra.mxu0 %v4204
        %4208 = vmatprep.subr.bf16.mxu0 0
        %4209 = vmatpush1.bf16.msra.mxu0 0
        %4210 = vmatprep.subr.bf16.mxu0 0
        %4211 = vmatpush1.bf16.msra.mxu0 0
        %4212 = vmatprep.subr.bf16.mxu0 0
        %4213 = vmatpush1.bf16.msra.mxu0 0
        %4214 = vmatprep.subr.bf16.mxu0 0
        %4215 = vmatpush1.bf16.msra.mxu0 0
        %4216 = vmatprep.subr.bf16.mxu0 0
        %4217 = vmatpush1.bf16.msra.mxu0 0
        %4218 = vmatprep.subr.bf16.mxu0 0
        %4219 = vmatpush1.bf16.msra.mxu0 0
        %4220 = vmatprep.subr.bf16.mxu0 0
        %4221 = vmatpush1.bf16.msra.mxu0 0
        %4222 = vmatprep.subr.bf16.mxu0 0
        %4223 = vmatpush1.bf16.msra.mxu0 0
        %4224 = vmatprep.subr.bf16.mxu0 0
        %4225 = vmatpush1.bf16.msra.mxu0 0
        %4226 = vmatprep.subr.bf16.mxu0 0
        %4227 = vmatpush1.bf16.msra.mxu0 0
        %4228 = vmatprep.subr.bf16.mxu0 0
        %4229 = vmatpush1.bf16.msra.mxu0 0
        %4230 = vmatprep.subr.bf16.mxu0 0
        %4231 = vmatpush1.bf16.msra.mxu0 0
        %4232 = vmatprep.subr.bf16.mxu0 0
        %4233 = vmatpush1.bf16.msra.mxu0 0
        %4234 = vmatprep.subr.bf16.mxu0 0
        %4235 = vmatpush1.bf16.msra.mxu0 0
        %4236 = vmatprep.subr.bf16.mxu0 0
        %4237 = vmatpush1.bf16.msra.mxu0 0
        %4238 = vmatprep.mubr.bf16.mxu0 0
        %4239 = vmatmul.mubr.bf16.gmra.mrb[0].mxu0 %v4192
        %v4240 = vpop.f32.mrb[0].mxu0
        %v4241 = vadd.f32 0.0, %v4240
        %v4242 = vpop.f32.mrb[0].mxu0
        %v4243 = vpop.f32.mrb[0].mxu0
        %v4244 = vadd.f32 0.0, %v4243
        %v4245 = vpop.f32.mrb[0].mxu0
        %4246 = vmatprep.mubr.bf16.mxu0 0
        %4247 = vmatmul.mubr.bf16.gmra.mrb[0].mxu0 %v4195
        %v4248 = vpop.f32.mrb[0].mxu0
        %v4249 = vadd.f32 0.0, %v4248
        %v4250 = vpop.f32.mrb[0].mxu0
        %v4251 = vpop.f32.mrb[0].mxu0
        %v4252 = vadd.f32 0.0, %v4251
        %v4253 = vpop.f32.mrb[0].mxu0
        %4254 = vmatprep.mubr.bf16.mxu0 0
        %4255 = vmatmul.mubr.bf16.gmra.mrb[0].mxu0 %v4198
        %v4256 = vpop.f32.mrb[0].mxu0
        %v4257 = vadd.f32 0.0, %v4256
        %v4258 = vpop.f32.mrb[0].mxu0
        %v4259 = vpop.f32.mrb[0].mxu0
        %v4260 = vadd.f32 0.0, %v4259
        %v4261 = vpop.f32.mrb[0].mxu0
        %4262 = vmatprep.mubr.bf16.mxu0 0
        %4263 = vmatmul.mubr.bf16.gmra.mrb[0].mxu0 %v4201
        %v4264 = vpop.f32.mrb[0].mxu0
        %v4265 = vadd.f32 0.0, %v4264
        %v4266 = vpop.f32.mrb[0].mxu0
        %v4267 = vpop.f32.mrb[0].mxu0
        %v4268 = vadd.f32 0.0, %v4267
        %v4269 = vpop.f32.mrb[0].mxu0
        %4270 = vdwg.mxu0
        %v4271 = vadd.f32 %v4137, %v4241
        %v4272 = vadd.f32 %v4138, %v4244
        %v4273 = vadd.f32 %v4139, %v4249
        %v4274 = vadd.f32 %v4140, %v4252
        %v4275 = vadd.f32 %v4141, %v4257
        %v4276 = vadd.f32 %v4142, %v4260
        %v4277 = vadd.f32 %v4143, %v4265
        %v4278 = vadd.f32 %v4144, %v4268
        %v4279 = vmax.f32 %v4271, 0.0
        %v4280 = vmax.f32 %v4272, 0.0
        %v4281 = vmax.f32 %v4273, 0.0
        %v4282 = vmax.f32 %v4274, 0.0
        %v4283 = vmax.f32 %v4275, 0.0
        %v4284 = vmax.f32 %v4276, 0.0
        %v4285 = vmax.f32 %v4277, 0.0
        %v4286 = vmax.f32 %v4278, 0.0
        %s4287 = scalar_lea.vmem %s7, 5
        %v4288 = vld [vmem:[%s4287] sm:$0x1]
        %v4290 = vlaneseq
        %v4291 = vshrl.u32 %v4290, 7
        %v4292 = vsub.s32 0, %v4291
        %v4293 = vrot.slane %v4288, %v4292
        %v4295 = vmul.f32 %v4279, %v4293
        %v4296 = vmul.f32 %v4280, %v4293
        %v4297 = vmul.f32 %v4281, %v4293
        %v4298 = vmul.f32 %v4282, %v4293
        %v4299 = vmul.f32 %v4283, %v4293
        %v4300 = vmul.f32 %v4284, %v4293
        %v4301 = vmul.f32 %v4285, %v4293
        %v4302 = vmul.f32 %v4286, %v4293
        %s4303 = scalar_lea.vmem [#allocation10], 5
        %v4304 = vld [vmem:[%s4303] sm:$0x1]
        %v4306 = vlaneseq
        %v4307 = vshrl.u32 %v4306, 7
        %v4308 = vsub.s32 0, %v4307
        %v4309 = vrot.slane %v4304, %v4308
        %v4311 = vadd.f32 %v4295, %v4309
        %v4312 = vadd.f32 %v4296, %v4309
        %v4313 = vadd.f32 %v4297, %v4309
        %v4314 = vadd.f32 %v4298, %v4309
        %v4315 = vadd.f32 %v4299, %v4309
        %v4316 = vadd.f32 %v4300, %v4309
        %v4317 = vadd.f32 %v4301, %v4309
        %v4318 = vadd.f32 %v4302, %v4309
        %v4319 = vpack.c.bf16 %v4312, %v4311
        %v4320 = vpack.c.bf16 %v4314, %v4313
        %v4321 = vpack.c.bf16 %v4316, %v4315
        %v4322 = vpack.c.bf16 %v4318, %v4317
        %4327 = vrot.lane.b32.xlu0 %v4319, 40
        %v4328 = vpop.permute.xlu0 %4327
        %4329 = vrot.lane.b32.xlu0 %v4320, 40
        %v4330 = vpop.permute.xlu0 %4329
        %4331 = vrot.lane.b32.xlu0 %v4321, 40
        %v4332 = vpop.permute.xlu0 %4331
        %4333 = vrot.lane.b32.xlu0 %v4322, 40
        %v4334 = vpop.permute.xlu0 %4333
        %vm4339 = vcmask 392512
        %4340 = vst.msk [vmem:[#allocation2] sm:$0xff] %vm4339, %v4328
        %4341 = vst.msk [vmem:[#allocation2 + $0x8] sm:$0xff] %vm4339, %v4330
        %4342 = vst.msk [vmem:[#allocation2 + $0x10] sm:$0xff] %vm4339, %v4332
        %4343 = vst.msk [vmem:[#allocation2 + $0x18] sm:$0xff] %vm4339, %v4334
        %v4344 = vld [vmem:[#allocation2] sm:$0xff]
        %v4345 = vld [vmem:[#allocation2 + $0x8] sm:$0xff]
        %v4346 = vld [vmem:[#allocation2 + $0x10] sm:$0xff]
        %v4347 = vld [vmem:[#allocation2 + $0x18] sm:$0xff]
        %v4348 = vunpack.c.l.bf16 %v4344
        %v4349 = vunpack.c.h.bf16 %v4344
        %v4350 = vunpack.c.l.bf16 %v4345
        %v4351 = vunpack.c.h.bf16 %v4345
        %v4352 = vunpack.c.l.bf16 %v4346
        %v4353 = vunpack.c.h.bf16 %v4346
        %v4354 = vunpack.c.l.bf16 %v4347
        %v4355 = vunpack.c.h.bf16 %v4347
        %4364 = vrot.lane.b32.xlu0 %v4348, 80
        %v4365 = vpop.permute.xlu0 %4364
        %4366 = vrot.lane.b32.xlu0 %v4349, 80
        %v4367 = vpop.permute.xlu0 %4366
        %4368 = vrot.lane.b32.xlu0 %v4350, 80
        %v4369 = vpop.permute.xlu0 %4368
        %4370 = vrot.lane.b32.xlu0 %v4351, 80
        %v4371 = vpop.permute.xlu0 %4370
        %4372 = vrot.lane.b32.xlu0 %v4352, 80
        %v4373 = vpop.permute.xlu0 %4372
        %4374 = vrot.lane.b32.xlu0 %v4353, 80
        %v4375 = vpop.permute.xlu0 %4374
        %4376 = vrot.lane.b32.xlu0 %v4354, 80
        %v4377 = vpop.permute.xlu0 %4376
        %4378 = vrot.lane.b32.xlu0 %v4355, 80
        %v4379 = vpop.permute.xlu0 %4378
        %v4388 = vadd.f32 %v3796, %v4365
        %v4389 = vadd.f32 %v3797, %v4367
        %v4390 = vadd.f32 %v3798, %v4369
        %v4391 = vadd.f32 %v3799, %v4371
        %v4392 = vadd.f32 %v3800, %v4373
        %v4393 = vadd.f32 %v3801, %v4375
        %v4394 = vadd.f32 %v3802, %v4377
        %v4395 = vadd.f32 %v3803, %v4379
        %v4396 = vpack.c.bf16 %v4389, %v4388
        %v4397 = vpack.c.bf16 %v4391, %v4390
        %v4398 = vpack.c.bf16 %v4393, %v4392
        %v4399 = vpack.c.bf16 %v4395, %v4394
        %v4404 = vunpack.c.l.b16 %v4396
        %v4405 = vunpack.c.h.b16 %v4396
        %v4406 = vunpack.c.l.b16 %v4397
        %v4407 = vunpack.c.h.b16 %v4397
        %v4408 = vunpack.c.l.b16 %v4398
        %v4409 = vunpack.c.h.b16 %v4398
        %v4410 = vunpack.c.l.b16 %v4399
        %v4411 = vunpack.c.h.b16 %v4399
        %v4412 = vpack.c.b16 %v4404, %v4404
        %v4413 = vpack.c.b16 %v4405, %v4405
        %v4414 = vpack.c.b16 %v4406, %v4406
        %v4415 = vpack.c.b16 %v4407, %v4407
        %v4416 = vpack.c.b16 %v4408, %v4408
        %v4417 = vpack.c.b16 %v4409, %v4409
        %v4418 = vpack.c.b16 %v4410, %v4410
        %v4419 = vpack.c.b16 %v4411, %v4411
        %v4420 = vrot.slane %v4412, 7
        %v4421 = vrot.slane %v4420, 4
        %v4422 = vrot.slane %v4413, 7
        %v4423 = vsel %vm878, %v4421, %v4422
        %v4424 = vrot.slane %v4422, 4
        %v4425 = vrot.slane %v4414, 7
        %v4426 = vsel %vm878, %v4424, %v4425
        %v4427 = vrot.slane %v4425, 4
        %v4428 = vrot.slane %v4415, 7
        %v4429 = vsel %vm878, %v4427, %v4428
        %v4430 = vrot.slane %v4428, 4
        %v4431 = vrot.slane %v4416, 7
        %v4432 = vrot.slane %v4431, 4
        %v4433 = vrot.slane %v4417, 7
        %v4434 = vsel %vm878, %v4432, %v4433
        %v4435 = vrot.slane %v4433, 4
        %v4436 = vrot.slane %v4418, 7
        %v4437 = vsel %vm878, %v4435, %v4436
        %v4438 = vrot.slane %v4436, 4
        %v4439 = vrot.slane %v4419, 7
        %v4440 = vsel %vm878, %v4438, %v4439
        %v4441 = vrot.slane %v4439, 4
        %4452 = vst.msk [vmem:[#allocation3] sm:$0xe] %vm911, %v4420
        %4453 = vst.msk [vmem:[#allocation3 + $0x4] sm:$0xf] %vm913, %v4423
        %4454 = vst.msk [vmem:[#allocation3 + $0x8] sm:$0xf] %vm913, %v4426
        %4455 = vst.msk [vmem:[#allocation3 + $0xc] sm:$0xf] %vm913, %v4429
        %4456 = vst.msk [vmem:[#allocation3 + $0x10] sm:$0x1] %vm834, %v4430
        %4457 = vst.msk [vmem:[#allocation3 + $0x14] sm:$0xe] %vm911, %v4431
        %4458 = vst.msk [vmem:[#allocation3 + $0x18] sm:$0xf] %vm913, %v4434
        %4459 = vst.msk [vmem:[#allocation3 + $0x1c] sm:$0xf] %vm913, %v4437
        %4460 = vst.msk [vmem:[#allocation3 + $0x20] sm:$0xf] %vm913, %v4440
        %4461 = vst.msk [vmem:[#allocation3 + $0x24] sm:$0x1] %vm834, %v4441
        %s4462 = scalar_lea.vmem %s5, 72
        %v4463 = vld [vmem:[%s4462] sm:$0xf]
        %v4464 = vld [vmem:[%s4462 + $0x4] sm:$0xf]
        %v4465 = vld [vmem:[%s4462 + $0x8] sm:$0xf]
        %s4466 = scalar_lea.vmem [#allocation9], 6
        %v4467 = vld [vmem:[%s4466] sm:$0x1]
        %v4469 = vlaneseq
        %v4470 = vshrl.u32 %v4469, 7
        %v4471 = vsub.s32 0, %v4470
        %v4472 = vrot.slane %v4467, %v4471
        %v4474 = vadd.f32 %v4472, 0.0
        %v4475 = vld [vmem:[#allocation3] sm:$0xf]
        %v4476 = vld [vmem:[#allocation3 + $0x4] sm:$0xf]
        %v4477 = vld [vmem:[#allocation3 + $0x8] sm:$0xf]
        %v4478 = vld [vmem:[#allocation3 + $0xc] sm:$0xf]
        %v4479 = vld [vmem:[#allocation3 + $0x14] sm:$0xf]
        %v4480 = vld [vmem:[#allocation3 + $0x18] sm:$0xf]
        %v4481 = vld [vmem:[#allocation3 + $0x1c] sm:$0xf]
        %v4482 = vld [vmem:[#allocation3 + $0x20] sm:$0xf]
        %v4491 = vunpack.c.l.b16 %v4475
        %v4492 = vunpack.c.l.b16 %v4476
        %v4493 = vunpack.c.l.b16 %v4477
        %v4494 = vunpack.c.l.b16 %v4478
        %v4495 = vunpack.c.l.b16 %v4479
        %v4496 = vunpack.c.l.b16 %v4480
        %v4497 = vunpack.c.l.b16 %v4481
        %v4498 = vunpack.c.l.b16 %v4482
        %v4499 = vpack.c.b16 %v4492, %v4491
        %v4500 = vpack.c.b16 %v4494, %v4493
        %v4501 = vpack.c.b16 %v4496, %v4495
        %v4502 = vpack.c.b16 %v4498, %v4497
        %v4504 = vsel %vm962, %v4499, 0
        %v4507 = vsel %vm962, %v4500, 0
        %v4510 = vsel %vm962, %v4501, 0
        %v4513 = vsel %vm962, %v4502, 0
        %v4516 = vsel %vm975, %v4463, 0
        %4518 = vmatprep.subr.bf16.mxu0 0
        %4519 = vmatpush1.bf16.msra.mxu0 %v4516
        %4520 = vmatprep.subr.bf16.mxu0 0
        %4521 = vmatpush1.bf16.msra.mxu0 0
        %4522 = vmatprep.subr.bf16.mxu0 0
        %4523 = vmatpush1.bf16.msra.mxu0 0
        %4524 = vmatprep.subr.bf16.mxu0 0
        %4525 = vmatpush1.bf16.msra.mxu0 0
        %4526 = vmatprep.subr.bf16.mxu0 0
        %4527 = vmatpush1.bf16.msra.mxu0 0
        %4528 = vmatprep.subr.bf16.mxu0 0
        %4529 = vmatpush1.bf16.msra.mxu0 0
        %4530 = vmatprep.subr.bf16.mxu0 0
        %4531 = vmatpush1.bf16.msra.mxu0 0
        %4532 = vmatprep.subr.bf16.mxu0 0
        %4533 = vmatpush1.bf16.msra.mxu0 0
        %4534 = vmatprep.subr.bf16.mxu0 0
        %4535 = vmatpush1.bf16.msra.mxu0 0
        %4536 = vmatprep.subr.bf16.mxu0 0
        %4537 = vmatpush1.bf16.msra.mxu0 0
        %4538 = vmatprep.subr.bf16.mxu0 0
        %4539 = vmatpush1.bf16.msra.mxu0 0
        %4540 = vmatprep.subr.bf16.mxu0 0
        %4541 = vmatpush1.bf16.msra.mxu0 0
        %4542 = vmatprep.subr.bf16.mxu0 0
        %4543 = vmatpush1.bf16.msra.mxu0 0
        %4544 = vmatprep.subr.bf16.mxu0 0
        %4545 = vmatpush1.bf16.msra.mxu0 0
        %4546 = vmatprep.subr.bf16.mxu0 0
        %4547 = vmatpush1.bf16.msra.mxu0 0
        %4548 = vmatprep.subr.bf16.mxu0 0
        %4549 = vmatpush1.bf16.msra.mxu0 0
        %4550 = vmatprep.mubr.bf16.mxu0 0
        %4551 = vmatmul.mubr.bf16.gmra.mrb[0].mxu0 %v4504
        %v4552 = vpop.f32.mrb[0].mxu0
        %v4553 = vadd.f32 0.0, %v4552
        %v4554 = vpop.f32.mrb[0].mxu0
        %v4555 = vpop.f32.mrb[0].mxu0
        %v4556 = vadd.f32 0.0, %v4555
        %v4557 = vpop.f32.mrb[0].mxu0
        %4558 = vmatprep.mubr.bf16.mxu0 0
        %4559 = vmatmul.mubr.bf16.gmra.mrb[0].mxu0 %v4507
        %v4560 = vpop.f32.mrb[0].mxu0
        %v4561 = vadd.f32 0.0, %v4560
        %v4562 = vpop.f32.mrb[0].mxu0
        %v4563 = vpop.f32.mrb[0].mxu0
        %v4564 = vadd.f32 0.0, %v4563
        %v4565 = vpop.f32.mrb[0].mxu0
        %4566 = vmatprep.mubr.bf16.mxu0 0
        %4567 = vmatmul.mubr.bf16.gmra.mrb[0].mxu0 %v4510
        %v4568 = vpop.f32.mrb[0].mxu0
        %v4569 = vadd.f32 0.0, %v4568
        %v4570 = vpop.f32.mrb[0].mxu0
        %v4571 = vpop.f32.mrb[0].mxu0
        %v4572 = vadd.f32 0.0, %v4571
        %v4573 = vpop.f32.mrb[0].mxu0
        %4574 = vmatprep.mubr.bf16.mxu0 0
        %4575 = vmatmul.mubr.bf16.gmra.mrb[0].mxu0 %v4513
        %v4576 = vpop.f32.mrb[0].mxu0
        %v4577 = vadd.f32 0.0, %v4576
        %v4578 = vpop.f32.mrb[0].mxu0
        %v4579 = vpop.f32.mrb[0].mxu0
        %v4580 = vadd.f32 0.0, %v4579
        %v4581 = vpop.f32.mrb[0].mxu0
        %4582 = vdwg.mxu0
        %v4583 = vadd.f32 %v4474, %v4553
        %v4584 = vadd.f32 %v4474, %v4556
        %v4585 = vadd.f32 %v4474, %v4561
        %v4586 = vadd.f32 %v4474, %v4564
        %v4587 = vadd.f32 %v4474, %v4569
        %v4588 = vadd.f32 %v4474, %v4572
        %v4589 = vadd.f32 %v4474, %v4577
        %v4590 = vadd.f32 %v4474, %v4580
        %v4591 = vld [vmem:[#allocation3] sm:$0xe]
        %v4592 = vld [vmem:[#allocation3 + $0x4] sm:$0xf]
        %v4593 = vld [vmem:[#allocation3 + $0x8] sm:$0xf]
        %v4594 = vld [vmem:[#allocation3 + $0xc] sm:$0xf]
        %v4595 = vld [vmem:[#allocation3 + $0x10] sm:$0x1]
        %v4596 = vld [vmem:[#allocation3 + $0x14] sm:$0xe]
        %v4597 = vld [vmem:[#allocation3 + $0x18] sm:$0xf]
        %v4598 = vld [vmem:[#allocation3 + $0x1c] sm:$0xf]
        %v4599 = vld [vmem:[#allocation3 + $0x20] sm:$0xf]
        %v4600 = vld [vmem:[#allocation3 + $0x24] sm:$0x1]
        %v4611 = vrot.slane %v4591, 5
        %v4612 = vrot.slane %v4611, 4
        %v4613 = vrot.slane %v4592, 5
        %v4614 = vsel %vm1074, %v4612, %v4613
        %v4615 = vrot.slane %v4613, 4
        %v4616 = vrot.slane %v4593, 5
        %v4617 = vsel %vm1074, %v4615, %v4616
        %v4618 = vrot.slane %v4616, 4
        %v4619 = vrot.slane %v4594, 5
        %v4620 = vsel %vm1074, %v4618, %v4619
        %v4621 = vrot.slane %v4619, 4
        %v4622 = vrot.slane %v4595, 5
        %v4623 = vsel %vm1074, %v4621, %v4622
        %v4624 = vrot.slane %v4596, 5
        %v4625 = vrot.slane %v4624, 4
        %v4626 = vrot.slane %v4597, 5
        %v4627 = vsel %vm1074, %v4625, %v4626
        %v4628 = vrot.slane %v4626, 4
        %v4629 = vrot.slane %v4598, 5
        %v4630 = vsel %vm1074, %v4628, %v4629
        %v4631 = vrot.slane %v4629, 4
        %v4632 = vrot.slane %v4599, 5
        %v4633 = vsel %vm1074, %v4631, %v4632
        %v4634 = vrot.slane %v4632, 4
        %v4635 = vrot.slane %v4600, 5
        %v4636 = vsel %vm1074, %v4634, %v4635
        %v4637 = vunpack.c.l.b16 %v4614
        %v4638 = vunpack.c.l.b16 %v4617
        %v4639 = vunpack.c.l.b16 %v4620
        %v4640 = vunpack.c.l.b16 %v4623
        %v4641 = vunpack.c.l.b16 %v4627
        %v4642 = vunpack.c.l.b16 %v4630
        %v4643 = vunpack.c.l.b16 %v4633
        %v4644 = vunpack.c.l.b16 %v4636
        %v4645 = vpack.c.b16 %v4638, %v4637
        %v4646 = vpack.c.b16 %v4640, %v4639
        %v4647 = vpack.c.b16 %v4642, %v4641
        %v4648 = vpack.c.b16 %v4644, %v4643
        %v4650 = vsel %vm962, %v4645, 0
        %v4653 = vsel %vm962, %v4646, 0
        %v4656 = vsel %vm962, %v4647, 0
        %v4659 = vsel %vm962, %v4648, 0
        %v4662 = vsel %vm975, %v4464, 0
        %4664 = vmatprep.subr.bf16.mxu0 0
        %4665 = vmatpush1.bf16.msra.mxu0 %v4662
        %4666 = vmatprep.subr.bf16.mxu0 0
        %4667 = vmatpush1.bf16.msra.mxu0 0
        %4668 = vmatprep.subr.bf16.mxu0 0
        %4669 = vmatpush1.bf16.msra.mxu0 0
        %4670 = vmatprep.subr.bf16.mxu0 0
        %4671 = vmatpush1.bf16.msra.mxu0 0
        %4672 = vmatprep.subr.bf16.mxu0 0
        %4673 = vmatpush1.bf16.msra.mxu0 0
        %4674 = vmatprep.subr.bf16.mxu0 0
        %4675 = vmatpush1.bf16.msra.mxu0 0
        %4676 = vmatprep.subr.bf16.mxu0 0
        %4677 = vmatpush1.bf16.msra.mxu0 0
        %4678 = vmatprep.subr.bf16.mxu0 0
        %4679 = vmatpush1.bf16.msra.mxu0 0
        %4680 = vmatprep.subr.bf16.mxu0 0
        %4681 = vmatpush1.bf16.msra.mxu0 0
        %4682 = vmatprep.subr.bf16.mxu0 0
        %4683 = vmatpush1.bf16.msra.mxu0 0
        %4684 = vmatprep.subr.bf16.mxu0 0
        %4685 = vmatpush1.bf16.msra.mxu0 0
        %4686 = vmatprep.subr.bf16.mxu0 0
        %4687 = vmatpush1.bf16.msra.mxu0 0
        %4688 = vmatprep.subr.bf16.mxu0 0
        %4689 = vmatpush1.bf16.msra.mxu0 0
        %4690 = vmatprep.subr.bf16.mxu0 0
        %4691 = vmatpush1.bf16.msra.mxu0 0
        %4692 = vmatprep.subr.bf16.mxu0 0
        %4693 = vmatpush1.bf16.msra.mxu0 0
        %4694 = vmatprep.subr.bf16.mxu0 0
        %4695 = vmatpush1.bf16.msra.mxu0 0
        %4696 = vmatprep.mubr.bf16.mxu0 0
        %4697 = vmatmul.mubr.bf16.gmra.mrb[0].mxu0 %v4650
        %v4698 = vpop.f32.mrb[0].mxu0
        %v4699 = vadd.f32 0.0, %v4698
        %v4700 = vpop.f32.mrb[0].mxu0
        %v4701 = vpop.f32.mrb[0].mxu0
        %v4702 = vadd.f32 0.0, %v4701
        %v4703 = vpop.f32.mrb[0].mxu0
        %4704 = vmatprep.mubr.bf16.mxu0 0
        %4705 = vmatmul.mubr.bf16.gmra.mrb[0].mxu0 %v4653
        %v4706 = vpop.f32.mrb[0].mxu0
        %v4707 = vadd.f32 0.0, %v4706
        %v4708 = vpop.f32.mrb[0].mxu0
        %v4709 = vpop.f32.mrb[0].mxu0
        %v4710 = vadd.f32 0.0, %v4709
        %v4711 = vpop.f32.mrb[0].mxu0
        %4712 = vmatprep.mubr.bf16.mxu0 0
        %4713 = vmatmul.mubr.bf16.gmra.mrb[0].mxu0 %v4656
        %v4714 = vpop.f32.mrb[0].mxu0
        %v4715 = vadd.f32 0.0, %v4714
        %v4716 = vpop.f32.mrb[0].mxu0
        %v4717 = vpop.f32.mrb[0].mxu0
        %v4718 = vadd.f32 0.0, %v4717
        %v4719 = vpop.f32.mrb[0].mxu0
        %4720 = vmatprep.mubr.bf16.mxu0 0
        %4721 = vmatmul.mubr.bf16.gmra.mrb[0].mxu0 %v4659
        %v4722 = vpop.f32.mrb[0].mxu0
        %v4723 = vadd.f32 0.0, %v4722
        %v4724 = vpop.f32.mrb[0].mxu0
        %v4725 = vpop.f32.mrb[0].mxu0
        %v4726 = vadd.f32 0.0, %v4725
        %v4727 = vpop.f32.mrb[0].mxu0
        %4728 = vdwg.mxu0
        %v4729 = vadd.f32 %v4583, %v4699
        %v4730 = vadd.f32 %v4584, %v4702
        %v4731 = vadd.f32 %v4585, %v4707
        %v4732 = vadd.f32 %v4586, %v4710
        %v4733 = vadd.f32 %v4587, %v4715
        %v4734 = vadd.f32 %v4588, %v4718
        %v4735 = vadd.f32 %v4589, %v4723
        %v4736 = vadd.f32 %v4590, %v4726
        %v4737 = vld [vmem:[#allocation3] sm:$0xc]
        %v4738 = vld [vmem:[#allocation3 + $0x10] sm:$0x3]
        %v4739 = vld [vmem:[#allocation3 + $0x14] sm:$0xc]
        %v4740 = vld [vmem:[#allocation3 + $0x24] sm:$0x3]
        %v4745 = vrot.slane %v4737, 6
        %v4746 = vrot.slane %v4745, 4
        %v4747 = vrot.slane %v4592, 6
        %v4748 = vsel %vm1211, %v4746, %v4747
        %v4749 = vrot.slane %v4747, 4
        %v4750 = vrot.slane %v4593, 6
        %v4751 = vsel %vm1211, %v4749, %v4750
        %v4752 = vrot.slane %v4750, 4
        %v4753 = vrot.slane %v4594, 6
        %v4754 = vsel %vm1211, %v4752, %v4753
        %v4755 = vrot.slane %v4753, 4
        %v4756 = vrot.slane %v4738, 6
        %v4757 = vsel %vm1211, %v4755, %v4756
        %v4758 = vrot.slane %v4739, 6
        %v4759 = vrot.slane %v4758, 4
        %v4760 = vrot.slane %v4597, 6
        %v4761 = vsel %vm1211, %v4759, %v4760
        %v4762 = vrot.slane %v4760, 4
        %v4763 = vrot.slane %v4598, 6
        %v4764 = vsel %vm1211, %v4762, %v4763
        %v4765 = vrot.slane %v4763, 4
        %v4766 = vrot.slane %v4599, 6
        %v4767 = vsel %vm1211, %v4765, %v4766
        %v4768 = vrot.slane %v4766, 4
        %v4769 = vrot.slane %v4740, 6
        %v4770 = vsel %vm1211, %v4768, %v4769
        %v4771 = vunpack.c.l.b16 %v4748
        %v4772 = vunpack.c.l.b16 %v4751
        %v4773 = vunpack.c.l.b16 %v4754
        %v4774 = vunpack.c.l.b16 %v4757
        %v4775 = vunpack.c.l.b16 %v4761
        %v4776 = vunpack.c.l.b16 %v4764
        %v4777 = vunpack.c.l.b16 %v4767
        %v4778 = vunpack.c.l.b16 %v4770
        %v4779 = vpack.c.b16 %v4772, %v4771
        %v4780 = vpack.c.b16 %v4774, %v4773
        %v4781 = vpack.c.b16 %v4776, %v4775
        %v4782 = vpack.c.b16 %v4778, %v4777
        %v4784 = vsel %vm962, %v4779, 0
        %v4787 = vsel %vm962, %v4780, 0
        %v4790 = vsel %vm962, %v4781, 0
        %v4793 = vsel %vm962, %v4782, 0
        %v4796 = vsel %vm975, %v4465, 0
        %4798 = vmatprep.subr.bf16.mxu0 0
        %4799 = vmatpush1.bf16.msra.mxu0 %v4796
        %4800 = vmatprep.subr.bf16.mxu0 0
        %4801 = vmatpush1.bf16.msra.mxu0 0
        %4802 = vmatprep.subr.bf16.mxu0 0
        %4803 = vmatpush1.bf16.msra.mxu0 0
        %4804 = vmatprep.subr.bf16.mxu0 0
        %4805 = vmatpush1.bf16.msra.mxu0 0
        %4806 = vmatprep.subr.bf16.mxu0 0
        %4807 = vmatpush1.bf16.msra.mxu0 0
        %4808 = vmatprep.subr.bf16.mxu0 0
        %4809 = vmatpush1.bf16.msra.mxu0 0
        %4810 = vmatprep.subr.bf16.mxu0 0
        %4811 = vmatpush1.bf16.msra.mxu0 0
        %4812 = vmatprep.subr.bf16.mxu0 0
        %4813 = vmatpush1.bf16.msra.mxu0 0
        %4814 = vmatprep.subr.bf16.mxu0 0
        %4815 = vmatpush1.bf16.msra.mxu0 0
        %4816 = vmatprep.subr.bf16.mxu0 0
        %4817 = vmatpush1.bf16.msra.mxu0 0
        %4818 = vmatprep.subr.bf16.mxu0 0
        %4819 = vmatpush1.bf16.msra.mxu0 0
        %4820 = vmatprep.subr.bf16.mxu0 0
        %4821 = vmatpush1.bf16.msra.mxu0 0
        %4822 = vmatprep.subr.bf16.mxu0 0
        %4823 = vmatpush1.bf16.msra.mxu0 0
        %4824 = vmatprep.subr.bf16.mxu0 0
        %4825 = vmatpush1.bf16.msra.mxu0 0
        %4826 = vmatprep.subr.bf16.mxu0 0
        %4827 = vmatpush1.bf16.msra.mxu0 0
        %4828 = vmatprep.subr.bf16.mxu0 0
        %4829 = vmatpush1.bf16.msra.mxu0 0
        %4830 = vmatprep.mubr.bf16.mxu0 0
        %4831 = vmatmul.mubr.bf16.gmra.mrb[0].mxu0 %v4784
        %v4832 = vpop.f32.mrb[0].mxu0
        %v4833 = vadd.f32 0.0, %v4832
        %v4834 = vpop.f32.mrb[0].mxu0
        %v4835 = vpop.f32.mrb[0].mxu0
        %v4836 = vadd.f32 0.0, %v4835
        %v4837 = vpop.f32.mrb[0].mxu0
        %4838 = vmatprep.mubr.bf16.mxu0 0
        %4839 = vmatmul.mubr.bf16.gmra.mrb[0].mxu0 %v4787
        %v4840 = vpop.f32.mrb[0].mxu0
        %v4841 = vadd.f32 0.0, %v4840
        %v4842 = vpop.f32.mrb[0].mxu0
        %v4843 = vpop.f32.mrb[0].mxu0
        %v4844 = vadd.f32 0.0, %v4843
        %v4845 = vpop.f32.mrb[0].mxu0
        %4846 = vmatprep.mubr.bf16.mxu0 0
        %4847 = vmatmul.mubr.bf16.gmra.mrb[0].mxu0 %v4790
        %v4848 = vpop.f32.mrb[0].mxu0
        %v4849 = vadd.f32 0.0, %v4848
        %v4850 = vpop.f32.mrb[0].mxu0
        %v4851 = vpop.f32.mrb[0].mxu0
        %v4852 = vadd.f32 0.0, %v4851
        %v4853 = vpop.f32.mrb[0].mxu0
        %4854 = vmatprep.mubr.bf16.mxu0 0
        %4855 = vmatmul.mubr.bf16.gmra.mrb[0].mxu0 %v4793
        %v4856 = vpop.f32.mrb[0].mxu0
        %v4857 = vadd.f32 0.0, %v4856
        %v4858 = vpop.f32.mrb[0].mxu0
        %v4859 = vpop.f32.mrb[0].mxu0
        %v4860 = vadd.f32 0.0, %v4859
        %v4861 = vpop.f32.mrb[0].mxu0
        %4862 = vdwg.mxu0
        %v4863 = vadd.f32 %v4729, %v4833
        %v4864 = vadd.f32 %v4730, %v4836
        %v4865 = vadd.f32 %v4731, %v4841
        %v4866 = vadd.f32 %v4732, %v4844
        %v4867 = vadd.f32 %v4733, %v4849
        %v4868 = vadd.f32 %v4734, %v4852
        %v4869 = vadd.f32 %v4735, %v4857
        %v4870 = vadd.f32 %v4736, %v4860
        %v4871 = vmax.f32 %v4863, 0.0
        %v4872 = vmax.f32 %v4864, 0.0
        %v4873 = vmax.f32 %v4865, 0.0
        %v4874 = vmax.f32 %v4866, 0.0
        %v4875 = vmax.f32 %v4867, 0.0
        %v4876 = vmax.f32 %v4868, 0.0
        %v4877 = vmax.f32 %v4869, 0.0
        %v4878 = vmax.f32 %v4870, 0.0
        %s4879 = scalar_lea.vmem %s7, 6
        %v4880 = vld [vmem:[%s4879] sm:$0x1]
        %v4882 = vlaneseq
        %v4883 = vshrl.u32 %v4882, 7
        %v4884 = vsub.s32 0, %v4883
        %v4885 = vrot.slane %v4880, %v4884
        %v4887 = vmul.f32 %v4871, %v4885
        %v4888 = vmul.f32 %v4872, %v4885
        %v4889 = vmul.f32 %v4873, %v4885
        %v4890 = vmul.f32 %v4874, %v4885
        %v4891 = vmul.f32 %v4875, %v4885
        %v4892 = vmul.f32 %v4876, %v4885
        %v4893 = vmul.f32 %v4877, %v4885
        %v4894 = vmul.f32 %v4878, %v4885
        %s4895 = scalar_lea.vmem [#allocation10], 6
        %v4896 = vld [vmem:[%s4895] sm:$0x1]
        %v4898 = vlaneseq
        %v4899 = vshrl.u32 %v4898, 7
        %v4900 = vsub.s32 0, %v4899
        %v4901 = vrot.slane %v4896, %v4900
        %v4903 = vadd.f32 %v4887, %v4901
        %v4904 = vadd.f32 %v4888, %v4901
        %v4905 = vadd.f32 %v4889, %v4901
        %v4906 = vadd.f32 %v4890, %v4901
        %v4907 = vadd.f32 %v4891, %v4901
        %v4908 = vadd.f32 %v4892, %v4901
        %v4909 = vadd.f32 %v4893, %v4901
        %v4910 = vadd.f32 %v4894, %v4901
        %v4911 = vpack.c.bf16 %v4904, %v4903
        %v4912 = vpack.c.bf16 %v4906, %v4905
        %v4913 = vpack.c.bf16 %v4908, %v4907
        %v4914 = vpack.c.bf16 %v4910, %v4909
        %4919 = vrot.lane.b32.xlu0 %v4911, 48
        %v4920 = vpop.permute.xlu0 %4919
        %4921 = vrot.lane.b32.xlu0 %v4912, 48
        %v4922 = vpop.permute.xlu0 %4921
        %4923 = vrot.lane.b32.xlu0 %v4913, 48
        %v4924 = vpop.permute.xlu0 %4923
        %4925 = vrot.lane.b32.xlu0 %v4914, 48
        %v4926 = vpop.permute.xlu0 %4925
        %vm4931 = vcmask 458112
        %4932 = vst.msk [vmem:[#allocation2] sm:$0xff] %vm4931, %v4920
        %4933 = vst.msk [vmem:[#allocation2 + $0x8] sm:$0xff] %vm4931, %v4922
        %4934 = vst.msk [vmem:[#allocation2 + $0x10] sm:$0xff] %vm4931, %v4924
        %4935 = vst.msk [vmem:[#allocation2 + $0x18] sm:$0xff] %vm4931, %v4926
        %v4936 = vld [vmem:[#allocation2] sm:$0xff]
        %v4937 = vld [vmem:[#allocation2 + $0x8] sm:$0xff]
        %v4938 = vld [vmem:[#allocation2 + $0x10] sm:$0xff]
        %v4939 = vld [vmem:[#allocation2 + $0x18] sm:$0xff]
        %v4940 = vld [vmem:[%s9] sm:$0xf]
        %v4941 = vld [vmem:[%s9 + $0x4] sm:$0xf]
        %v4942 = vld [vmem:[%s9 + $0x8] sm:$0xf]
        %v4943 = vld [vmem:[%s9 + $0xc] sm:$0xf]
        %v4944 = vld [vmem:[%s9 + $0x10] sm:$0xf]
        %v4945 = vld [vmem:[%s9 + $0x14] sm:$0xf]
        %v4946 = vld [vmem:[%s9 + $0x18] sm:$0xf]
        %v4947 = vld [vmem:[%s9 + $0x1c] sm:$0xf]
        %v4948 = vld [vmem:[#allocation12] sm:$0x1]
        %v4950 = vlaneseq
        %v4951 = vshrl.u32 %v4950, 7
        %v4952 = vsub.s32 0, %v4951
        %v4953 = vrot.slane %v4948, %v4952
        %v4963 = vunpack.c.l.b16 %v4940
        %v4964 = vunpack.c.l.b16 %v4941
        %v4965 = vunpack.c.l.b16 %v4942
        %v4966 = vunpack.c.l.b16 %v4943
        %v4967 = vunpack.c.l.b16 %v4944
        %v4968 = vunpack.c.l.b16 %v4945
        %v4969 = vunpack.c.l.b16 %v4946
        %v4970 = vunpack.c.l.b16 %v4947
        %v4971 = vpack.c.b16 %v4964, %v4963
        %v4972 = vpack.c.b16 %v4966, %v4965
        %v4973 = vpack.c.b16 %v4968, %v4967
        %v4974 = vpack.c.b16 %v4970, %v4969
        %v4980 = vsel %vm710, %v4936, 0
        %v4983 = vsel %vm710, %v4937, 0
        %v4986 = vsel %vm710, %v4938, 0
        %v4989 = vsel %vm710, %v4939, 0
        %4991 = vmatprep.subr.bf16.mxu0 0
        %4992 = vmatpush1.bf16.msra.mxu0 %v4971
        %4993 = vmatprep.subr.bf16.mxu0 0
        %4994 = vmatpush1.bf16.msra.mxu0 %v4972
        %4995 = vmatprep.subr.bf16.mxu0 0
        %4996 = vmatpush1.bf16.msra.mxu0 %v4973
        %4997 = vmatprep.subr.bf16.mxu0 0
        %4998 = vmatpush1.bf16.msra.mxu0 %v4974
        %4999 = vmatprep.subr.bf16.mxu0 0
        %5000 = vmatpush1.bf16.msra.mxu0 0
        %5001 = vmatprep.subr.bf16.mxu0 0
        %5002 = vmatpush1.bf16.msra.mxu0 0
        %5003 = vmatprep.subr.bf16.mxu0 0
        %5004 = vmatpush1.bf16.msra.mxu0 0
        %5005 = vmatprep.subr.bf16.mxu0 0
        %5006 = vmatpush1.bf16.msra.mxu0 0
        %5007 = vmatprep.subr.bf16.mxu0 0
        %5008 = vmatpush1.bf16.msra.mxu0 0
        %5009 = vmatprep.subr.bf16.mxu0 0
        %5010 = vmatpush1.bf16.msra.mxu0 0
        %5011 = vmatprep.subr.bf16.mxu0 0
        %5012 = vmatpush1.bf16.msra.mxu0 0
        %5013 = vmatprep.subr.bf16.mxu0 0
        %5014 = vmatpush1.bf16.msra.mxu0 0
        %5015 = vmatprep.subr.bf16.mxu0 0
        %5016 = vmatpush1.bf16.msra.mxu0 0
        %5017 = vmatprep.subr.bf16.mxu0 0
        %5018 = vmatpush1.bf16.msra.mxu0 0
        %5019 = vmatprep.subr.bf16.mxu0 0
        %5020 = vmatpush1.bf16.msra.mxu0 0
        %5021 = vmatprep.subr.bf16.mxu0 0
        %5022 = vmatpush1.bf16.msra.mxu0 0
        %5023 = vmatprep.mubr.bf16.mxu0 0
        %5024 = vmatmul.mubr.bf16.gmra.mrb[0].mxu0 %v4980
        %v5025 = vpop.f32.mrb[0].mxu0
        %v5026 = vadd.f32 %v4953, %v5025
        %v5027 = vpop.f32.mrb[0].mxu0
        %v5028 = vpop.f32.mrb[0].mxu0
        %v5029 = vadd.f32 %v4953, %v5028
        %v5030 = vpop.f32.mrb[0].mxu0
        %5031 = vmatprep.mubr.bf16.mxu0 0
        %5032 = vmatmul.mubr.bf16.gmra.mrb[0].mxu0 %v4983
        %v5033 = vpop.f32.mrb[0].mxu0
        %v5034 = vadd.f32 %v4953, %v5033
        %v5035 = vpop.f32.mrb[0].mxu0
        %v5036 = vpop.f32.mrb[0].mxu0
        %v5037 = vadd.f32 %v4953, %v5036
        %v5038 = vpop.f32.mrb[0].mxu0
        %5039 = vmatprep.mubr.bf16.mxu0 0
        %5040 = vmatmul.mubr.bf16.gmra.mrb[0].mxu0 %v4986
        %v5041 = vpop.f32.mrb[0].mxu0
        %v5042 = vadd.f32 %v4953, %v5041
        %v5043 = vpop.f32.mrb[0].mxu0
        %v5044 = vpop.f32.mrb[0].mxu0
        %v5045 = vadd.f32 %v4953, %v5044
        %v5046 = vpop.f32.mrb[0].mxu0
        %5047 = vmatprep.mubr.bf16.mxu0 0
        %5048 = vmatmul.mubr.bf16.gmra.mrb[0].mxu0 %v4989
        %v5049 = vpop.f32.mrb[0].mxu0
        %v5050 = vadd.f32 %v4953, %v5049
        %v5051 = vpop.f32.mrb[0].mxu0
        %v5052 = vpop.f32.mrb[0].mxu0
        %v5053 = vadd.f32 %v4953, %v5052
        %v5054 = vpop.f32.mrb[0].mxu0
        %5055 = vdwg.mxu0
        %v5056 = vmax.f32 %v5026, 0.0
        %v5057 = vmax.f32 %v5029, 0.0
        %v5058 = vmax.f32 %v5034, 0.0
        %v5059 = vmax.f32 %v5037, 0.0
        %v5060 = vmax.f32 %v5042, 0.0
        %v5061 = vmax.f32 %v5045, 0.0
        %v5062 = vmax.f32 %v5050, 0.0
        %v5063 = vmax.f32 %v5053, 0.0
        %v5064 = vld [vmem:[#allocation13] sm:$0x1]
        %v5066 = vlaneseq
        %v5067 = vshrl.u32 %v5066, 7
        %v5068 = vsub.s32 0, %v5067
        %v5069 = vrot.slane %v5064, %v5068
        %v5071 = vmul.f32 %v5056, %v5069
        %v5072 = vmul.f32 %v5057, %v5069
        %v5073 = vmul.f32 %v5058, %v5069
        %v5074 = vmul.f32 %v5059, %v5069
        %v5075 = vmul.f32 %v5060, %v5069
        %v5076 = vmul.f32 %v5061, %v5069
        %v5077 = vmul.f32 %v5062, %v5069
        %v5078 = vmul.f32 %v5063, %v5069
        %v5079 = vld [vmem:[#allocation15] sm:$0x1]
        %v5081 = vlaneseq
        %v5082 = vshrl.u32 %v5081, 7
        %v5083 = vsub.s32 0, %v5082
        %v5084 = vrot.slane %v5079, %v5083
        %v5086 = vadd.f32 %v5071, %v5084
        %v5087 = vadd.f32 %v5072, %v5084
        %v5088 = vadd.f32 %v5073, %v5084
        %v5089 = vadd.f32 %v5074, %v5084
        %v5090 = vadd.f32 %v5075, %v5084
        %v5091 = vadd.f32 %v5076, %v5084
        %v5092 = vadd.f32 %v5077, %v5084
        %v5093 = vadd.f32 %v5078, %v5084
        %v5094 = vsel %vm710, %v5086, 0.0
        %v5095 = vsel %vm710, %v5087, 0.0
        %v5096 = vadd.f32 %v5094, %v5095
        %v5097 = vsel %vm710, %v5088, 0.0
        %v5098 = vadd.f32 %v5096, %v5097
        %v5099 = vsel %vm710, %v5089, 0.0
        %v5100 = vadd.f32 %v5098, %v5099
        %v5101 = vrot.slane %v5100, 4
        %v5102 = vadd.f32 %v5100, %v5101
        %v5103 = vrot.slane %v5102, 2
        %v5104 = vadd.f32 %v5102, %v5103
        %v5105 = vrot.slane %v5104, 1
        %v5106 = vadd.f32 %v5104, %v5105
        %v5107 = vsel %vm710, %v5090, 0.0
        %v5108 = vsel %vm710, %v5091, 0.0
        %v5109 = vadd.f32 %v5107, %v5108
        %v5110 = vsel %vm710, %v5092, 0.0
        %v5111 = vadd.f32 %v5109, %v5110
        %v5112 = vsel %vm710, %v5093, 0.0
        %v5113 = vadd.f32 %v5111, %v5112
        %v5114 = vrot.slane %v5113, 4
        %v5115 = vadd.f32 %v5113, %v5114
        %v5116 = vrot.slane %v5115, 2
        %v5117 = vadd.f32 %v5115, %v5116
        %v5118 = vrot.slane %v5117, 1
        %v5119 = vadd.f32 %v5117, %v5118
        %v5120 = vrcp.pop 32.0
        %v5121 = vmul.f32 %v5106, %v5120
        %v5122 = vmul.f32 %v5119, %v5120
        %v5123 = vld [vmem:[%s13] sm:$0xf]
        %v5124 = vld [vmem:[%s13 + $0x4] sm:$0xf]
        %v5125 = vld [vmem:[%s13 + $0x8] sm:$0xf]
        %v5126 = vld [vmem:[%s13 + $0xc] sm:$0xf]
        %v5127 = vld [vmem:[%s13 + $0x10] sm:$0xf]
        %v5128 = vld [vmem:[%s13 + $0x14] sm:$0xf]
        %v5129 = vld [vmem:[%s13 + $0x18] sm:$0xf]
        %v5130 = vld [vmem:[%s13 + $0x1c] sm:$0xf]
        %v5131 = vpack.c.bf16 %v5121, %v5121
        %v5132 = vpack.c.bf16 %v5122, %v5122
        %v5133 = vld [vmem:[#allocation16] sm:$0x1]
        %v5135 = vlaneseq
        %v5136 = vshrl.u32 %v5135, 7
        %v5137 = vsub.s32 0, %v5136
        %v5138 = vrot.slane %v5133, %v5137
        %v5142 = vunpack.c.l.b16 %v5131
        %v5143 = vunpack.c.l.b16 %v5132
        %vm5144 = vcmask 1041409
        %v5145 = vsel %vm5144, %v5143, %v5142
        %v5146 = vpack.c.b16 %v5145, %v5145
        %v5155 = vunpack.c.l.b16 %v5123
        %v5156 = vunpack.c.l.b16 %v5124
        %v5157 = vunpack.c.l.b16 %v5125
        %v5158 = vunpack.c.l.b16 %v5126
        %v5159 = vunpack.c.l.b16 %v5127
        %v5160 = vunpack.c.l.b16 %v5128
        %v5161 = vunpack.c.l.b16 %v5129
        %v5162 = vunpack.c.l.b16 %v5130
        %v5163 = vpack.c.b16 %v5156, %v5155
        %v5164 = vpack.c.b16 %v5158, %v5157
        %v5165 = vpack.c.b16 %v5160, %v5159
        %v5166 = vpack.c.b16 %v5162, %v5161
        %v5172 = vsel %vm710, %v5146, 0
        %5174 = vmatprep.subr.bf16.mxu0 0
        %5175 = vmatpush1.bf16.msra.mxu0 %v5163
        %5176 = vmatprep.subr.bf16.mxu0 0
        %5177 = vmatpush1.bf16.msra.mxu0 %v5164
        %5178 = vmatprep.subr.bf16.mxu0 0
        %5179 = vmatpush1.bf16.msra.mxu0 %v5165
        %5180 = vmatprep.subr.bf16.mxu0 0
        %5181 = vmatpush1.bf16.msra.mxu0 %v5166
        %5182 = vmatprep.subr.bf16.mxu0 0
        %5183 = vmatpush1.bf16.msra.mxu0 0
        %5184 = vmatprep.subr.bf16.mxu0 0
        %5185 = vmatpush1.bf16.msra.mxu0 0
        %5186 = vmatprep.subr.bf16.mxu0 0
        %5187 = vmatpush1.bf16.msra.mxu0 0
        %5188 = vmatprep.subr.bf16.mxu0 0
        %5189 = vmatpush1.bf16.msra.mxu0 0
        %5190 = vmatprep.subr.bf16.mxu0 0
        %5191 = vmatpush1.bf16.msra.mxu0 0
        %5192 = vmatprep.subr.bf16.mxu0 0
        %5193 = vmatpush1.bf16.msra.mxu0 0
        %5194 = vmatprep.subr.bf16.mxu0 0
        %5195 = vmatpush1.bf16.msra.mxu0 0
        %5196 = vmatprep.subr.bf16.mxu0 0
        %5197 = vmatpush1.bf16.msra.mxu0 0
        %5198 = vmatprep.subr.bf16.mxu0 0
        %5199 = vmatpush1.bf16.msra.mxu0 0
        %5200 = vmatprep.subr.bf16.mxu0 0
        %5201 = vmatpush1.bf16.msra.mxu0 0
        %5202 = vmatprep.subr.bf16.mxu0 0
        %5203 = vmatpush1.bf16.msra.mxu0 0
        %5204 = vmatprep.subr.bf16.mxu0 0
        %5205 = vmatpush1.bf16.msra.mxu0 0
        %5206 = vmatprep.mubr.bf16.mxu0 0
        %5207 = vmatmul.mubr.bf16.gmra.mrb[0].mxu0 %v5172
        %v5208 = vpop.f32.mrb[0].mxu0
        %v5209 = vadd.f32 %v5138, %v5208
        %v5210 = vpop.f32.mrb[0].mxu0
        %v5211 = vpop.f32.mrb[0].mxu0
        %v5212 = vpop.f32.mrb[0].mxu0
        %5213 = vdwg.mxu0
        %v5214 = vmax.f32 %v5209, 0.0
        %v5215 = vld [vmem:[%s15] sm:$0xf]
        %v5216 = vld [vmem:[%s15 + $0x4] sm:$0xf]
        %v5217 = vld [vmem:[%s15 + $0x8] sm:$0xf]
        %v5218 = vld [vmem:[%s15 + $0xc] sm:$0xf]
        %v5219 = vld [vmem:[%s15 + $0x10] sm:$0xf]
        %v5220 = vld [vmem:[%s15 + $0x14] sm:$0xf]
        %v5221 = vld [vmem:[%s15 + $0x18] sm:$0xf]
        %v5222 = vld [vmem:[%s15 + $0x1c] sm:$0xf]
        %v5223 = vld [vmem:[%s15 + $0x20] sm:$0xf]
        %v5224 = vld [vmem:[%s15 + $0x24] sm:$0xf]
        %v5225 = vld [vmem:[%s15 + $0x28] sm:$0xf]
        %v5226 = vld [vmem:[%s15 + $0x2c] sm:$0xf]
        %v5227 = vld [vmem:[%s15 + $0x30] sm:$0xf]
        %v5228 = vld [vmem:[%s15 + $0x34] sm:$0xf]
        %v5229 = vld [vmem:[%s15 + $0x38] sm:$0xf]
        %v5230 = vld [vmem:[%s15 + $0x3c] sm:$0xf]
        %v5231 = vpack.c.bf16 %v5214, %v5214
        %v5232 = vld [vmem:[%s16] sm:$0x1]
        %v5234 = vlaneseq
        %v5235 = vshrl.u32 %v5234, 7
        %v5236 = vsub.s32 0, %v5235
        %v5237 = vrot.slane %v5232, %v5236
        %v5255 = vunpack.c.l.b16 %v5215
        %v5256 = vunpack.c.l.b16 %v5216
        %v5257 = vunpack.c.l.b16 %v5217
        %v5258 = vunpack.c.l.b16 %v5218
        %v5259 = vunpack.c.l.b16 %v5219
        %v5260 = vunpack.c.l.b16 %v5220
        %v5261 = vunpack.c.l.b16 %v5221
        %v5262 = vunpack.c.l.b16 %v5222
        %v5263 = vunpack.c.l.b16 %v5223
        %v5264 = vunpack.c.l.b16 %v5224
        %v5265 = vunpack.c.l.b16 %v5225
        %v5266 = vunpack.c.l.b16 %v5226
        %v5267 = vunpack.c.l.b16 %v5227
        %v5268 = vunpack.c.l.b16 %v5228
        %v5269 = vunpack.c.l.b16 %v5229
        %v5270 = vunpack.c.l.b16 %v5230
        %v5271 = vpack.c.b16 %v5256, %v5255
        %v5272 = vpack.c.b16 %v5258, %v5257
        %v5273 = vpack.c.b16 %v5260, %v5259
        %v5274 = vpack.c.b16 %v5262, %v5261
        %v5275 = vpack.c.b16 %v5264, %v5263
        %v5276 = vpack.c.b16 %v5266, %v5265
        %v5277 = vpack.c.b16 %v5268, %v5267
        %v5278 = vpack.c.b16 %v5270, %v5269
        %5287 = vmatprep.subr.bf16.mxu0 0
        %5288 = vmatpush1.bf16.msra.mxu0 %v5271
        %5289 = vmatprep.subr.bf16.mxu0 0
        %5290 = vmatpush1.bf16.msra.mxu0 %v5272
        %5291 = vmatprep.subr.bf16.mxu0 0
        %5292 = vmatpush1.bf16.msra.mxu0 %v5273
        %5293 = vmatprep.subr.bf16.mxu0 0
        %5294 = vmatpush1.bf16.msra.mxu0 %v5274
        %5295 = vmatprep.subr.bf16.mxu0 0
        %5296 = vmatpush1.bf16.msra.mxu0 %v5275
        %5297 = vmatprep.subr.bf16.mxu0 0
        %5298 = vmatpush1.bf16.msra.mxu0 %v5276
        %5299 = vmatprep.subr.bf16.mxu0 0
        %5300 = vmatpush1.bf16.msra.mxu0 %v5277
        %5301 = vmatprep.subr.bf16.mxu0 0
        %5302 = vmatpush1.bf16.msra.mxu0 %v5278
        %5303 = vmatprep.subr.bf16.mxu0 0
        %5304 = vmatpush1.bf16.msra.mxu0 0
        %5305 = vmatprep.subr.bf16.mxu0 0
        %5306 = vmatpush1.bf16.msra.mxu0 0
        %5307 = vmatprep.subr.bf16.mxu0 0
        %5308 = vmatpush1.bf16.msra.mxu0 0
        %5309 = vmatprep.subr.bf16.mxu0 0
        %5310 = vmatpush1.bf16.msra.mxu0 0
        %5311 = vmatprep.subr.bf16.mxu0 0
        %5312 = vmatpush1.bf16.msra.mxu0 0
        %5313 = vmatprep.subr.bf16.mxu0 0
        %5314 = vmatpush1.bf16.msra.mxu0 0
        %5315 = vmatprep.subr.bf16.mxu0 0
        %5316 = vmatpush1.bf16.msra.mxu0 0
        %5317 = vmatprep.subr.bf16.mxu0 0
        %5318 = vmatpush1.bf16.msra.mxu0 0
        %5319 = vmatprep.mubr.bf16.mxu0 0
        %5320 = vmatmul.mubr.bf16.gmra.mrb[0].mxu0 %v5231
        %v5321 = vpop.f32.mrb[0].mxu0
        %v5322 = vadd.f32 %v5237, %v5321
        %v5323 = vpop.f32.mrb[0].mxu0
        %v5324 = vpop.f32.mrb[0].mxu0
        %v5325 = vpop.f32.mrb[0].mxu0
        %5326 = vdwg.mxu0
        %v5327 = vxor.u32 %v5322, 2147483648
        %v5328 = vmul.f32 %v5327, 1.442695
        %v5329 = vpow.pop %v5328
        %v5330 = vadd.f32 %v5329, 1.0
        %v5331 = vrcp.pop %v5330
        %v5332 = vmul.f32 1.0, %v5331
        %v5335 = vunpack.c.l.s4 1966171168
        %v5336 = vunpack.c.0.s8 %v5335
        %v5337 = vlaneseq
        %v5338 = vshrl.u32 %v5337, 7
        %v5339 = vsub.s32 %v5336, %v5338
        %v5340 = vrot.slane %v5332, %v5339
        %v5341 = vcombine.high %v5340, %v5340
        %v5343 = vunpack.c.l.s4 1966171168
        %v5344 = vunpack.c.0.s8 %v5343
        %v5345 = vlaneseq
        %v5346 = vshrl.u32 %v5345, 7
        %v5347 = vsub.s32 %v5344, %v5346
        %v5348 = vrot.slane %v5340, %v5347
        %v5350 = vunpack.c.l.s4 1966171168
        %v5351 = vunpack.c.0.s8 %v5350
        %v5352 = vlaneseq
        %v5353 = vshrl.u32 %v5352, 7
        %v5354 = vsub.s32 %v5351, %v5353
        %v5355 = vrot.slane %v5341, %v5354
        %v5356 = vlaneseq
        %v5357 = vshrl.u32 %v5356, 7
        %v5358 = vsub.s32 0, %v5357
        %v5359 = vrot.slane %v5348, %v5358
        %v5360 = vlaneseq
        %v5361 = vshrl.u32 %v5360, 7
        %v5362 = vsub.s32 0, %v5361
        %v5363 = vrot.slane %v5355, %v5362
        %v5366 = vmul.f32 %v5086, %v5359
        %v5367 = vmul.f32 %v5087, %v5359
        %v5368 = vmul.f32 %v5088, %v5359
        %v5369 = vmul.f32 %v5089, %v5359
        %v5370 = vmul.f32 %v5090, %v5363
        %v5371 = vmul.f32 %v5091, %v5363
        %v5372 = vmul.f32 %v5092, %v5363
        %v5373 = vmul.f32 %v5093, %v5363
        %v5374 = vadd.f32 %v5366, %v659
        %v5375 = vadd.f32 %v5367, %v660
        %v5376 = vadd.f32 %v5368, %v661
        %v5377 = vadd.f32 %v5369, %v662
        %v5378 = vadd.f32 %v5370, %v663
        %v5379 = vadd.f32 %v5371, %v664
        %v5380 = vadd.f32 %v5372, %v665
        %v5381 = vadd.f32 %v5373, %v666
        %5382 = vst.msk [vmem:[%s649] sm:$0xff] %vm710, %v5374
        %5383 = vst.msk [vmem:[%s649 + $0x8] sm:$0xff] %vm710, %v5375
        %5384 = vst.msk [vmem:[%s649 + $0x10] sm:$0xff] %vm710, %v5376
        %5385 = vst.msk [vmem:[%s649 + $0x18] sm:$0xff] %vm710, %v5377
        %5386 = vst.msk [vmem:[%s649 + $0x20] sm:$0xff] %vm710, %v5378
        %5387 = vst.msk [vmem:[%s649 + $0x28] sm:$0xff] %vm710, %v5379
        %5388 = vst.msk [vmem:[%s649 + $0x30] sm:$0xff] %vm710, %v5380
        %5389 = vst.msk [vmem:[%s649 + $0x38] sm:$0xff] %vm710, %v5381
        %s5390 = sand.u32 %s406, 1
        %s5391 = scalar_lea.sflag [#allocation6], %s5390
        %s5392 = sand.u32 %s406, 1
        %s5393 = smul.addr %s5392, 64
        %s5394 = scalar_lea.vmem [#allocation18], %s5393
        // Predicated region
        $region121: #{tpu_custom_call.1} parent=87 // pred_check
          %p5395 = pneg %p416
        $region122: #{tpu_custom_call.1} parent=87 // pred_check_branch
          %5397 = sbr.rel (%p5395) target = $region124
        $region123: #{tpu_custom_call.1} parent=87 // pred_region
          %s5398 = smul.u32 2, %s36
          %s5400 = ssub.s32 1024, 1024
          %5401 = vsyncadd %s5391, %s5400
          %s5402 = smul.addr %s5398, 4
          %s5403 = smul.addr %s5402, 128
          %s5404 = scalar_lea.hbm %s17, %s5403
          %s5405 = sshll.u32 %s5394, 4
          %s5406 = int_to_ptr.vmem [resolvable:$true] %s5405
          %5411 = dma.vmem_to_hbm [thread:$0]  %s5406, 1024, %s5404, %s5391, 128, 128, 8
        $region124: #{tpu_custom_call.1} parent=87 // pred_fallthru
          _
      $region88: #{tpu_custom_call.1} parent=5 // pred_fallthru
        _
      %p5412 = scmp.le.s32.totalorder 2, %s31
      // Predicated region
      $region125: #{tpu_custom_call.1} parent=5 // pred_check
        %p5413 = pneg %p5412
      $region126: #{tpu_custom_call.1} parent=5 // pred_check_branch
        %5415 = sbr.rel (%p5413) target = $region128
      $region127: #{tpu_custom_call.1} parent=5 // pred_region
        %s5416 = ssub.s32 %s31, 2
        // Predicated region
        $region129: #{tpu_custom_call.1} parent=127 // pred_check
          %p5417 = pneg %p422
        $region130: #{tpu_custom_call.1} parent=127 // pred_check_branch
          %5419 = sbr.rel (%p5417) target = $region132
        $region131: #{tpu_custom_call.1} parent=127 // pred_region
          %s5420 = sand.u32 %s407, 1
          %s5421 = scalar_lea.sflag [#allocation6], %s5420
          %s5422 = sand.u32 %s407, 1
          %s5423 = smul.addr %s5422, 64
          %s5424 = scalar_lea.vmem [#allocation18], %s5423
          %5425 = dma.done %s5421, 1024
        $region132: #{tpu_custom_call.1} parent=127 // pred_fallthru
          _
      $region128: #{tpu_custom_call.1} parent=5 // pred_fallthru
        _
    $region6: #{tpu_custom_call.1} parent=1 // loop_footer
      %s35 = sadd.s32 1, %s31
    $region7: #{tpu_custom_call.1} parent=1 // loop_footer_branch
      %30 = sbr.rel target = $region3
    $region8: #{tpu_custom_call.1} parent=1 // loop_exit
      _
    %5426 = vsyncpa [#allocation5], 1
    %s5427 = scalar_lea.sflag [#allocation5], 1
    %5428 = vsyncpa %s5427, 1
    %5429 = vsyncpa [#allocation8], 1
    %5430 = vsyncpa [#allocation11], 1
    %5431 = vsyncpa [#allocation14], 1
    %5432 = vsyncpa [#allocation17], 1
    %5433 = vsyncpa [#allocation6], 1
    %s5434 = scalar_lea.sflag [#allocation6], 1
    %5435 = vsyncpa %s5434, 1

</llo_original>
